<compile_context>
chip_gen: v7x
topology: tpu7x:2x2x1
jax: 0.10.0
libtpu: 0.0.40
codegen_flags: <defaults>
</compile_context>

<pallas_src>
import functools
import math

import jax
import jax.numpy as jnp
from jax.experimental import pallas as pl
from jax.experimental.pallas import tpu as pltpu

# -------------------- config (small, consistent with the module) -----------
B, V = 2, 2                 # batch, views
C_IN = 3                    # RGB
IMG = 16                    # config.dataset.img_size_input
PATCH = 4                   # backbone patch size -> down_rate
FEAT_RES = IMG // PATCH     # self.feat_res = 4
D_BB = 32                   # backbone_dim
BB_HEADS = 2
D_OUT = 16                  # config.model.backbone_out_dim
CV_HEADS = 2
MLP_RATIO = 4
LN_EPS = 1e-5

# ============================ in-kernel building blocks =====================

def _ln(x, g, b):
    """LayerNorm over the last axis; x [T, D] f32, g/b [1, D]."""
    mu = jnp.mean(x, axis=-1, keepdims=True)
    var = jnp.mean((x - mu) ** 2, axis=-1, keepdims=True)
    return (x - mu) * jax.lax.rsqrt(var + LN_EPS) * g + b


def _block_body(x, ln1_g, ln1_b, qkv_w, qkv_b, proj_w, proj_b,
                ln2_g, ln2_b, fc1_w, fc1_b, fc2_w, fc2_b, heads):
    """Pre-LN transformer encoder block on a VMEM-resident slab x [T, D]."""
    T, D = x.shape
    Dh = D // heads
    scale = 1.0 / math.sqrt(Dh)

    # ---- multi-head self-attention -----------------------------------------
    x2 = _ln(x, ln1_g, ln1_b)
    qkv = jnp.dot(x2, qkv_w, preferred_element_type=jnp.float32) + qkv_b  # [T, 3D]
    head_outs = []
    for hh in range(heads):                       # static unroll over heads
        lo = hh * Dh
        qh = qkv[:, lo:lo + Dh]
        kh = qkv[:, D + lo:D + lo + Dh]
        vh = qkv[:, 2 * D + lo:2 * D + lo + Dh]
        s = jnp.dot(qh, kh.T, preferred_element_type=jnp.float32) * scale
        m = jnp.max(s, axis=-1, keepdims=True)
        p = jnp.exp(s - m)
        p = p * pl.reciprocal(jnp.sum(p, axis=-1, keepdims=True), approx=True)
        head_outs.append(jnp.dot(p, vh, preferred_element_type=jnp.float32))
    o = jnp.concatenate(head_outs, axis=-1)                               # [T, D]
    o = jnp.dot(o, proj_w, preferred_element_type=jnp.float32) + proj_b
    x = x + o

    # ---- MLP ----------------------------------------------------------------
    x2 = _ln(x, ln2_g, ln2_b)
    h1 = jnp.dot(x2, fc1_w, preferred_element_type=jnp.float32) + fc1_b
    # TODO(synk): PyTorch nn.GELU default is exact erf; tanh approximation used here.
    h1 = jax.nn.gelu(h1, approximate=True)        # keep f32 into second matmul
    m2 = jnp.dot(h1, fc2_w, preferred_element_type=jnp.float32) + fc2_b
    return x + m2

# ============================ fused Pallas kernels ==========================

def _backbone_kernel(patches_ref, patch_w_ref, patch_b_ref, pos_ref,
                     ln1_g_ref, ln1_b_ref, qkv_w_ref, qkv_b_ref,
                     proj_w_ref, proj_b_ref, ln2_g_ref, ln2_b_ref,
                     fc1_w_ref, fc1_b_ref, fc2_w_ref, fc2_b_ref,
                     out_w_ref, out_b_ref, o_ref, *, heads):
    """One view per grid step: patch-embed + pos -> transformer -> 1x1 out-conv."""
    p = patches_ref[...][0].astype(jnp.float32)                  # [T, C*P*P]
    x = jnp.dot(p, patch_w_ref[...], preferred_element_type=jnp.float32)
    x = x + patch_b_ref[...] + pos_ref[...]                      # [T, D_BB]

    x = _block_body(x,
                    ln1_g_ref[...], ln1_b_ref[...],
                    qkv_w_ref[...], qkv_b_ref[...],
                    proj_w_ref[...], proj_b_ref[...],
                    ln2_g_ref[...], ln2_b_ref[...],
                    fc1_w_ref[...], fc1_b_ref[...],
                    fc2_w_ref[...], fc2_b_ref[...], heads)

    # BackboneOutBlock: 1x1 conv D_BB -> D_OUT (per-token matmul), fused here.
    y = jnp.dot(x, out_w_ref[...], preferred_element_type=jnp.float32) + out_b_ref[...]
    o_ref[...] = y.astype(o_ref.dtype)[None, :, :]


def _crossview_kernel(x_ref,
                      ln1_g_ref, ln1_b_ref, qkv_w_ref, qkv_b_ref,
                      proj_w_ref, proj_b_ref, ln2_g_ref, ln2_b_ref,
                      fc1_w_ref, fc1_b_ref, fc2_w_ref, fc2_b_ref,
                      o_ref, *, heads):
    """One batch item per grid step: transformer over all views' tokens."""
    x = x_ref[...][0].astype(jnp.float32)                        # [V*T, D_OUT]
    x = _block_body(x,
                    ln1_g_ref[...], ln1_b_ref[...],
                    qkv_w_ref[...], qkv_b_ref[...],
                    proj_w_ref[...], proj_b_ref[...],
                    ln2_g_ref[...], ln2_b_ref[...],
                    fc1_w_ref[...], fc1_b_ref[...],
                    fc2_w_ref[...], fc2_b_ref[...], heads)
    o_ref[...] = x.astype(o_ref.dtype)[None, :, :]

# ============================ pallas_call wrappers ==========================

def _const2d(shape):
    return pl.BlockSpec(shape, lambda i: (0, 0))


def backbone_forward(patches, params):
    """patches: [N, T, C*P*P] -> features: [N, T, D_OUT] (one fused kernel)."""
    N, T, CPP = patches.shape
    D = D_BB
    hidden = D * MLP_RATIO
    blk = params["bb_blk"]
    return pl.pallas_call(
        functools.partial(_backbone_kernel, heads=BB_HEADS),
        out_shape=jax.ShapeDtypeStruct((N, T, D_OUT), patches.dtype),
        grid=(N,),
        in_specs=[
            pl.BlockSpec((1, T, CPP), lambda i: (i, 0, 0)),
            _const2d((CPP, D)), _const2d((1, D)),          # patch embed w, b
            _const2d((T, D)),                              # pos embed
            _const2d((1, D)), _const2d((1, D)),            # ln1 g, b
            _const2d((D, 3 * D)), _const2d((1, 3 * D)),    # qkv w, b
            _const2d((D, D)), _const2d((1, D)),            # proj w, b
            _const2d((1, D)), _const2d((1, D)),            # ln2 g, b
            _const2d((D, hidden)), _const2d((1, hidden)),  # fc1 w, b
            _const2d((hidden, D)), _const2d((1, D)),       # fc2 w, b
            _const2d((D, D_OUT)), _const2d((1, D_OUT)),    # BackboneOutBlock w, b
        ],
        out_specs=pl.BlockSpec((1, T, D_OUT), lambda i: (i, 0, 0)),
        compiler_params=pltpu.CompilerParams(dimension_semantics=("parallel",)),
    )(patches,
      params["patch_w"], params["patch_b"].reshape(1, D),
      params["pos_embed"].reshape(T, D),
      blk["ln1_g"].reshape(1, D), blk["ln1_b"].reshape(1, D),
      blk["qkv_w"], blk["qkv_b"].reshape(1, 3 * D),
      blk["proj_w"], blk["proj_b"].reshape(1, D),
      blk["ln2_g"].reshape(1, D), blk["ln2_b"].reshape(1, D),
      blk["fc1_w"], blk["fc1_b"].reshape(1, hidden),
      blk["fc2_w"], blk["fc2_b"].reshape(1, D),
      params["out_w"], params["out_b"].reshape(1, D_OUT))


def crossview_forward(xv, blk):
    """xv: [B, V*T, D_OUT] -> [B, V*T, D_OUT] (one fused kernel per batch item)."""
    Bb, S, D = xv.shape
    hidden = D * MLP_RATIO
    return pl.pallas_call(
        functools.partial(_crossview_kernel, heads=CV_HEADS),
        out_shape=jax.ShapeDtypeStruct((Bb, S, D), xv.dtype),
        grid=(Bb,),
        in_specs=[
            pl.BlockSpec((1, S, D), lambda i: (i, 0, 0)),
            _const2d((1, D)), _const2d((1, D)),            # ln1 g, b
            _const2d((D, 3 * D)), _const2d((1, 3 * D)),    # qkv w, b
            _const2d((D, D)), _const2d((1, D)),            # proj w, b
            _const2d((1, D)), _const2d((1, D)),            # ln2 g, b
            _const2d((D, hidden)), _const2d((1, hidden)),  # fc1 w, b
            _const2d((hidden, D)), _const2d((1, D)),       # fc2 w, b
        ],
        out_specs=pl.BlockSpec((1, S, D), lambda i: (i, 0, 0)),
        compiler_params=pltpu.CompilerParams(dimension_semantics=("parallel",)),
    )(xv,
      blk["ln1_g"].reshape(1, D), blk["ln1_b"].reshape(1, D),
      blk["qkv_w"], blk["qkv_b"].reshape(1, 3 * D),
      blk["proj_w"], blk["proj_b"].reshape(1, D),
      blk["ln2_g"].reshape(1, D), blk["ln2_b"].reshape(1, D),
      blk["fc1_w"], blk["fc1_b"].reshape(1, hidden),
      blk["fc2_w"], blk["fc2_b"].reshape(1, D))

# ============================ model (glue in JAX) ===========================

def leap_encoder_forward(imgs, params):
    """imgs: [B, V, C, H, W] -> features: [B, V, D_OUT, FEAT_RES, FEAT_RES]"""
    Bb, Vv, C, H, W = imgs.shape
    N = Bb * Vv
    h, w = H // PATCH, W // PATCH
    T = h * w

    # Patch unfold (pure layout, done once by XLA): [N, T, C*P*P]
    x = imgs.reshape(N, C, H, W)
    patches = (x.reshape(N, C, h, PATCH, w, PATCH)
                 .transpose(0, 2, 4, 1, 3, 5)
                 .reshape(N, T, C * PATCH * PATCH))

    # Fused backbone: patch embed + pos + transformer block + 1x1 out conv.
    feat = backbone_forward(patches, params)                 # [N, T, D_OUT]

    # CrossViewEncoder: attention over all views' tokens per batch item.
    xv = feat.reshape(Bb, Vv * T, D_OUT)                     # contiguous reshape
    xv = crossview_forward(xv, params["cv_blk"])             # [B, V*T, D_OUT]

    # Single final transpose back to NCHW-style [B, V, C_out, h, w].
    out = xv.reshape(Bb, Vv, h, w, D_OUT).transpose(0, 1, 4, 2, 3)
    return out

# ============================ deterministic params ==========================

def _init_block(key, dim):
    k = jax.random.split(key, 4)
    hidden = dim * MLP_RATIO
    n = lambda kk, s: (jax.random.normal(kk, s, jnp.float32) * 0.02)
    return dict(
        ln1_g=jnp.ones((dim,), jnp.float32), ln1_b=jnp.zeros((dim,), jnp.float32),
        qkv_w=n(k[0], (dim, 3 * dim)), qkv_b=jnp.zeros((3 * dim,), jnp.float32),
        proj_w=n(k[1], (dim, dim)), proj_b=jnp.zeros((dim,), jnp.float32),
        ln2_g=jnp.ones((dim,), jnp.float32), ln2_b=jnp.zeros((dim,), jnp.float32),
        fc1_w=n(k[2], (dim, hidden)), fc1_b=jnp.zeros((hidden,), jnp.float32),
        fc2_w=n(k[3], (hidden, dim)), fc2_b=jnp.zeros((dim,), jnp.float32),
    )


def init_params(key):
    k = jax.random.split(key, 6)
    n = lambda kk, s: (jax.random.normal(kk, s, jnp.float32) * 0.02)
    return dict(
        patch_w=n(k[0], (C_IN * PATCH * PATCH, D_BB)),
        patch_b=jnp.zeros((D_BB,), jnp.float32),
        pos_embed=n(k[1], (1, FEAT_RES * FEAT_RES, D_BB)),
        bb_blk=_init_block(k[2], D_BB),
        out_w=n(k[3], (D_BB, D_OUT)),
        out_b=jnp.zeros((D_OUT,), jnp.float32),
        cv_blk=_init_block(k[4], D_OUT),
    )

# ============================ main ==========================================

if __name__ == "__main__":
    key = jax.random.PRNGKey(0)
    pkey, xkey = jax.random.split(key)
    params = init_params(pkey)
    imgs = jax.random.normal(xkey, (B, V, C_IN, IMG, IMG), jnp.float32)

    fwd = jax.jit(leap_encoder_forward)
    out = fwd(imgs, params)
    out = jax.block_until_ready(out)

    assert out.shape == (B, V, D_OUT, FEAT_RES, FEAT_RES), out.shape
    assert jnp.all(jnp.isfinite(out))
    print("KERNEL_OK")
</pallas_src>

<mosaic_0001>
module attributes {stable_mosaic.version = 11 : i64} {
  func.func @_backbone_kernel(%arg0: i32, %arg1: memref<1x16x48xf32, #tpu.memory_space<vmem>>, %arg2: memref<48x32xf32, #tpu.memory_space<vmem>>, %arg3: memref<1x32xf32, #tpu.memory_space<vmem>>, %arg4: memref<16x32xf32, #tpu.memory_space<vmem>>, %arg5: memref<1x32xf32, #tpu.memory_space<vmem>>, %arg6: memref<1x32xf32, #tpu.memory_space<vmem>>, %arg7: memref<32x96xf32, #tpu.memory_space<vmem>>, %arg8: memref<1x96xf32, #tpu.memory_space<vmem>>, %arg9: memref<32x32xf32, #tpu.memory_space<vmem>>, %arg10: memref<1x32xf32, #tpu.memory_space<vmem>>, %arg11: memref<1x32xf32, #tpu.memory_space<vmem>>, %arg12: memref<1x32xf32, #tpu.memory_space<vmem>>, %arg13: memref<32x128xf32, #tpu.memory_space<vmem>>, %arg14: memref<1x128xf32, #tpu.memory_space<vmem>>, %arg15: memref<128x32xf32, #tpu.memory_space<vmem>>, %arg16: memref<1x32xf32, #tpu.memory_space<vmem>>, %arg17: memref<32x16xf32, #tpu.memory_space<vmem>>, %arg18: memref<1x16xf32, #tpu.memory_space<vmem>>, %arg19: memref<1x16x16xf32, #tpu.memory_space<vmem>>) attributes {dimension_semantics = [#tpu.dimension_semantics<parallel>], iteration_bounds = array<i64: 4>, scalar_prefetch = 0 : i64, scratch_operands = 0 : i64, tpu.core_type = #tpu.core_type<tc>, window_params = [{transform_indices = @transform_0, window_bounds = array<i64: 1, 16, 48>}, {pipeline_mode = #tpu.pipeline_mode<synchronous>, transform_indices = @transform_1, window_bounds = array<i64: 48, 32>}, {pipeline_mode = #tpu.pipeline_mode<synchronous>, transform_indices = @transform_2, window_bounds = array<i64: 1, 32>}, {pipeline_mode = #tpu.pipeline_mode<synchronous>, transform_indices = @transform_3, window_bounds = array<i64: 16, 32>}, {pipeline_mode = #tpu.pipeline_mode<synchronous>, transform_indices = @transform_4, window_bounds = array<i64: 1, 32>}, {pipeline_mode = #tpu.pipeline_mode<synchronous>, transform_indices = @transform_5, window_bounds = array<i64: 1, 32>}, {pipeline_mode = #tpu.pipeline_mode<synchronous>, transform_indices = @transform_6, window_bounds = array<i64: 32, 96>}, {pipeline_mode = #tpu.pipeline_mode<synchronous>, transform_indices = @transform_7, window_bounds = array<i64: 1, 96>}, {pipeline_mode = #tpu.pipeline_mode<synchronous>, transform_indices = @transform_8, window_bounds = array<i64: 32, 32>}, {pipeline_mode = #tpu.pipeline_mode<synchronous>, transform_indices = @transform_9, window_bounds = array<i64: 1, 32>}, {pipeline_mode = #tpu.pipeline_mode<synchronous>, transform_indices = @transform_10, window_bounds = array<i64: 1, 32>}, {pipeline_mode = #tpu.pipeline_mode<synchronous>, transform_indices = @transform_11, window_bounds = array<i64: 1, 32>}, {pipeline_mode = #tpu.pipeline_mode<synchronous>, transform_indices = @transform_12, window_bounds = array<i64: 32, 128>}, {pipeline_mode = #tpu.pipeline_mode<synchronous>, transform_indices = @transform_13, window_bounds = array<i64: 1, 128>}, {pipeline_mode = #tpu.pipeline_mode<synchronous>, transform_indices = @transform_14, window_bounds = array<i64: 128, 32>}, {pipeline_mode = #tpu.pipeline_mode<synchronous>, transform_indices = @transform_15, window_bounds = array<i64: 1, 32>}, {pipeline_mode = #tpu.pipeline_mode<synchronous>, transform_indices = @transform_16, window_bounds = array<i64: 32, 16>}, {pipeline_mode = #tpu.pipeline_mode<synchronous>, transform_indices = @transform_17, window_bounds = array<i64: 1, 16>}, {transform_indices = @transform_18, window_bounds = array<i64: 1, 16, 16>}]} {
    %c0 = arith.constant 0 : index
    %c0_0 = arith.constant 0 : index
    %c0_1 = arith.constant 0 : index
    %0 = vector.load %arg1[%c0, %c0_0, %c0_1] : memref<1x16x48xf32, #tpu.memory_space<vmem>>, vector<1x16x48xf32>
    %1 = vector.shape_cast %0 : vector<1x16x48xf32> to vector<16x48xf32>
    %c0_2 = arith.constant 0 : index
    %c0_3 = arith.constant 0 : index
    %2 = vector.load %arg2[%c0_2, %c0_3] : memref<48x32xf32, #tpu.memory_space<vmem>>, vector<48x32xf32>
    %cst = arith.constant dense<0.000000e+00> : vector<16x32xf32>
    %3 = tpu.matmul %1, %2, %cst {dimension_numbers = #tpu.dot_dimension_numbers<[1], [0], [0], [1], [0, 0, 1, 1], [], []>} : vector<16x48xf32>, vector<48x32xf32>, vector<16x32xf32> -> vector<16x32xf32>
    %c0_4 = arith.constant 0 : index
    %c0_5 = arith.constant 0 : index
    %4 = vector.load %arg3[%c0_4, %c0_5] : memref<1x32xf32, #tpu.memory_space<vmem>>, vector<1x32xf32>
    %5 = vector.broadcast %4 : vector<1x32xf32> to vector<16x32xf32>
    %6 = arith.addf %3, %5 : vector<16x32xf32>
    %c0_6 = arith.constant 0 : index
    %c0_7 = arith.constant 0 : index
    %7 = vector.load %arg4[%c0_6, %c0_7] : memref<16x32xf32, #tpu.memory_space<vmem>>, vector<16x32xf32>
    %8 = arith.addf %6, %7 : vector<16x32xf32>
    %c0_8 = arith.constant 0 : index
    %c0_9 = arith.constant 0 : index
    %9 = vector.load %arg5[%c0_8, %c0_9] : memref<1x32xf32, #tpu.memory_space<vmem>>, vector<1x32xf32>
    %c0_10 = arith.constant 0 : index
    %c0_11 = arith.constant 0 : index
    %10 = vector.load %arg6[%c0_10, %c0_11] : memref<1x32xf32, #tpu.memory_space<vmem>>, vector<1x32xf32>
    %c0_12 = arith.constant 0 : index
    %c0_13 = arith.constant 0 : index
    %11 = vector.load %arg7[%c0_12, %c0_13] : memref<32x96xf32, #tpu.memory_space<vmem>>, vector<32x96xf32>
    %c0_14 = arith.constant 0 : index
    %c0_15 = arith.constant 0 : index
    %12 = vector.load %arg8[%c0_14, %c0_15] : memref<1x96xf32, #tpu.memory_space<vmem>>, vector<1x96xf32>
    %c0_16 = arith.constant 0 : index
    %c0_17 = arith.constant 0 : index
    %13 = vector.load %arg9[%c0_16, %c0_17] : memref<32x32xf32, #tpu.memory_space<vmem>>, vector<32x32xf32>
    %c0_18 = arith.constant 0 : index
    %c0_19 = arith.constant 0 : index
    %14 = vector.load %arg10[%c0_18, %c0_19] : memref<1x32xf32, #tpu.memory_space<vmem>>, vector<1x32xf32>
    %c0_20 = arith.constant 0 : index
    %c0_21 = arith.constant 0 : index
    %15 = vector.load %arg11[%c0_20, %c0_21] : memref<1x32xf32, #tpu.memory_space<vmem>>, vector<1x32xf32>
    %c0_22 = arith.constant 0 : index
    %c0_23 = arith.constant 0 : index
    %16 = vector.load %arg12[%c0_22, %c0_23] : memref<1x32xf32, #tpu.memory_space<vmem>>, vector<1x32xf32>
    %c0_24 = arith.constant 0 : index
    %c0_25 = arith.constant 0 : index
    %17 = vector.load %arg13[%c0_24, %c0_25] : memref<32x128xf32, #tpu.memory_space<vmem>>, vector<32x128xf32>
    %c0_26 = arith.constant 0 : index
    %c0_27 = arith.constant 0 : index
    %18 = vector.load %arg14[%c0_26, %c0_27] : memref<1x128xf32, #tpu.memory_space<vmem>>, vector<1x128xf32>
    %c0_28 = arith.constant 0 : index
    %c0_29 = arith.constant 0 : index
    %19 = vector.load %arg15[%c0_28, %c0_29] : memref<128x32xf32, #tpu.memory_space<vmem>>, vector<128x32xf32>
    %c0_30 = arith.constant 0 : index
    %c0_31 = arith.constant 0 : index
    %20 = vector.load %arg16[%c0_30, %c0_31] : memref<1x32xf32, #tpu.memory_space<vmem>>, vector<1x32xf32>
    %cst_32 = arith.constant dense<0.000000e+00> : vector<16xf32>
    %21 = vector.multi_reduction <add>, %8, %cst_32 [1] : vector<16x32xf32> to vector<16xf32>
    %22 = vector.shape_cast %21 : vector<16xf32> to vector<16x1xf32>
    %cst_33 = arith.constant 3.200000e+01 : f32
    %23 = vector.broadcast %cst_33 : f32 to vector<16x1xf32>
    %24 = arith.divf %22, %23 : vector<16x1xf32>
    %25 = vector.broadcast %24 : vector<16x1xf32> to vector<16x32xf32>
    %26 = arith.subf %8, %25 : vector<16x32xf32>
    %27 = arith.mulf %26, %26 : vector<16x32xf32>
    %cst_34 = arith.constant dense<0.000000e+00> : vector<16xf32>
    %28 = vector.multi_reduction <add>, %27, %cst_34 [1] : vector<16x32xf32> to vector<16xf32>
    %29 = vector.shape_cast %28 : vector<16xf32> to vector<16x1xf32>
    %cst_35 = arith.constant 3.200000e+01 : f32
    %30 = vector.broadcast %cst_35 : f32 to vector<16x1xf32>
    %31 = arith.divf %29, %30 : vector<16x1xf32>
    %32 = vector.broadcast %24 : vector<16x1xf32> to vector<16x32xf32>
    %33 = arith.subf %8, %32 : vector<16x32xf32>
    %cst_36 = arith.constant 9.99999974E-6 : f32
    %34 = vector.broadcast %cst_36 : f32 to vector<16x1xf32>
    %35 = arith.addf %31, %34 : vector<16x1xf32>
    %36 = math.rsqrt %35 : vector<16x1xf32>
    %37 = vector.broadcast %36 : vector<16x1xf32> to vector<16x32xf32>
    %38 = arith.mulf %33, %37 : vector<16x32xf32>
    %39 = vector.broadcast %9 : vector<1x32xf32> to vector<16x32xf32>
    %40 = arith.mulf %38, %39 : vector<16x32xf32>
    %41 = vector.broadcast %10 : vector<1x32xf32> to vector<16x32xf32>
    %42 = arith.addf %40, %41 : vector<16x32xf32>
    %cst_37 = arith.constant dense<0.000000e+00> : vector<16x96xf32>
    %43 = tpu.matmul %42, %11, %cst_37 {dimension_numbers = #tpu.dot_dimension_numbers<[1], [0], [0], [1], [0, 0, 1, 1], [], []>} : vector<16x32xf32>, vector<32x96xf32>, vector<16x96xf32> -> vector<16x96xf32>
    %44 = vector.broadcast %12 : vector<1x96xf32> to vector<16x96xf32>
    %45 = arith.addf %43, %44 : vector<16x96xf32>
    %46 = vector.extract_strided_slice %45 {offsets = [0, 0], sizes = [16, 16], strides = [1, 1]} : vector<16x96xf32> to vector<16x16xf32>
    %47 = vector.extract_strided_slice %45 {offsets = [0, 32], sizes = [16, 16], strides = [1, 1]} : vector<16x96xf32> to vector<16x16xf32>
    %48 = vector.extract_strided_slice %45 {offsets = [0, 64], sizes = [16, 16], strides = [1, 1]} : vector<16x96xf32> to vector<16x16xf32>
    %49 = tpu.transpose %47, [1, 0] : vector<16x16xf32> -> vector<16x16xf32>
    %cst_38 = arith.constant dense<0.000000e+00> : vector<16x16xf32>
    %50 = tpu.matmul %46, %49, %cst_38 {dimension_numbers = #tpu.dot_dimension_numbers<[1], [0], [0], [1], [0, 0, 1, 1], [], []>} : vector<16x16xf32>, vector<16x16xf32>, vector<16x16xf32> -> vector<16x16xf32>
    %cst_39 = arith.constant 2.500000e-01 : f32
    %51 = vector.broadcast %cst_39 : f32 to vector<16x16xf32>
    %52 = arith.mulf %50, %51 : vector<16x16xf32>
    %cst_40 = arith.constant dense<0xFF800000> : vector<16xf32>
    %53 = vector.multi_reduction <maximumf>, %52, %cst_40 [1] : vector<16x16xf32> to vector<16xf32>
    %54 = vector.shape_cast %53 : vector<16xf32> to vector<16x1xf32>
    %55 = vector.broadcast %54 : vector<16x1xf32> to vector<16x16xf32>
    %56 = arith.subf %52, %55 : vector<16x16xf32>
    %57 = math.exp %56 : vector<16x16xf32>
    %cst_41 = arith.constant dense<0.000000e+00> : vector<16xf32>
    %58 = vector.multi_reduction <add>, %57, %cst_41 [1] : vector<16x16xf32> to vector<16xf32>
    %59 = vector.shape_cast %58 : vector<16xf32> to vector<16x1xf32>
    %60 = tpu.reciprocal %59 {approx = true} : vector<16x1xf32> -> vector<16x1xf32>
    %61 = vector.broadcast %60 : vector<16x1xf32> to vector<16x16xf32>
    %62 = arith.mulf %57, %61 : vector<16x16xf32>
    %cst_42 = arith.constant dense<0.000000e+00> : vector<16x16xf32>
    %63 = tpu.matmul %62, %48, %cst_42 {dimension_numbers = #tpu.dot_dimension_numbers<[1], [0], [0], [1], [0, 0, 1, 1], [], []>} : vector<16x16xf32>, vector<16x16xf32>, vector<16x16xf32> -> vector<16x16xf32>
    %64 = vector.extract_strided_slice %45 {offsets = [0, 16], sizes = [16, 16], strides = [1, 1]} : vector<16x96xf32> to vector<16x16xf32>
    %65 = vector.extract_strided_slice %45 {offsets = [0, 48], sizes = [16, 16], strides = [1, 1]} : vector<16x96xf32> to vector<16x16xf32>
    %66 = vector.extract_strided_slice %45 {offsets = [0, 80], sizes = [16, 16], strides = [1, 1]} : vector<16x96xf32> to vector<16x16xf32>
    %67 = tpu.transpose %65, [1, 0] : vector<16x16xf32> -> vector<16x16xf32>
    %cst_43 = arith.constant dense<0.000000e+00> : vector<16x16xf32>
    %68 = tpu.matmul %64, %67, %cst_43 {dimension_numbers = #tpu.dot_dimension_numbers<[1], [0], [0], [1], [0, 0, 1, 1], [], []>} : vector<16x16xf32>, vector<16x16xf32>, vector<16x16xf32> -> vector<16x16xf32>
    %cst_44 = arith.constant 2.500000e-01 : f32
    %69 = vector.broadcast %cst_44 : f32 to vector<16x16xf32>
    %70 = arith.mulf %68, %69 : vector<16x16xf32>
    %cst_45 = arith.constant dense<0xFF800000> : vector<16xf32>
    %71 = vector.multi_reduction <maximumf>, %70, %cst_45 [1] : vector<16x16xf32> to vector<16xf32>
    %72 = vector.shape_cast %71 : vector<16xf32> to vector<16x1xf32>
    %73 = vector.broadcast %72 : vector<16x1xf32> to vector<16x16xf32>
    %74 = arith.subf %70, %73 : vector<16x16xf32>
    %75 = math.exp %74 : vector<16x16xf32>
    %cst_46 = arith.constant dense<0.000000e+00> : vector<16xf32>
    %76 = vector.multi_reduction <add>, %75, %cst_46 [1] : vector<16x16xf32> to vector<16xf32>
    %77 = vector.shape_cast %76 : vector<16xf32> to vector<16x1xf32>
    %78 = tpu.reciprocal %77 {approx = true} : vector<16x1xf32> -> vector<16x1xf32>
    %79 = vector.broadcast %78 : vector<16x1xf32> to vector<16x16xf32>
    %80 = arith.mulf %75, %79 : vector<16x16xf32>
    %cst_47 = arith.constant dense<0.000000e+00> : vector<16x16xf32>
    %81 = tpu.matmul %80, %66, %cst_47 {dimension_numbers = #tpu.dot_dimension_numbers<[1], [0], [0], [1], [0, 0, 1, 1], [], []>} : vector<16x16xf32>, vector<16x16xf32>, vector<16x16xf32> -> vector<16x16xf32>
    %82 = tpu.concatenate %63, %81 in 1 : vector<16x16xf32>, vector<16x16xf32> -> vector<16x32xf32>
    %cst_48 = arith.constant dense<0.000000e+00> : vector<16x32xf32>
    %83 = tpu.matmul %82, %13, %cst_48 {dimension_numbers = #tpu.dot_dimension_numbers<[1], [0], [0], [1], [0, 0, 1, 1], [], []>} : vector<16x32xf32>, vector<32x32xf32>, vector<16x32xf32> -> vector<16x32xf32>
    %84 = vector.broadcast %14 : vector<1x32xf32> to vector<16x32xf32>
    %85 = arith.addf %83, %84 : vector<16x32xf32>
    %86 = arith.addf %8, %85 : vector<16x32xf32>
    %cst_49 = arith.constant dense<0.000000e+00> : vector<16xf32>
    %87 = vector.multi_reduction <add>, %86, %cst_49 [1] : vector<16x32xf32> to vector<16xf32>
    %88 = vector.shape_cast %87 : vector<16xf32> to vector<16x1xf32>
    %cst_50 = arith.constant 3.200000e+01 : f32
    %89 = vector.broadcast %cst_50 : f32 to vector<16x1xf32>
    %90 = arith.divf %88, %89 : vector<16x1xf32>
    %91 = vector.broadcast %90 : vector<16x1xf32> to vector<16x32xf32>
    %92 = arith.subf %86, %91 : vector<16x32xf32>
    %93 = arith.mulf %92, %92 : vector<16x32xf32>
    %cst_51 = arith.constant dense<0.000000e+00> : vector<16xf32>
    %94 = vector.multi_reduction <add>, %93, %cst_51 [1] : vector<16x32xf32> to vector<16xf32>
    %95 = vector.shape_cast %94 : vector<16xf32> to vector<16x1xf32>
    %cst_52 = arith.constant 3.200000e+01 : f32
    %96 = vector.broadcast %cst_52 : f32 to vector<16x1xf32>
    %97 = arith.divf %95, %96 : vector<16x1xf32>
    %98 = vector.broadcast %90 : vector<16x1xf32> to vector<16x32xf32>
    %99 = arith.subf %86, %98 : vector<16x32xf32>
    %cst_53 = arith.constant 9.99999974E-6 : f32
    %100 = vector.broadcast %cst_53 : f32 to vector<16x1xf32>
    %101 = arith.addf %97, %100 : vector<16x1xf32>
    %102 = math.rsqrt %101 : vector<16x1xf32>
    %103 = vector.broadcast %102 : vector<16x1xf32> to vector<16x32xf32>
    %104 = arith.mulf %99, %103 : vector<16x32xf32>
    %105 = vector.broadcast %15 : vector<1x32xf32> to vector<16x32xf32>
    %106 = arith.mulf %104, %105 : vector<16x32xf32>
    %107 = vector.broadcast %16 : vector<1x32xf32> to vector<16x32xf32>
    %108 = arith.addf %106, %107 : vector<16x32xf32>
    %cst_54 = arith.constant dense<0.000000e+00> : vector<16x128xf32>
    %109 = tpu.matmul %108, %17, %cst_54 {dimension_numbers = #tpu.dot_dimension_numbers<[1], [0], [0], [1], [0, 0, 1, 1], [], []>} : vector<16x32xf32>, vector<32x128xf32>, vector<16x128xf32> -> vector<16x128xf32>
    %110 = vector.broadcast %18 : vector<1x128xf32> to vector<16x128xf32>
    %111 = arith.addf %109, %110 : vector<16x128xf32>
    %112 = arith.mulf %111, %111 : vector<16x128xf32>
    %113 = arith.mulf %111, %112 : vector<16x128xf32>
    %cst_55 = arith.constant 4.471500e-02 : f32
    %114 = vector.broadcast %cst_55 : f32 to vector<16x128xf32>
    %115 = arith.mulf %114, %113 : vector<16x128xf32>
    %116 = arith.addf %111, %115 : vector<16x128xf32>
    %cst_56 = arith.constant 0.797884583 : f32
    %117 = vector.broadcast %cst_56 : f32 to vector<16x128xf32>
    %118 = arith.mulf %117, %116 : vector<16x128xf32>
    %119 = math.tanh %118 : vector<16x128xf32>
    %cst_57 = arith.constant 1.000000e+00 : f32
    %120 = vector.broadcast %cst_57 : f32 to vector<16x128xf32>
    %121 = arith.addf %120, %119 : vector<16x128xf32>
    %cst_58 = arith.constant 5.000000e-01 : f32
    %122 = vector.broadcast %cst_58 : f32 to vector<16x128xf32>
    %123 = arith.mulf %122, %121 : vector<16x128xf32>
    %124 = arith.mulf %111, %123 : vector<16x128xf32>
    %cst_59 = arith.constant dense<0.000000e+00> : vector<16x32xf32>
    %125 = tpu.matmul %124, %19, %cst_59 {dimension_numbers = #tpu.dot_dimension_numbers<[1], [0], [0], [1], [0, 0, 1, 1], [], []>} : vector<16x128xf32>, vector<128x32xf32>, vector<16x32xf32> -> vector<16x32xf32>
    %126 = vector.broadcast %20 : vector<1x32xf32> to vector<16x32xf32>
    %127 = arith.addf %125, %126 : vector<16x32xf32>
    %128 = arith.addf %86, %127 : vector<16x32xf32>
    %c0_60 = arith.constant 0 : index
    %c0_61 = arith.constant 0 : index
    %129 = vector.load %arg17[%c0_60, %c0_61] : memref<32x16xf32, #tpu.memory_space<vmem>>, vector<32x16xf32>
    %cst_62 = arith.constant dense<0.000000e+00> : vector<16x16xf32>
    %130 = tpu.matmul %128, %129, %cst_62 {dimension_numbers = #tpu.dot_dimension_numbers<[1], [0], [0], [1], [0, 0, 1, 1], [], []>} : vector<16x32xf32>, vector<32x16xf32>, vector<16x16xf32> -> vector<16x16xf32>
    %c0_63 = arith.constant 0 : index
    %c0_64 = arith.constant 0 : index
    %131 = vector.load %arg18[%c0_63, %c0_64] : memref<1x16xf32, #tpu.memory_space<vmem>>, vector<1x16xf32>
    %132 = vector.broadcast %131 : vector<1x16xf32> to vector<16x16xf32>
    %133 = arith.addf %130, %132 : vector<16x16xf32>
    %134 = vector.shape_cast %133 : vector<16x16xf32> to vector<1x16x16xf32>
    %c0_65 = arith.constant 0 : index
    %c0_66 = arith.constant 0 : index
    %c0_67 = arith.constant 0 : index
    %135 = vector.load %arg19[%c0_65, %c0_66, %c0_67] : memref<1x16x16xf32, #tpu.memory_space<vmem>>, vector<1x16x16xf32>
    tpu.vector_store %arg19[%c0_65, %c0_66, %c0_67], %134 {strides = array<i32>} : memref<1x16x16xf32, #tpu.memory_space<vmem>>, vector<1x16x16xf32>,
    return
  }
  func.func @transform_0(%arg0: i32) -> (i32, i32, i32) {
    %c0_i32 = arith.constant 0 : i32
    %c0_i32_0 = arith.constant 0 : i32
    %c0_i32_1 = arith.constant 0 : i32
    return %arg0, %c0_i32, %c0_i32_0 : i32, i32, i32
  }
  func.func @transform_1(%arg0: i32) -> (i32, i32) {
    %c0_i32 = arith.constant 0 : i32
    %c0_i32_0 = arith.constant 0 : i32
    %c0_i32_1 = arith.constant 0 : i32
    return %c0_i32, %c0_i32_0 : i32, i32
  }
  func.func @transform_2(%arg0: i32) -> (i32, i32) {
    %c0_i32 = arith.constant 0 : i32
    %c0_i32_0 = arith.constant 0 : i32
    %c0_i32_1 = arith.constant 0 : i32
    return %c0_i32, %c0_i32_0 : i32, i32
  }
  func.func @transform_3(%arg0: i32) -> (i32, i32) {
    %c0_i32 = arith.constant 0 : i32
    %c0_i32_0 = arith.constant 0 : i32
    %c0_i32_1 = arith.constant 0 : i32
    return %c0_i32, %c0_i32_0 : i32, i32
  }
  func.func @transform_4(%arg0: i32) -> (i32, i32) {
    %c0_i32 = arith.constant 0 : i32
    %c0_i32_0 = arith.constant 0 : i32
    %c0_i32_1 = arith.constant 0 : i32
    return %c0_i32, %c0_i32_0 : i32, i32
  }
  func.func @transform_5(%arg0: i32) -> (i32, i32) {
    %c0_i32 = arith.constant 0 : i32
    %c0_i32_0 = arith.constant 0 : i32
    %c0_i32_1 = arith.constant 0 : i32
    return %c0_i32, %c0_i32_0 : i32, i32
  }
  func.func @transform_6(%arg0: i32) -> (i32, i32) {
    %c0_i32 = arith.constant 0 : i32
    %c0_i32_0 = arith.constant 0 : i32
    %c0_i32_1 = arith.constant 0 : i32
    return %c0_i32, %c0_i32_0 : i32, i32
  }
  func.func @transform_7(%arg0: i32) -> (i32, i32) {
    %c0_i32 = arith.constant 0 : i32
    %c0_i32_0 = arith.constant 0 : i32
    %c0_i32_1 = arith.constant 0 : i32
    return %c0_i32, %c0_i32_0 : i32, i32
  }
  func.func @transform_8(%arg0: i32) -> (i32, i32) {
    %c0_i32 = arith.constant 0 : i32
    %c0_i32_0 = arith.constant 0 : i32
    %c0_i32_1 = arith.constant 0 : i32
    return %c0_i32, %c0_i32_0 : i32, i32
  }
  func.func @transform_9(%arg0: i32) -> (i32, i32) {
    %c0_i32 = arith.constant 0 : i32
    %c0_i32_0 = arith.constant 0 : i32
    %c0_i32_1 = arith.constant 0 : i32
    return %c0_i32, %c0_i32_0 : i32, i32
  }
  func.func @transform_10(%arg0: i32) -> (i32, i32) {
    %c0_i32 = arith.constant 0 : i32
    %c0_i32_0 = arith.constant 0 : i32
    %c0_i32_1 = arith.constant 0 : i32
    return %c0_i32, %c0_i32_0 : i32, i32
  }
  func.func @transform_11(%arg0: i32) -> (i32, i32) {
    %c0_i32 = arith.constant 0 : i32
    %c0_i32_0 = arith.constant 0 : i32
    %c0_i32_1 = arith.constant 0 : i32
    return %c0_i32, %c0_i32_0 : i32, i32
  }
  func.func @transform_12(%arg0: i32) -> (i32, i32) {
    %c0_i32 = arith.constant 0 : i32
    %c0_i32_0 = arith.constant 0 : i32
    %c0_i32_1 = arith.constant 0 : i32
    return %c0_i32, %c0_i32_0 : i32, i32
  }
  func.func @transform_13(%arg0: i32) -> (i32, i32) {
    %c0_i32 = arith.constant 0 : i32
    %c0_i32_0 = arith.constant 0 : i32
    %c0_i32_1 = arith.constant 0 : i32
    return %c0_i32, %c0_i32_0 : i32, i32
  }
  func.func @transform_14(%arg0: i32) -> (i32, i32) {
    %c0_i32 = arith.constant 0 : i32
    %c0_i32_0 = arith.constant 0 : i32
    %c0_i32_1 = arith.constant 0 : i32
    return %c0_i32, %c0_i32_0 : i32, i32
  }
  func.func @transform_15(%arg0: i32) -> (i32, i32) {
    %c0_i32 = arith.constant 0 : i32
    %c0_i32_0 = arith.constant 0 : i32
    %c0_i32_1 = arith.constant 0 : i32
    return %c0_i32, %c0_i32_0 : i32, i32
  }
  func.func @transform_16(%arg0: i32) -> (i32, i32) {
    %c0_i32 = arith.constant 0 : i32
    %c0_i32_0 = arith.constant 0 : i32
    %c0_i32_1 = arith.constant 0 : i32
    return %c0_i32, %c0_i32_0 : i32, i32
  }
  func.func @transform_17(%arg0: i32) -> (i32, i32) {
    %c0_i32 = arith.constant 0 : i32
    %c0_i32_0 = arith.constant 0 : i32
    %c0_i32_1 = arith.constant 0 : i32
    return %c0_i32, %c0_i32_0 : i32, i32
  }
  func.func @transform_18(%arg0: i32) -> (i32, i32, i32) {
    %c0_i32 = arith.constant 0 : i32
    %c0_i32_0 = arith.constant 0 : i32
    %c0_i32_1 = arith.constant 0 : i32
    return %arg0, %c0_i32, %c0_i32_0 : i32, i32, i32
  }
}

module attributes {stable_mosaic.version = 11 : i64} {
  func.func @_crossview_kernel(%arg0: i32, %arg1: memref<1x32x16xf32, #tpu.memory_space<vmem>>, %arg2: memref<1x16xf32, #tpu.memory_space<vmem>>, %arg3: memref<1x16xf32, #tpu.memory_space<vmem>>, %arg4: memref<16x48xf32, #tpu.memory_space<vmem>>, %arg5: memref<1x48xf32, #tpu.memory_space<vmem>>, %arg6: memref<16x16xf32, #tpu.memory_space<vmem>>, %arg7: memref<1x16xf32, #tpu.memory_space<vmem>>, %arg8: memref<1x16xf32, #tpu.memory_space<vmem>>, %arg9: memref<1x16xf32, #tpu.memory_space<vmem>>, %arg10: memref<16x64xf32, #tpu.memory_space<vmem>>, %arg11: memref<1x64xf32, #tpu.memory_space<vmem>>, %arg12: memref<64x16xf32, #tpu.memory_space<vmem>>, %arg13: memref<1x16xf32, #tpu.memory_space<vmem>>, %arg14: memref<1x32x16xf32, #tpu.memory_space<vmem>>) attributes {dimension_semantics = [#tpu.dimension_semantics<parallel>], iteration_bounds = array<i64: 2>, scalar_prefetch = 0 : i64, scratch_operands = 0 : i64, tpu.core_type = #tpu.core_type<tc>, window_params = [{transform_indices = @transform_0, window_bounds = array<i64: 1, 32, 16>}, {pipeline_mode = #tpu.pipeline_mode<synchronous>, transform_indices = @transform_1, window_bounds = array<i64: 1, 16>}, {pipeline_mode = #tpu.pipeline_mode<synchronous>, transform_indices = @transform_2, window_bounds = array<i64: 1, 16>}, {pipeline_mode = #tpu.pipeline_mode<synchronous>, transform_indices = @transform_3, window_bounds = array<i64: 16, 48>}, {pipeline_mode = #tpu.pipeline_mode<synchronous>, transform_indices = @transform_4, window_bounds = array<i64: 1, 48>}, {pipeline_mode = #tpu.pipeline_mode<synchronous>, transform_indices = @transform_5, window_bounds = array<i64: 16, 16>}, {pipeline_mode = #tpu.pipeline_mode<synchronous>, transform_indices = @transform_6, window_bounds = array<i64: 1, 16>}, {pipeline_mode = #tpu.pipeline_mode<synchronous>, transform_indices = @transform_7, window_bounds = array<i64: 1, 16>}, {pipeline_mode = #tpu.pipeline_mode<synchronous>, transform_indices = @transform_8, window_bounds = array<i64: 1, 16>}, {pipeline_mode = #tpu.pipeline_mode<synchronous>, transform_indices = @transform_9, window_bounds = array<i64: 16, 64>}, {pipeline_mode = #tpu.pipeline_mode<synchronous>, transform_indices = @transform_10, window_bounds = array<i64: 1, 64>}, {pipeline_mode = #tpu.pipeline_mode<synchronous>, transform_indices = @transform_11, window_bounds = array<i64: 64, 16>}, {pipeline_mode = #tpu.pipeline_mode<synchronous>, transform_indices = @transform_12, window_bounds = array<i64: 1, 16>}, {transform_indices = @transform_13, window_bounds = array<i64: 1, 32, 16>}]} {
    %c0 = arith.constant 0 : index
    %c0_0 = arith.constant 0 : index
    %c0_1 = arith.constant 0 : index
    %0 = vector.load %arg1[%c0, %c0_0, %c0_1] : memref<1x32x16xf32, #tpu.memory_space<vmem>>, vector<1x32x16xf32>
    %1 = vector.shape_cast %0 : vector<1x32x16xf32> to vector<32x16xf32>
    %c0_2 = arith.constant 0 : index
    %c0_3 = arith.constant 0 : index
    %2 = vector.load %arg2[%c0_2, %c0_3] : memref<1x16xf32, #tpu.memory_space<vmem>>, vector<1x16xf32>
    %c0_4 = arith.constant 0 : index
    %c0_5 = arith.constant 0 : index
    %3 = vector.load %arg3[%c0_4, %c0_5] : memref<1x16xf32, #tpu.memory_space<vmem>>, vector<1x16xf32>
    %c0_6 = arith.constant 0 : index
    %c0_7 = arith.constant 0 : index
    %4 = vector.load %arg4[%c0_6, %c0_7] : memref<16x48xf32, #tpu.memory_space<vmem>>, vector<16x48xf32>
    %c0_8 = arith.constant 0 : index
    %c0_9 = arith.constant 0 : index
    %5 = vector.load %arg5[%c0_8, %c0_9] : memref<1x48xf32, #tpu.memory_space<vmem>>, vector<1x48xf32>
    %c0_10 = arith.constant 0 : index
    %c0_11 = arith.constant 0 : index
    %6 = vector.load %arg6[%c0_10, %c0_11] : memref<16x16xf32, #tpu.memory_space<vmem>>, vector<16x16xf32>
    %c0_12 = arith.constant 0 : index
    %c0_13 = arith.constant 0 : index
    %7 = vector.load %arg7[%c0_12, %c0_13] : memref<1x16xf32, #tpu.memory_space<vmem>>, vector<1x16xf32>
    %c0_14 = arith.constant 0 : index
    %c0_15 = arith.constant 0 : index
    %8 = vector.load %arg8[%c0_14, %c0_15] : memref<1x16xf32, #tpu.memory_space<vmem>>, vector<1x16xf32>
    %c0_16 = arith.constant 0 : index
    %c0_17 = arith.constant 0 : index
    %9 = vector.load %arg9[%c0_16, %c0_17] : memref<1x16xf32, #tpu.memory_space<vmem>>, vector<1x16xf32>
    %c0_18 = arith.constant 0 : index
    %c0_19 = arith.constant 0 : index
    %10 = vector.load %arg10[%c0_18, %c0_19] : memref<16x64xf32, #tpu.memory_space<vmem>>, vector<16x64xf32>
    %c0_20 = arith.constant 0 : index
    %c0_21 = arith.constant 0 : index
    %11 = vector.load %arg11[%c0_20, %c0_21] : memref<1x64xf32, #tpu.memory_space<vmem>>, vector<1x64xf32>
    %c0_22 = arith.constant 0 : index
    %c0_23 = arith.constant 0 : index
    %12 = vector.load %arg12[%c0_22, %c0_23] : memref<64x16xf32, #tpu.memory_space<vmem>>, vector<64x16xf32>
    %c0_24 = arith.constant 0 : index
    %c0_25 = arith.constant 0 : index
    %13 = vector.load %arg13[%c0_24, %c0_25] : memref<1x16xf32, #tpu.memory_space<vmem>>, vector<1x16xf32>
    %cst = arith.constant dense<0.000000e+00> : vector<32xf32>
    %14 = vector.multi_reduction <add>, %1, %cst [1] : vector<32x16xf32> to vector<32xf32>
    %15 = vector.shape_cast %14 : vector<32xf32> to vector<32x1xf32>
    %cst_26 = arith.constant 1.600000e+01 : f32
    %16 = vector.broadcast %cst_26 : f32 to vector<32x1xf32>
    %17 = arith.divf %15, %16 : vector<32x1xf32>
    %18 = vector.broadcast %17 : vector<32x1xf32> to vector<32x16xf32>
    %19 = arith.subf %1, %18 : vector<32x16xf32>
    %20 = arith.mulf %19, %19 : vector<32x16xf32>
    %cst_27 = arith.constant dense<0.000000e+00> : vector<32xf32>
    %21 = vector.multi_reduction <add>, %20, %cst_27 [1] : vector<32x16xf32> to vector<32xf32>
    %22 = vector.shape_cast %21 : vector<32xf32> to vector<32x1xf32>
    %cst_28 = arith.constant 1.600000e+01 : f32
    %23 = vector.broadcast %cst_28 : f32 to vector<32x1xf32>
    %24 = arith.divf %22, %23 : vector<32x1xf32>
    %25 = vector.broadcast %17 : vector<32x1xf32> to vector<32x16xf32>
    %26 = arith.subf %1, %25 : vector<32x16xf32>
    %cst_29 = arith.constant 9.99999974E-6 : f32
    %27 = vector.broadcast %cst_29 : f32 to vector<32x1xf32>
    %28 = arith.addf %24, %27 : vector<32x1xf32>
    %29 = math.rsqrt %28 : vector<32x1xf32>
    %30 = vector.broadcast %29 : vector<32x1xf32> to vector<32x16xf32>
    %31 = arith.mulf %26, %30 : vector<32x16xf32>
    %32 = vector.broadcast %2 : vector<1x16xf32> to vector<32x16xf32>
    %33 = arith.mulf %31, %32 : vector<32x16xf32>
    %34 = vector.broadcast %3 : vector<1x16xf32> to vector<32x16xf32>
    %35 = arith.addf %33, %34 : vector<32x16xf32>
    %cst_30 = arith.constant dense<0.000000e+00> : vector<32x48xf32>
    %36 = tpu.matmul %35, %4, %cst_30 {dimension_numbers = #tpu.dot_dimension_numbers<[1], [0], [0], [1], [0, 0, 1, 1], [], []>} : vector<32x16xf32>, vector<16x48xf32>, vector<32x48xf32> -> vector<32x48xf32>
    %37 = vector.broadcast %5 : vector<1x48xf32> to vector<32x48xf32>
    %38 = arith.addf %36, %37 : vector<32x48xf32>
    %39 = vector.extract_strided_slice %38 {offsets = [0, 0], sizes = [32, 8], strides = [1, 1]} : vector<32x48xf32> to vector<32x8xf32>
    %40 = vector.extract_strided_slice %38 {offsets = [0, 16], sizes = [32, 8], strides = [1, 1]} : vector<32x48xf32> to vector<32x8xf32>
    %41 = vector.extract_strided_slice %38 {offsets = [0, 32], sizes = [32, 8], strides = [1, 1]} : vector<32x48xf32> to vector<32x8xf32>
    %42 = tpu.transpose %40, [1, 0] : vector<32x8xf32> -> vector<8x32xf32>
    %cst_31 = arith.constant dense<0.000000e+00> : vector<32x32xf32>
    %43 = tpu.matmul %39, %42, %cst_31 {dimension_numbers = #tpu.dot_dimension_numbers<[1], [0], [0], [1], [0, 0, 1, 1], [], []>} : vector<32x8xf32>, vector<8x32xf32>, vector<32x32xf32> -> vector<32x32xf32>
    %cst_32 = arith.constant 0.353553385 : f32
    %44 = vector.broadcast %cst_32 : f32 to vector<32x32xf32>
    %45 = arith.mulf %43, %44 : vector<32x32xf32>
    %cst_33 = arith.constant dense<0xFF800000> : vector<32xf32>
    %46 = vector.multi_reduction <maximumf>, %45, %cst_33 [1] : vector<32x32xf32> to vector<32xf32>
    %47 = vector.shape_cast %46 : vector<32xf32> to vector<32x1xf32>
    %48 = vector.broadcast %47 : vector<32x1xf32> to vector<32x32xf32>
    %49 = arith.subf %45, %48 : vector<32x32xf32>
    %50 = math.exp %49 : vector<32x32xf32>
    %cst_34 = arith.constant dense<0.000000e+00> : vector<32xf32>
    %51 = vector.multi_reduction <add>, %50, %cst_34 [1] : vector<32x32xf32> to vector<32xf32>
    %52 = vector.shape_cast %51 : vector<32xf32> to vector<32x1xf32>
    %53 = tpu.reciprocal %52 {approx = true} : vector<32x1xf32> -> vector<32x1xf32>
    %54 = vector.broadcast %53 : vector<32x1xf32> to vector<32x32xf32>
    %55 = arith.mulf %50, %54 : vector<32x32xf32>
    %cst_35 = arith.constant dense<0.000000e+00> : vector<32x8xf32>
    %56 = tpu.matmul %55, %41, %cst_35 {dimension_numbers = #tpu.dot_dimension_numbers<[1], [0], [0], [1], [0, 0, 1, 1], [], []>} : vector<32x32xf32>, vector<32x8xf32>, vector<32x8xf32> -> vector<32x8xf32>
    %57 = vector.extract_strided_slice %38 {offsets = [0, 8], sizes = [32, 8], strides = [1, 1]} : vector<32x48xf32> to vector<32x8xf32>
    %58 = vector.extract_strided_slice %38 {offsets = [0, 24], sizes = [32, 8], strides = [1, 1]} : vector<32x48xf32> to vector<32x8xf32>
    %59 = vector.extract_strided_slice %38 {offsets = [0, 40], sizes = [32, 8], strides = [1, 1]} : vector<32x48xf32> to vector<32x8xf32>
    %60 = tpu.transpose %58, [1, 0] : vector<32x8xf32> -> vector<8x32xf32>
    %cst_36 = arith.constant dense<0.000000e+00> : vector<32x32xf32>
    %61 = tpu.matmul %57, %60, %cst_36 {dimension_numbers = #tpu.dot_dimension_numbers<[1], [0], [0], [1], [0, 0, 1, 1], [], []>} : vector<32x8xf32>, vector<8x32xf32>, vector<32x32xf32> -> vector<32x32xf32>
    %cst_37 = arith.constant 0.353553385 : f32
    %62 = vector.broadcast %cst_37 : f32 to vector<32x32xf32>
    %63 = arith.mulf %61, %62 : vector<32x32xf32>
    %cst_38 = arith.constant dense<0xFF800000> : vector<32xf32>
    %64 = vector.multi_reduction <maximumf>, %63, %cst_38 [1] : vector<32x32xf32> to vector<32xf32>
    %65 = vector.shape_cast %64 : vector<32xf32> to vector<32x1xf32>
    %66 = vector.broadcast %65 : vector<32x1xf32> to vector<32x32xf32>
    %67 = arith.subf %63, %66 : vector<32x32xf32>
    %68 = math.exp %67 : vector<32x32xf32>
    %cst_39 = arith.constant dense<0.000000e+00> : vector<32xf32>
    %69 = vector.multi_reduction <add>, %68, %cst_39 [1] : vector<32x32xf32> to vector<32xf32>
    %70 = vector.shape_cast %69 : vector<32xf32> to vector<32x1xf32>
    %71 = tpu.reciprocal %70 {approx = true} : vector<32x1xf32> -> vector<32x1xf32>
    %72 = vector.broadcast %71 : vector<32x1xf32> to vector<32x32xf32>
    %73 = arith.mulf %68, %72 : vector<32x32xf32>
    %cst_40 = arith.constant dense<0.000000e+00> : vector<32x8xf32>
    %74 = tpu.matmul %73, %59, %cst_40 {dimension_numbers = #tpu.dot_dimension_numbers<[1], [0], [0], [1], [0, 0, 1, 1], [], []>} : vector<32x32xf32>, vector<32x8xf32>, vector<32x8xf32> -> vector<32x8xf32>
    %75 = tpu.concatenate %56, %74 in 1 : vector<32x8xf32>, vector<32x8xf32> -> vector<32x16xf32>
    %cst_41 = arith.constant dense<0.000000e+00> : vector<32x16xf32>
    %76 = tpu.matmul %75, %6, %cst_41 {dimension_numbers = #tpu.dot_dimension_numbers<[1], [0], [0], [1], [0, 0, 1, 1], [], []>} : vector<32x16xf32>, vector<16x16xf32>, vector<32x16xf32> -> vector<32x16xf32>
    %77 = vector.broadcast %7 : vector<1x16xf32> to vector<32x16xf32>
    %78 = arith.addf %76, %77 : vector<32x16xf32>
    %79 = arith.addf %1, %78 : vector<32x16xf32>
    %cst_42 = arith.constant dense<0.000000e+00> : vector<32xf32>
    %80 = vector.multi_reduction <add>, %79, %cst_42 [1] : vector<32x16xf32> to vector<32xf32>
    %81 = vector.shape_cast %80 : vector<32xf32> to vector<32x1xf32>
    %cst_43 = arith.constant 1.600000e+01 : f32
    %82 = vector.broadcast %cst_43 : f32 to vector<32x1xf32>
    %83 = arith.divf %81, %82 : vector<32x1xf32>
    %84 = vector.broadcast %83 : vector<32x1xf32> to vector<32x16xf32>
    %85 = arith.subf %79, %84 : vector<32x16xf32>
    %86 = arith.mulf %85, %85 : vector<32x16xf32>
    %cst_44 = arith.constant dense<0.000000e+00> : vector<32xf32>
    %87 = vector.multi_reduction <add>, %86, %cst_44 [1] : vector<32x16xf32> to vector<32xf32>
    %88 = vector.shape_cast %87 : vector<32xf32> to vector<32x1xf32>
    %cst_45 = arith.constant 1.600000e+01 : f32
    %89 = vector.broadcast %cst_45 : f32 to vector<32x1xf32>
    %90 = arith.divf %88, %89 : vector<32x1xf32>
    %91 = vector.broadcast %83 : vector<32x1xf32> to vector<32x16xf32>
    %92 = arith.subf %79, %91 : vector<32x16xf32>
    %cst_46 = arith.constant 9.99999974E-6 : f32
    %93 = vector.broadcast %cst_46 : f32 to vector<32x1xf32>
    %94 = arith.addf %90, %93 : vector<32x1xf32>
    %95 = math.rsqrt %94 : vector<32x1xf32>
    %96 = vector.broadcast %95 : vector<32x1xf32> to vector<32x16xf32>
    %97 = arith.mulf %92, %96 : vector<32x16xf32>
    %98 = vector.broadcast %8 : vector<1x16xf32> to vector<32x16xf32>
    %99 = arith.mulf %97, %98 : vector<32x16xf32>
    %100 = vector.broadcast %9 : vector<1x16xf32> to vector<32x16xf32>
    %101 = arith.addf %99, %100 : vector<32x16xf32>
    %cst_47 = arith.constant dense<0.000000e+00> : vector<32x64xf32>
    %102 = tpu.matmul %101, %10, %cst_47 {dimension_numbers = #tpu.dot_dimension_numbers<[1], [0], [0], [1], [0, 0, 1, 1], [], []>} : vector<32x16xf32>, vector<16x64xf32>, vector<32x64xf32> -> vector<32x64xf32>
    %103 = vector.broadcast %11 : vector<1x64xf32> to vector<32x64xf32>
    %104 = arith.addf %102, %103 : vector<32x64xf32>
    %105 = arith.mulf %104, %104 : vector<32x64xf32>
    %106 = arith.mulf %104, %105 : vector<32x64xf32>
    %cst_48 = arith.constant 4.471500e-02 : f32
    %107 = vector.broadcast %cst_48 : f32 to vector<32x64xf32>
    %108 = arith.mulf %107, %106 : vector<32x64xf32>
    %109 = arith.addf %104, %108 : vector<32x64xf32>
    %cst_49 = arith.constant 0.797884583 : f32
    %110 = vector.broadcast %cst_49 : f32 to vector<32x64xf32>
    %111 = arith.mulf %110, %109 : vector<32x64xf32>
    %112 = math.tanh %111 : vector<32x64xf32>
    %cst_50 = arith.constant 1.000000e+00 : f32
    %113 = vector.broadcast %cst_50 : f32 to vector<32x64xf32>
    %114 = arith.addf %113, %112 : vector<32x64xf32>
    %cst_51 = arith.constant 5.000000e-01 : f32
    %115 = vector.broadcast %cst_51 : f32 to vector<32x64xf32>
    %116 = arith.mulf %115, %114 : vector<32x64xf32>
    %117 = arith.mulf %104, %116 : vector<32x64xf32>
    %cst_52 = arith.constant dense<0.000000e+00> : vector<32x16xf32>
    %118 = tpu.matmul %117, %12, %cst_52 {dimension_numbers = #tpu.dot_dimension_numbers<[1], [0], [0], [1], [0, 0, 1, 1], [], []>} : vector<32x64xf32>, vector<64x16xf32>, vector<32x16xf32> -> vector<32x16xf32>
    %119 = vector.broadcast %13 : vector<1x16xf32> to vector<32x16xf32>
    %120 = arith.addf %118, %119 : vector<32x16xf32>
    %121 = arith.addf %79, %120 : vector<32x16xf32>
    %122 = vector.shape_cast %121 : vector<32x16xf32> to vector<1x32x16xf32>
    %c0_53 = arith.constant 0 : index
    %c0_54 = arith.constant 0 : index
    %c0_55 = arith.constant 0 : index
    %123 = vector.load %arg14[%c0_53, %c0_54, %c0_55] : memref<1x32x16xf32, #tpu.memory_space<vmem>>, vector<1x32x16xf32>
    tpu.vector_store %arg14[%c0_53, %c0_54, %c0_55], %122 {strides = array<i32>} : memref<1x32x16xf32, #tpu.memory_space<vmem>>, vector<1x32x16xf32>,
    return
  }
  func.func @transform_0(%arg0: i32) -> (i32, i32, i32) {
    %c0_i32 = arith.constant 0 : i32
    %c0_i32_0 = arith.constant 0 : i32
    %c0_i32_1 = arith.constant 0 : i32
    return %arg0, %c0_i32, %c0_i32_0 : i32, i32, i32
  }
  func.func @transform_1(%arg0: i32) -> (i32, i32) {
    %c0_i32 = arith.constant 0 : i32
    %c0_i32_0 = arith.constant 0 : i32
    %c0_i32_1 = arith.constant 0 : i32
    return %c0_i32, %c0_i32_0 : i32, i32
  }
  func.func @transform_2(%arg0: i32) -> (i32, i32) {
    %c0_i32 = arith.constant 0 : i32
    %c0_i32_0 = arith.constant 0 : i32
    %c0_i32_1 = arith.constant 0 : i32
    return %c0_i32, %c0_i32_0 : i32, i32
  }
  func.func @transform_3(%arg0: i32) -> (i32, i32) {
    %c0_i32 = arith.constant 0 : i32
    %c0_i32_0 = arith.constant 0 : i32
    %c0_i32_1 = arith.constant 0 : i32
    return %c0_i32, %c0_i32_0 : i32, i32
  }
  func.func @transform_4(%arg0: i32) -> (i32, i32) {
    %c0_i32 = arith.constant 0 : i32
    %c0_i32_0 = arith.constant 0 : i32
    %c0_i32_1 = arith.constant 0 : i32
    return %c0_i32, %c0_i32_0 : i32, i32
  }
  func.func @transform_5(%arg0: i32) -> (i32, i32) {
    %c0_i32 = arith.constant 0 : i32
    %c0_i32_0 = arith.constant 0 : i32
    %c0_i32_1 = arith.constant 0 : i32
    return %c0_i32, %c0_i32_0 : i32, i32
  }
  func.func @transform_6(%arg0: i32) -> (i32, i32) {
    %c0_i32 = arith.constant 0 : i32
    %c0_i32_0 = arith.constant 0 : i32
    %c0_i32_1 = arith.constant 0 : i32
    return %c0_i32, %c0_i32_0 : i32, i32
  }
  func.func @transform_7(%arg0: i32) -> (i32, i32) {
    %c0_i32 = arith.constant 0 : i32
    %c0_i32_0 = arith.constant 0 : i32
    %c0_i32_1 = arith.constant 0 : i32
    return %c0_i32, %c0_i32_0 : i32, i32
  }
  func.func @transform_8(%arg0: i32) -> (i32, i32) {
    %c0_i32 = arith.constant 0 : i32
    %c0_i32_0 = arith.constant 0 : i32
    %c0_i32_1 = arith.constant 0 : i32
    return %c0_i32, %c0_i32_0 : i32, i32
  }
  func.func @transform_9(%arg0: i32) -> (i32, i32) {
    %c0_i32 = arith.constant 0 : i32
    %c0_i32_0 = arith.constant 0 : i32
    %c0_i32_1 = arith.constant 0 : i32
    return %c0_i32, %c0_i32_0 : i32, i32
  }
  func.func @transform_10(%arg0: i32) -> (i32, i32) {
    %c0_i32 = arith.constant 0 : i32
    %c0_i32_0 = arith.constant 0 : i32
    %c0_i32_1 = arith.constant 0 : i32
    return %c0_i32, %c0_i32_0 : i32, i32
  }
  func.func @transform_11(%arg0: i32) -> (i32, i32) {
    %c0_i32 = arith.constant 0 : i32
    %c0_i32_0 = arith.constant 0 : i32
    %c0_i32_1 = arith.constant 0 : i32
    return %c0_i32, %c0_i32_0 : i32, i32
  }
  func.func @transform_12(%arg0: i32) -> (i32, i32) {
    %c0_i32 = arith.constant 0 : i32
    %c0_i32_0 = arith.constant 0 : i32
    %c0_i32_1 = arith.constant 0 : i32
    return %c0_i32, %c0_i32_0 : i32, i32
  }
  func.func @transform_13(%arg0: i32) -> (i32, i32, i32) {
    %c0_i32 = arith.constant 0 : i32
    %c0_i32_0 = arith.constant 0 : i32
    %c0_i32_1 = arith.constant 0 : i32
    return %arg0, %c0_i32, %c0_i32_0 : i32, i32, i32
  }
}

</mosaic_0001>

<llo_original>
// kernel: leap_encoder_forward.3
$region0: #{leap_encoder_forward.3}
  #allocation0 [shape = 'u32[]', space=smem, size = 0x4, offset = 0x4, fixed_abs, tag = 'smem constant byte address 0x4 - core index']
  #allocation1 [shape = 'u32[144,128]{1,0:T(1,128)}', space=vmem, size = 0x12000, scoped, tag = 'internal scratch']
  %s0 = inlined_call_operand.vmem [shape: f32[2,32,16], index: 0, kind: input, shape index: {}]
  %s1 = inlined_call_operand.vmem [shape: f32[1,16], index: 1, kind: input, shape index: {}]
  %s2 = inlined_call_operand.vmem [shape: f32[1,16], index: 2, kind: input, shape index: {}]
  %s3 = inlined_call_operand.vmem [shape: f32[16,48], index: 3, kind: input, shape index: {}]
  %s4 = inlined_call_operand.vmem [shape: f32[1,48], index: 4, kind: input, shape index: {}]
  %s5 = inlined_call_operand.vmem [shape: f32[16,16], index: 5, kind: input, shape index: {}]
  %s6 = inlined_call_operand.vmem [shape: f32[1,16], index: 6, kind: input, shape index: {}]
  %s7 = inlined_call_operand.vmem [shape: f32[1,16], index: 7, kind: input, shape index: {}]
  %s8 = inlined_call_operand.vmem [shape: f32[1,16], index: 8, kind: input, shape index: {}]
  %s9 = inlined_call_operand.vmem [shape: f32[16,64], index: 9, kind: input, shape index: {}]
  %s10 = inlined_call_operand.vmem [shape: f32[1,64], index: 10, kind: input, shape index: {}]
  %s11 = inlined_call_operand.vmem [shape: f32[64,16], index: 11, kind: input, shape index: {}]
  %s12 = inlined_call_operand.vmem [shape: f32[1,16], index: 12, kind: input, shape index: {}]
  %s13 = inlined_call_operand.hbm [shape: f32[2,32,16], index: 13, kind: output, shape index: {}]
  %s14 = sld [smem:[#allocation0]]
  $region85: #{leap_encoder_forward.3} parent=0
    _
  %s16 = ssub.s32 1, %s14
  %s17 = scalar_select 0, %s16, %s14
  $region1: #{leap_encoder_forward.3} parent=0
    #allocation2 [shape = 'u8[32768]{0}', space=vmem, size = 0x8000, scoped, tag = 'output window, operand 0']
    #allocation3 [shape = 's32[2]{0}', space=sflag, size = 0x8, scoped, tag = 'scoped memory for leap_encoder_forward.3']
    %18 = vsyncpa [#allocation3], 0
    %s19 = scalar_lea.sflag [#allocation3], 1
    %20 = vsyncpa %s19, 0
    loop: start=0, step=1, limit=4
    $region2: #{leap_encoder_forward.3} parent=1 // loop_pre_header
      _
    $region3: #{leap_encoder_forward.3} parent=1 // loop_header
      %s22 = sphi 0, %s26
      %p23 = scmp.ge.s32.totalorder %s22, 4
      %s32 = sphi 0, %s34
      %s35 = sphi 0, %s32
      %s36 = sphi 0, %s35
      %s52 = sphi 0, %s36
      %s56 = sphi 0, %s56
      %s58 = sphi 0, %s56
      %s59 = sphi 0, %s58
      %s73 = sphi 0, %s59
      %s77 = sphi 0, %s77
      %s79 = sphi 0, %s77
      %s80 = sphi 0, %s79
      %s94 = sphi 0, %s80
      %s98 = sphi 0, %s98
      %s100 = sphi 0, %s98
      %s101 = sphi 0, %s100
      %s115 = sphi 0, %s101
      %s119 = sphi 0, %s119
      %s121 = sphi 0, %s119
      %s122 = sphi 0, %s121
      %s136 = sphi 0, %s122
      %s140 = sphi 0, %s140
      %s142 = sphi 0, %s140
      %s143 = sphi 0, %s142
      %s157 = sphi 0, %s143
      %s161 = sphi 0, %s161
      %s163 = sphi 0, %s161
      %s164 = sphi 0, %s163
      %s178 = sphi 0, %s164
      %s182 = sphi 0, %s182
      %s184 = sphi 0, %s182
      %s185 = sphi 0, %s184
      %s199 = sphi 0, %s185
      %s203 = sphi 0, %s203
      %s205 = sphi 0, %s203
      %s206 = sphi 0, %s205
      %s220 = sphi 0, %s206
      %s224 = sphi 0, %s224
      %s226 = sphi 0, %s224
      %s227 = sphi 0, %s226
      %s241 = sphi 0, %s227
      %s245 = sphi 0, %s245
      %s247 = sphi 0, %s245
      %s248 = sphi 0, %s247
      %s262 = sphi 0, %s248
      %s266 = sphi 0, %s266
      %s268 = sphi 0, %s266
      %s269 = sphi 0, %s268
      %s283 = sphi 0, %s269
      %s287 = sphi 0, %s287
      %s289 = sphi 0, %s287
      %s290 = sphi 0, %s289
      %s304 = sphi 0, %s290
      %s310 = sphi 0, %s312
      %s313 = sphi 0, %s310
      %s314 = sphi 0, %s313
      %s330 = sphi 0, %s314
    $region4: #{leap_encoder_forward.3} parent=1 // loop_header_branch
      %25 = sbr.rel (%p23) target = $region8
    $region5: #{leap_encoder_forward.3} parent=1 // loop_body
      %s27 = ssub.s32 %s22, 1
      %s28 = ssub.s32 %s22, 2
      %s29 = sadd.s32 %s22, 1
      %s30 = ssub.s32 %s22, %s29
      %p31 = scmp.eq.s32.totalorder %s30, 0
      %s33 = sadd.s32 %s32, 1
      %s34 = scalar_select %p31, %s32, %s33
      %p37 = pneg %p31
      %p38 = scmp.eq.s32.totalorder %s22, 1
      %p39 = por %p37, %p38
      %p40 = scmp.ne.s32.totalorder %s32, %s35
      %p41 = scmp.eq.s32.totalorder %s22, 0
      %p42 = por %p40, %p41
      %p43 = scmp.ne.s32.totalorder %s32, %s35
      %p44 = scmp.eq.s32.totalorder %s27, 1
      %p45 = por %p43, %p44
      %p46 = scmp.ne.s32.totalorder %s35, %s36
      %p47 = scmp.eq.s32.totalorder %s27, 0
      %p48 = por %p46, %p47
      %p49 = scmp.ne.s32.totalorder %s35, %s36
      %p50 = scmp.eq.s32.totalorder %s28, 1
      %p51 = por %p49, %p50
      %p53 = scmp.ne.s32.totalorder %s36, %s52
      %p54 = scmp.eq.s32.totalorder %s28, 0
      %p55 = por %p53, %p54
      %s57 = sadd.s32 %s56, 1
      %p60 = scmp.eq.s32.totalorder %s22, 1
      %p61 = scmp.ne.s32.totalorder %s56, %s58
      %p62 = scmp.eq.s32.totalorder %s22, 0
      %p63 = por %p61, %p62
      %p64 = scmp.ne.s32.totalorder %s56, %s58
      %p65 = scmp.eq.s32.totalorder %s27, 1
      %p66 = por %p64, %p65
      %p67 = scmp.ne.s32.totalorder %s58, %s59
      %p68 = scmp.eq.s32.totalorder %s27, 0
      %p69 = por %p67, %p68
      %p70 = scmp.ne.s32.totalorder %s58, %s59
      %p71 = scmp.eq.s32.totalorder %s28, 1
      %p72 = por %p70, %p71
      %p74 = scmp.ne.s32.totalorder %s59, %s73
      %p75 = scmp.eq.s32.totalorder %s28, 0
      %p76 = por %p74, %p75
      %s78 = sadd.s32 %s77, 1
      %p81 = scmp.eq.s32.totalorder %s22, 1
      %p82 = scmp.ne.s32.totalorder %s77, %s79
      %p83 = scmp.eq.s32.totalorder %s22, 0
      %p84 = por %p82, %p83
      %p85 = scmp.ne.s32.totalorder %s77, %s79
      %p86 = scmp.eq.s32.totalorder %s27, 1
      %p87 = por %p85, %p86
      %p88 = scmp.ne.s32.totalorder %s79, %s80
      %p89 = scmp.eq.s32.totalorder %s27, 0
      %p90 = por %p88, %p89
      %p91 = scmp.ne.s32.totalorder %s79, %s80
      %p92 = scmp.eq.s32.totalorder %s28, 1
      %p93 = por %p91, %p92
      %p95 = scmp.ne.s32.totalorder %s80, %s94
      %p96 = scmp.eq.s32.totalorder %s28, 0
      %p97 = por %p95, %p96
      %s99 = sadd.s32 %s98, 1
      %p102 = scmp.eq.s32.totalorder %s22, 1
      %p103 = scmp.ne.s32.totalorder %s98, %s100
      %p104 = scmp.eq.s32.totalorder %s22, 0
      %p105 = por %p103, %p104
      %p106 = scmp.ne.s32.totalorder %s98, %s100
      %p107 = scmp.eq.s32.totalorder %s27, 1
      %p108 = por %p106, %p107
      %p109 = scmp.ne.s32.totalorder %s100, %s101
      %p110 = scmp.eq.s32.totalorder %s27, 0
      %p111 = por %p109, %p110
      %p112 = scmp.ne.s32.totalorder %s100, %s101
      %p113 = scmp.eq.s32.totalorder %s28, 1
      %p114 = por %p112, %p113
      %p116 = scmp.ne.s32.totalorder %s101, %s115
      %p117 = scmp.eq.s32.totalorder %s28, 0
      %p118 = por %p116, %p117
      %s120 = sadd.s32 %s119, 1
      %p123 = scmp.eq.s32.totalorder %s22, 1
      %p124 = scmp.ne.s32.totalorder %s119, %s121
      %p125 = scmp.eq.s32.totalorder %s22, 0
      %p126 = por %p124, %p125
      %p127 = scmp.ne.s32.totalorder %s119, %s121
      %p128 = scmp.eq.s32.totalorder %s27, 1
      %p129 = por %p127, %p128
      %p130 = scmp.ne.s32.totalorder %s121, %s122
      %p131 = scmp.eq.s32.totalorder %s27, 0
      %p132 = por %p130, %p131
      %p133 = scmp.ne.s32.totalorder %s121, %s122
      %p134 = scmp.eq.s32.totalorder %s28, 1
      %p135 = por %p133, %p134
      %p137 = scmp.ne.s32.totalorder %s122, %s136
      %p138 = scmp.eq.s32.totalorder %s28, 0
      %p139 = por %p137, %p138
      %s141 = sadd.s32 %s140, 1
      %p144 = scmp.eq.s32.totalorder %s22, 1
      %p145 = scmp.ne.s32.totalorder %s140, %s142
      %p146 = scmp.eq.s32.totalorder %s22, 0
      %p147 = por %p145, %p146
      %p148 = scmp.ne.s32.totalorder %s140, %s142
      %p149 = scmp.eq.s32.totalorder %s27, 1
      %p150 = por %p148, %p149
      %p151 = scmp.ne.s32.totalorder %s142, %s143
      %p152 = scmp.eq.s32.totalorder %s27, 0
      %p153 = por %p151, %p152
      %p154 = scmp.ne.s32.totalorder %s142, %s143
      %p155 = scmp.eq.s32.totalorder %s28, 1
      %p156 = por %p154, %p155
      %p158 = scmp.ne.s32.totalorder %s143, %s157
      %p159 = scmp.eq.s32.totalorder %s28, 0
      %p160 = por %p158, %p159
      %s162 = sadd.s32 %s161, 1
      %p165 = scmp.eq.s32.totalorder %s22, 1
      %p166 = scmp.ne.s32.totalorder %s161, %s163
      %p167 = scmp.eq.s32.totalorder %s22, 0
      %p168 = por %p166, %p167
      %p169 = scmp.ne.s32.totalorder %s161, %s163
      %p170 = scmp.eq.s32.totalorder %s27, 1
      %p171 = por %p169, %p170
      %p172 = scmp.ne.s32.totalorder %s163, %s164
      %p173 = scmp.eq.s32.totalorder %s27, 0
      %p174 = por %p172, %p173
      %p175 = scmp.ne.s32.totalorder %s163, %s164
      %p176 = scmp.eq.s32.totalorder %s28, 1
      %p177 = por %p175, %p176
      %p179 = scmp.ne.s32.totalorder %s164, %s178
      %p180 = scmp.eq.s32.totalorder %s28, 0
      %p181 = por %p179, %p180
      %s183 = sadd.s32 %s182, 1
      %p186 = scmp.eq.s32.totalorder %s22, 1
      %p187 = scmp.ne.s32.totalorder %s182, %s184
      %p188 = scmp.eq.s32.totalorder %s22, 0
      %p189 = por %p187, %p188
      %p190 = scmp.ne.s32.totalorder %s182, %s184
      %p191 = scmp.eq.s32.totalorder %s27, 1
      %p192 = por %p190, %p191
      %p193 = scmp.ne.s32.totalorder %s184, %s185
      %p194 = scmp.eq.s32.totalorder %s27, 0
      %p195 = por %p193, %p194
      %p196 = scmp.ne.s32.totalorder %s184, %s185
      %p197 = scmp.eq.s32.totalorder %s28, 1
      %p198 = por %p196, %p197
      %p200 = scmp.ne.s32.totalorder %s185, %s199
      %p201 = scmp.eq.s32.totalorder %s28, 0
      %p202 = por %p200, %p201
      %s204 = sadd.s32 %s203, 1
      %p207 = scmp.eq.s32.totalorder %s22, 1
      %p208 = scmp.ne.s32.totalorder %s203, %s205
      %p209 = scmp.eq.s32.totalorder %s22, 0
      %p210 = por %p208, %p209
      %p211 = scmp.ne.s32.totalorder %s203, %s205
      %p212 = scmp.eq.s32.totalorder %s27, 1
      %p213 = por %p211, %p212
      %p214 = scmp.ne.s32.totalorder %s205, %s206
      %p215 = scmp.eq.s32.totalorder %s27, 0
      %p216 = por %p214, %p215
      %p217 = scmp.ne.s32.totalorder %s205, %s206
      %p218 = scmp.eq.s32.totalorder %s28, 1
      %p219 = por %p217, %p218
      %p221 = scmp.ne.s32.totalorder %s206, %s220
      %p222 = scmp.eq.s32.totalorder %s28, 0
      %p223 = por %p221, %p222
      %s225 = sadd.s32 %s224, 1
      %p228 = scmp.eq.s32.totalorder %s22, 1
      %p229 = scmp.ne.s32.totalorder %s224, %s226
      %p230 = scmp.eq.s32.totalorder %s22, 0
      %p231 = por %p229, %p230
      %p232 = scmp.ne.s32.totalorder %s224, %s226
      %p233 = scmp.eq.s32.totalorder %s27, 1
      %p234 = por %p232, %p233
      %p235 = scmp.ne.s32.totalorder %s226, %s227
      %p236 = scmp.eq.s32.totalorder %s27, 0
      %p237 = por %p235, %p236
      %p238 = scmp.ne.s32.totalorder %s226, %s227
      %p239 = scmp.eq.s32.totalorder %s28, 1
      %p240 = por %p238, %p239
      %p242 = scmp.ne.s32.totalorder %s227, %s241
      %p243 = scmp.eq.s32.totalorder %s28, 0
      %p244 = por %p242, %p243
      %s246 = sadd.s32 %s245, 1
      %p249 = scmp.eq.s32.totalorder %s22, 1
      %p250 = scmp.ne.s32.totalorder %s245, %s247
      %p251 = scmp.eq.s32.totalorder %s22, 0
      %p252 = por %p250, %p251
      %p253 = scmp.ne.s32.totalorder %s245, %s247
      %p254 = scmp.eq.s32.totalorder %s27, 1
      %p255 = por %p253, %p254
      %p256 = scmp.ne.s32.totalorder %s247, %s248
      %p257 = scmp.eq.s32.totalorder %s27, 0
      %p258 = por %p256, %p257
      %p259 = scmp.ne.s32.totalorder %s247, %s248
      %p260 = scmp.eq.s32.totalorder %s28, 1
      %p261 = por %p259, %p260
      %p263 = scmp.ne.s32.totalorder %s248, %s262
      %p264 = scmp.eq.s32.totalorder %s28, 0
      %p265 = por %p263, %p264
      %s267 = sadd.s32 %s266, 1
      %p270 = scmp.eq.s32.totalorder %s22, 1
      %p271 = scmp.ne.s32.totalorder %s266, %s268
      %p272 = scmp.eq.s32.totalorder %s22, 0
      %p273 = por %p271, %p272
      %p274 = scmp.ne.s32.totalorder %s266, %s268
      %p275 = scmp.eq.s32.totalorder %s27, 1
      %p276 = por %p274, %p275
      %p277 = scmp.ne.s32.totalorder %s268, %s269
      %p278 = scmp.eq.s32.totalorder %s27, 0
      %p279 = por %p277, %p278
      %p280 = scmp.ne.s32.totalorder %s268, %s269
      %p281 = scmp.eq.s32.totalorder %s28, 1
      %p282 = por %p280, %p281
      %p284 = scmp.ne.s32.totalorder %s269, %s283
      %p285 = scmp.eq.s32.totalorder %s28, 0
      %p286 = por %p284, %p285
      %s288 = sadd.s32 %s287, 1
      %p291 = scmp.eq.s32.totalorder %s22, 1
      %p292 = scmp.ne.s32.totalorder %s287, %s289
      %p293 = scmp.eq.s32.totalorder %s22, 0
      %p294 = por %p292, %p293
      %p295 = scmp.ne.s32.totalorder %s287, %s289
      %p296 = scmp.eq.s32.totalorder %s27, 1
      %p297 = por %p295, %p296
      %p298 = scmp.ne.s32.totalorder %s289, %s290
      %p299 = scmp.eq.s32.totalorder %s27, 0
      %p300 = por %p298, %p299
      %p301 = scmp.ne.s32.totalorder %s289, %s290
      %p302 = scmp.eq.s32.totalorder %s28, 1
      %p303 = por %p301, %p302
      %p305 = scmp.ne.s32.totalorder %s290, %s304
      %p306 = scmp.eq.s32.totalorder %s28, 0
      %p307 = por %p305, %p306
      %s308 = ssub.s32 %s22, %s29
      %p309 = scmp.eq.s32.totalorder %s308, 0
      %s311 = sadd.s32 %s310, 1
      %s312 = scalar_select %p309, %s310, %s311
      %p315 = pneg %p309
      %p316 = scmp.eq.s32.totalorder %s22, 1
      %p317 = por %p315, %p316
      %p318 = scmp.ne.s32.totalorder %s310, %s313
      %p319 = scmp.eq.s32.totalorder %s22, 0
      %p320 = por %p318, %p319
      %p321 = scmp.ne.s32.totalorder %s310, %s313
      %p322 = scmp.eq.s32.totalorder %s27, 1
      %p323 = por %p321, %p322
      %p324 = scmp.ne.s32.totalorder %s313, %s314
      %p325 = scmp.eq.s32.totalorder %s27, 0
      %p326 = por %p324, %p325
      %p327 = scmp.ne.s32.totalorder %s313, %s314
      %p328 = scmp.eq.s32.totalorder %s28, 1
      %p329 = por %p327, %p328
      %p331 = scmp.ne.s32.totalorder %s314, %s330
      %p332 = scmp.eq.s32.totalorder %s28, 0
      %p333 = por %p331, %p332
      %p334 = scmp.le.s32.totalorder 1, %s22
      %p335 = scmp.lt.s32.totalorder %s22, 3
      %p336 = pnand %p334, %p335
      %p337 = pneg %p336
      // Predicated region
      $region9: #{leap_encoder_forward.3} parent=5 // pred_check
        _
      $region10: #{leap_encoder_forward.3} parent=5 // pred_check_branch
        %339 = sbr.rel (%p336) target = $region12
      $region11: #{leap_encoder_forward.3} parent=5 // pred_region
        %s340 = ssub.s32 %s22, 1
        // Predicated region
        $region13: #{leap_encoder_forward.3} parent=11 // pred_check
          %p341 = pneg %p69
        $region14: #{leap_encoder_forward.3} parent=11 // pred_check_branch
          %343 = sbr.rel (%p341) target = $region16
        $region15: #{leap_encoder_forward.3} parent=11 // pred_region
          _
        $region16: #{leap_encoder_forward.3} parent=11 // pred_fallthru
          _
        // Predicated region
        $region17: #{leap_encoder_forward.3} parent=11 // pred_check
          %p344 = pneg %p90
        $region18: #{leap_encoder_forward.3} parent=11 // pred_check_branch
          %346 = sbr.rel (%p344) target = $region20
        $region19: #{leap_encoder_forward.3} parent=11 // pred_region
          _
        $region20: #{leap_encoder_forward.3} parent=11 // pred_fallthru
          _
        // Predicated region
        $region21: #{leap_encoder_forward.3} parent=11 // pred_check
          %p347 = pneg %p111
        $region22: #{leap_encoder_forward.3} parent=11 // pred_check_branch
          %349 = sbr.rel (%p347) target = $region24
        $region23: #{leap_encoder_forward.3} parent=11 // pred_region
          _
        $region24: #{leap_encoder_forward.3} parent=11 // pred_fallthru
          _
        // Predicated region
        $region25: #{leap_encoder_forward.3} parent=11 // pred_check
          %p350 = pneg %p132
        $region26: #{leap_encoder_forward.3} parent=11 // pred_check_branch
          %352 = sbr.rel (%p350) target = $region28
        $region27: #{leap_encoder_forward.3} parent=11 // pred_region
          _
        $region28: #{leap_encoder_forward.3} parent=11 // pred_fallthru
          _
        // Predicated region
        $region29: #{leap_encoder_forward.3} parent=11 // pred_check
          %p353 = pneg %p153
        $region30: #{leap_encoder_forward.3} parent=11 // pred_check_branch
          %355 = sbr.rel (%p353) target = $region32
        $region31: #{leap_encoder_forward.3} parent=11 // pred_region
          _
        $region32: #{leap_encoder_forward.3} parent=11 // pred_fallthru
          _
        // Predicated region
        $region33: #{leap_encoder_forward.3} parent=11 // pred_check
          %p356 = pneg %p174
        $region34: #{leap_encoder_forward.3} parent=11 // pred_check_branch
          %358 = sbr.rel (%p356) target = $region36
        $region35: #{leap_encoder_forward.3} parent=11 // pred_region
          _
        $region36: #{leap_encoder_forward.3} parent=11 // pred_fallthru
          _
        // Predicated region
        $region37: #{leap_encoder_forward.3} parent=11 // pred_check
          %p359 = pneg %p195
        $region38: #{leap_encoder_forward.3} parent=11 // pred_check_branch
          %361 = sbr.rel (%p359) target = $region40
        $region39: #{leap_encoder_forward.3} parent=11 // pred_region
          _
        $region40: #{leap_encoder_forward.3} parent=11 // pred_fallthru
          _
        // Predicated region
        $region41: #{leap_encoder_forward.3} parent=11 // pred_check
          %p362 = pneg %p216
        $region42: #{leap_encoder_forward.3} parent=11 // pred_check_branch
          %364 = sbr.rel (%p362) target = $region44
        $region43: #{leap_encoder_forward.3} parent=11 // pred_region
          _
        $region44: #{leap_encoder_forward.3} parent=11 // pred_fallthru
          _
        // Predicated region
        $region45: #{leap_encoder_forward.3} parent=11 // pred_check
          %p365 = pneg %p237
        $region46: #{leap_encoder_forward.3} parent=11 // pred_check_branch
          %367 = sbr.rel (%p365) target = $region48
        $region47: #{leap_encoder_forward.3} parent=11 // pred_region
          _
        $region48: #{leap_encoder_forward.3} parent=11 // pred_fallthru
          _
        // Predicated region
        $region49: #{leap_encoder_forward.3} parent=11 // pred_check
          %p368 = pneg %p258
        $region50: #{leap_encoder_forward.3} parent=11 // pred_check_branch
          %370 = sbr.rel (%p368) target = $region52
        $region51: #{leap_encoder_forward.3} parent=11 // pred_region
          _
        $region52: #{leap_encoder_forward.3} parent=11 // pred_fallthru
          _
        // Predicated region
        $region53: #{leap_encoder_forward.3} parent=11 // pred_check
          %p371 = pneg %p279
        $region54: #{leap_encoder_forward.3} parent=11 // pred_check_branch
          %373 = sbr.rel (%p371) target = $region56
        $region55: #{leap_encoder_forward.3} parent=11 // pred_region
          _
        $region56: #{leap_encoder_forward.3} parent=11 // pred_fallthru
          _
        // Predicated region
        $region57: #{leap_encoder_forward.3} parent=11 // pred_check
          %p374 = pneg %p300
        $region58: #{leap_encoder_forward.3} parent=11 // pred_check_branch
          %376 = sbr.rel (%p374) target = $region60
        $region59: #{leap_encoder_forward.3} parent=11 // pred_region
          _
        $region60: #{leap_encoder_forward.3} parent=11 // pred_fallthru
          _
      $region12: #{leap_encoder_forward.3} parent=5 // pred_fallthru
        _
      %p377 = scmp.lt.s32.totalorder %s22, 2
      // Predicated region
      $region61: #{leap_encoder_forward.3} parent=5 // pred_check
        %p378 = pneg %p377
      $region62: #{leap_encoder_forward.3} parent=5 // pred_check_branch
        %380 = sbr.rel (%p378) target = $region64
      $region63: #{leap_encoder_forward.3} parent=5 // pred_region
        // Predicated region
        $region65: #{leap_encoder_forward.3} parent=63 // pred_check
          %p381 = pneg %p42
        $region66: #{leap_encoder_forward.3} parent=63 // pred_check_branch
          %383 = sbr.rel (%p381) target = $region68
        $region67: #{leap_encoder_forward.3} parent=63 // pred_region
          %p384 = scmp.lt.s32.totalorder %s22, 1
          %s385 = scalar_select %p384, %s22, 1
          %s386 = smul.addr %s385, 4
          %s387 = smul.addr %s386, 8
          %s388 = scalar_lea.vmem %s0, %s387
        $region68: #{leap_encoder_forward.3} parent=63 // pred_fallthru
          _
      $region64: #{leap_encoder_forward.3} parent=5 // pred_fallthru
        _
      %p389 = scmp.le.s32.totalorder 1, %s22
      %p390 = scmp.lt.s32.totalorder %s22, 3
      %p391 = pnand %p389, %p390
      %p392 = pneg %p391
      // Predicated region
      $region69: #{leap_encoder_forward.3} parent=5 // pred_check
        _
      $region70: #{leap_encoder_forward.3} parent=5 // pred_check_branch
        %394 = sbr.rel (%p391) target = $region72
      $region71: #{leap_encoder_forward.3} parent=5 // pred_region
        %s395 = ssub.s32 %s22, 1
        %p396 = scmp.lt.s32.totalorder %s27, 1
        %s397 = scalar_select %p396, %s27, 1
        %s398 = smul.addr %s397, 4
        %s399 = smul.addr %s398, 8
        %s400 = scalar_lea.vmem %s0, %s399
        %p401 = pneg %p48
        %p402 = pneg %p45
        %p403 = pneg %p69
        %p404 = pneg %p66
        %p405 = pneg %p90
        %p406 = pneg %p87
        %p407 = pneg %p111
        %p408 = pneg %p108
        %p409 = pneg %p132
        %p410 = pneg %p129
        %p411 = pneg %p153
        %p412 = pneg %p150
        %p413 = pneg %p174
        %p414 = pneg %p171
        %p415 = pneg %p195
        %p416 = pneg %p192
        %p417 = pneg %p216
        %p418 = pneg %p213
        %p419 = pneg %p237
        %p420 = pneg %p234
        %p421 = pneg %p258
        %p422 = pneg %p255
        %p423 = pneg %p279
        %p424 = pneg %p276
        %p425 = pneg %p300
        %p426 = pneg %p297
        %p427 = pneg %p326
        %p428 = pneg %p323
        %s429 = sand.u32 %s313, 1
        %s430 = scalar_lea.sflag [#allocation3], %s429
        %s431 = sand.u32 %s313, 1
        %s432 = smul.addr %s431, 32
        %s433 = scalar_lea.vmem [#allocation2], %s432
        %p434 = scmp.lt.s32.totalorder %s27, 1
        %s435 = scalar_select %p434, %s27, 1
        %s436 = smul.addr %s435, 4
        %s437 = smul.addr %s436, 8
        %s438 = scalar_lea.vmem %s0, %s437
        %v439 = vld [vmem:[%s438] sm:$0xff]
        %v440 = vld [vmem:[%s438 + $0x8] sm:$0xff]
        %v441 = vld [vmem:[%s438 + $0x10] sm:$0xff]
        %v442 = vld [vmem:[%s438 + $0x18] sm:$0xff]
        %v443 = vld [vmem:[%s1] sm:$0x1]
        %v444 = vld [vmem:[%s2] sm:$0x1]
        %v445 = vld [vmem:[%s3] sm:$0xff]
        %v446 = vld [vmem:[%s3 + $0x8] sm:$0xff]
        %v447 = vld [vmem:[%s4] sm:$0x1]
        %v448 = vld [vmem:[%s5] sm:$0xff]
        %v449 = vld [vmem:[%s5 + $0x8] sm:$0xff]
        %v450 = vld [vmem:[%s6] sm:$0x1]
        %v451 = vld [vmem:[%s7] sm:$0x1]
        %v452 = vld [vmem:[%s8] sm:$0x1]
        %v453 = vld [vmem:[%s9] sm:$0xff]
        %v454 = vld [vmem:[%s9 + $0x8] sm:$0xff]
        %v455 = vld [vmem:[%s10] sm:$0x1]
        %v456 = vld [vmem:[%s11] sm:$0xff]
        %v457 = vld [vmem:[%s11 + $0x8] sm:$0xff]
        %v458 = vld [vmem:[%s11 + $0x10] sm:$0xff]
        %v459 = vld [vmem:[%s11 + $0x18] sm:$0xff]
        %v460 = vld [vmem:[%s11 + $0x20] sm:$0xff]
        %v461 = vld [vmem:[%s11 + $0x28] sm:$0xff]
        %v462 = vld [vmem:[%s11 + $0x30] sm:$0xff]
        %v463 = vld [vmem:[%s11 + $0x38] sm:$0xff]
        %v464 = vld [vmem:[%s12] sm:$0x1]
        %vm465 = vcmask 130048
        %v466 = vsel %vm465, %v439, 0.0
        %467 = vadd.xlane.f32.xlu0 %v466
        %v468 = vpop.xlane.xlu0 %467
        %v469 = vsel %vm465, %v440, 0.0
        %470 = vadd.xlane.f32.xlu0 %v469
        %v471 = vpop.xlane.xlu0 %470
        %v472 = vsel %vm465, %v441, 0.0
        %473 = vadd.xlane.f32.xlu0 %v472
        %v474 = vpop.xlane.xlu0 %473
        %v475 = vsel %vm465, %v442, 0.0
        %476 = vadd.xlane.f32.xlu0 %v475
        %v477 = vpop.xlane.xlu0 %476
        %v478 = vrcp.pop 16.0
        %v479 = vmul.f32 %v468, %v478
        %v480 = vmul.f32 %v471, %v478
        %v481 = vmul.f32 %v474, %v478
        %v482 = vmul.f32 %v477, %v478
        %v483 = vsub.f32 %v439, %v479
        %v484 = vsub.f32 %v440, %v480
        %v485 = vsub.f32 %v441, %v481
        %v486 = vsub.f32 %v442, %v482
        %v487 = vmul.f32 %v483, %v483
        %v488 = vmul.f32 %v484, %v484
        %v489 = vmul.f32 %v485, %v485
        %v490 = vmul.f32 %v486, %v486
        %v491 = vsel %vm465, %v487, 0.0
        %492 = vadd.xlane.f32.xlu0 %v491
        %v493 = vpop.xlane.xlu0 %492
        %v494 = vsel %vm465, %v488, 0.0
        %495 = vadd.xlane.f32.xlu0 %v494
        %v496 = vpop.xlane.xlu0 %495
        %v497 = vsel %vm465, %v489, 0.0
        %498 = vadd.xlane.f32.xlu0 %v497
        %v499 = vpop.xlane.xlu0 %498
        %v500 = vsel %vm465, %v490, 0.0
        %501 = vadd.xlane.f32.xlu0 %v500
        %v502 = vpop.xlane.xlu0 %501
        %v503 = vmul.f32 %v493, %v478
        %v504 = vmul.f32 %v496, %v478
        %v505 = vmul.f32 %v499, %v478
        %v506 = vmul.f32 %v502, %v478
        %v507 = vadd.f32 %v503, 1e-05
        %v508 = vadd.f32 %v504, 1e-05
        %v509 = vadd.f32 %v505, 1e-05
        %v510 = vadd.f32 %v506, 1e-05
        %v511 = vrsqrt.pop %v507
        %v512 = vrsqrt.pop %v508
        %v513 = vrsqrt.pop %v509
        %v514 = vrsqrt.pop %v510
        %v515 = vmul.f32 %v483, %v511
        %v516 = vmul.f32 %v484, %v512
        %v517 = vmul.f32 %v485, %v513
        %v518 = vmul.f32 %v486, %v514
        %v520 = vlaneseq
        %v521 = vshrl.u32 %v520, 7
        %v522 = vsub.s32 0, %v521
        %v523 = vrot.slane %v443, %v522
        %v525 = vmul.f32 %v515, %v523
        %v526 = vmul.f32 %v516, %v523
        %v527 = vmul.f32 %v517, %v523
        %v528 = vmul.f32 %v518, %v523
        %v530 = vlaneseq
        %v531 = vshrl.u32 %v530, 7
        %v532 = vsub.s32 0, %v531
        %v533 = vrot.slane %v444, %v532
        %v535 = vadd.f32 %v525, %v533
        %v536 = vadd.f32 %v526, %v533
        %v537 = vadd.f32 %v527, %v533
        %v538 = vadd.f32 %v528, %v533
        %v540 = vlaneseq
        %v541 = vshrl.u32 %v540, 7
        %v542 = vsub.s32 0, %v541
        %v543 = vrot.slane %v447, %v542
        %v546 = vsel %vm465, %v535, 0
        %v549 = vsel %vm465, %v536, 0
        %v552 = vsel %vm465, %v537, 0
        %v555 = vsel %vm465, %v538, 0
        %557 = vmatprep.subr.mxu0 0.0
        %558 = vmatpush1.msra.mxu0 %v445
        %559 = vmatprep.subr.mxu0 0.0
        %560 = vmatpush1.msra.mxu0 %v446
        %561 = vmatprep.subr.mxu0 0.0
        %562 = vmatpush1.msra.mxu0 0.0
        %563 = vmatprep.subr.mxu0 0.0
        %564 = vmatpush1.msra.mxu0 0.0
        %565 = vmatprep.subr.mxu0 0.0
        %566 = vmatpush1.msra.mxu0 0.0
        %567 = vmatprep.subr.mxu0 0.0
        %568 = vmatpush1.msra.mxu0 0.0
        %569 = vmatprep.subr.mxu0 0.0
        %570 = vmatpush1.msra.mxu0 0.0
        %571 = vmatprep.subr.mxu0 0.0
        %572 = vmatpush1.msra.mxu0 0.0
        %573 = vmatprep.subr.mxu0 0.0
        %574 = vmatpush1.msra.mxu0 0.0
        %575 = vmatprep.subr.mxu0 0.0
        %576 = vmatpush1.msra.mxu0 0.0
        %577 = vmatprep.subr.mxu0 0.0
        %578 = vmatpush1.msra.mxu0 0.0
        %579 = vmatprep.subr.mxu0 0.0
        %580 = vmatpush1.msra.mxu0 0.0
        %581 = vmatprep.subr.mxu0 0.0
        %582 = vmatpush1.msra.mxu0 0.0
        %583 = vmatprep.subr.mxu0 0.0
        %584 = vmatpush1.msra.mxu0 0.0
        %585 = vmatprep.subr.mxu0 0.0
        %586 = vmatpush1.msra.mxu0 0.0
        %587 = vmatprep.subr.mxu0 0.0
        %588 = vmatpush1.msra.mxu0 0.0
        %589 = vmatprep.subr.mxu0 0.0
        %590 = vmatpush1.msra.mxu0 0.0
        %591 = vmatprep.subr.mxu0 0.0
        %592 = vmatpush1.msra.mxu0 0.0
        %593 = vmatprep.subr.mxu0 0.0
        %594 = vmatpush1.msra.mxu0 0.0
        %595 = vmatprep.subr.mxu0 0.0
        %596 = vmatpush1.msra.mxu0 0.0
        %597 = vmatprep.subr.mxu0 0.0
        %598 = vmatpush1.msra.mxu0 0.0
        %599 = vmatprep.subr.mxu0 0.0
        %600 = vmatpush1.msra.mxu0 0.0
        %601 = vmatprep.subr.mxu0 0.0
        %602 = vmatpush1.msra.mxu0 0.0
        %603 = vmatprep.subr.mxu0 0.0
        %604 = vmatpush1.msra.mxu0 0.0
        %605 = vmatprep.subr.mxu0 0.0
        %606 = vmatpush1.msra.mxu0 0.0
        %607 = vmatprep.subr.mxu0 0.0
        %608 = vmatpush1.msra.mxu0 0.0
        %609 = vmatprep.subr.mxu0 0.0
        %610 = vmatpush1.msra.mxu0 0.0
        %611 = vmatprep.subr.mxu0 0.0
        %612 = vmatpush1.msra.mxu0 0.0
        %613 = vmatprep.subr.mxu0 0.0
        %614 = vmatpush1.msra.mxu0 0.0
        %615 = vmatprep.subr.mxu0 0.0
        %616 = vmatpush1.msra.mxu0 0.0
        %617 = vmatprep.subr.mxu0 0.0
        %618 = vmatpush1.msra.mxu0 0.0
        %619 = vmatprep.subr.mxu0 0.0
        %620 = vmatpush1.msra.mxu0 0.0
        %621 = vmatprep.mubr.f32.mxu0 0.0
        %622 = vmatmul.mubr.f32.gmra.mrb[0].mxu0 %v546
        %v623 = vpop.f32.mrb[0].mxu0
        %v624 = vadd.f32 %v543, %v623
        %v625 = vpop.f32.mrb[0].mxu0
        %626 = vmatprep.mubr.f32.mxu0 0.0
        %627 = vmatmul.mubr.f32.gmra.mrb[0].mxu0 %v549
        %v628 = vpop.f32.mrb[0].mxu0
        %v629 = vadd.f32 %v543, %v628
        %v630 = vpop.f32.mrb[0].mxu0
        %631 = vmatprep.mubr.f32.mxu0 0.0
        %632 = vmatmul.mubr.f32.gmra.mrb[0].mxu0 %v552
        %v633 = vpop.f32.mrb[0].mxu0
        %v634 = vadd.f32 %v543, %v633
        %v635 = vpop.f32.mrb[0].mxu0
        %636 = vmatprep.mubr.f32.mxu0 0.0
        %637 = vmatmul.mubr.f32.gmra.mrb[0].mxu0 %v555
        %v638 = vpop.f32.mrb[0].mxu0
        %v639 = vadd.f32 %v543, %v638
        %v640 = vpop.f32.mrb[0].mxu0
        %641 = vdwg.mxu0
        %646 = vrot.lane.b32.xlu0 %v624, 112
        %v647 = vpop.permute.xlu0 %646
        %648 = vrot.lane.b32.xlu0 %v629, 112
        %v649 = vpop.permute.xlu0 %648
        %650 = vrot.lane.b32.xlu0 %v634, 112
        %v651 = vpop.permute.xlu0 %650
        %652 = vrot.lane.b32.xlu0 %v639, 112
        %v653 = vpop.permute.xlu0 %652
        %vm654 = vcmask 64512
        %v655 = vsel %vm654, %v624, 0
        %v657 = vsel %vm654, %v629, 0
        %v659 = vsel %vm654, %v634, 0
        %v661 = vsel %vm654, %v639, 0
        %v663 = vsel %vm654, %v647, 0
        %v665 = vsel %vm654, %v649, 0
        %v667 = vsel %vm654, %v651, 0
        %v669 = vsel %vm654, %v653, 0
        %671 = vmatprep.subr.mxu0 0.0
        %672 = vmatpush1.xpose.msra.mxu0 %v663
        %673 = vmatprep.subr.mxu0 0.0
        %674 = vmatpush1.xpose.msra.mxu0 %v665
        %675 = vmatprep.subr.mxu0 0.0
        %676 = vmatpush1.xpose.msra.mxu0 %v667
        %677 = vmatprep.subr.mxu0 0.0
        %678 = vmatpush1.xpose.msra.mxu0 %v669
        %679 = vmatprep.subr.mxu0 0.0
        %680 = vmatpush1.xpose.msra.mxu0 0.0
        %681 = vmatprep.subr.mxu0 0.0
        %682 = vmatpush1.xpose.msra.mxu0 0.0
        %683 = vmatprep.subr.mxu0 0.0
        %684 = vmatpush1.xpose.msra.mxu0 0.0
        %685 = vmatprep.subr.mxu0 0.0
        %686 = vmatpush1.xpose.msra.mxu0 0.0
        %687 = vmatprep.subr.mxu0 0.0
        %688 = vmatpush1.xpose.msra.mxu0 0.0
        %689 = vmatprep.subr.mxu0 0.0
        %690 = vmatpush1.xpose.msra.mxu0 0.0
        %691 = vmatprep.subr.mxu0 0.0
        %692 = vmatpush1.xpose.msra.mxu0 0.0
        %693 = vmatprep.subr.mxu0 0.0
        %694 = vmatpush1.xpose.msra.mxu0 0.0
        %695 = vmatprep.subr.mxu0 0.0
        %696 = vmatpush1.xpose.msra.mxu0 0.0
        %697 = vmatprep.subr.mxu0 0.0
        %698 = vmatpush1.xpose.msra.mxu0 0.0
        %699 = vmatprep.subr.mxu0 0.0
        %700 = vmatpush1.xpose.msra.mxu0 0.0
        %701 = vmatprep.subr.mxu0 0.0
        %702 = vmatpush1.xpose.msra.mxu0 0.0
        %703 = vmatprep.subr.mxu0 0.0
        %704 = vmatpush1.xpose.msra.mxu0 0.0
        %705 = vmatprep.subr.mxu0 0.0
        %706 = vmatpush1.xpose.msra.mxu0 0.0
        %707 = vmatprep.subr.mxu0 0.0
        %708 = vmatpush1.xpose.msra.mxu0 0.0
        %709 = vmatprep.subr.mxu0 0.0
        %710 = vmatpush1.xpose.msra.mxu0 0.0
        %711 = vmatprep.subr.mxu0 0.0
        %712 = vmatpush1.xpose.msra.mxu0 0.0
        %713 = vmatprep.subr.mxu0 0.0
        %714 = vmatpush1.xpose.msra.mxu0 0.0
        %715 = vmatprep.subr.mxu0 0.0
        %716 = vmatpush1.xpose.msra.mxu0 0.0
        %717 = vmatprep.subr.mxu0 0.0
        %718 = vmatpush1.xpose.msra.mxu0 0.0
        %719 = vmatprep.subr.mxu0 0.0
        %720 = vmatpush1.xpose.msra.mxu0 0.0
        %721 = vmatprep.subr.mxu0 0.0
        %722 = vmatpush1.xpose.msra.mxu0 0.0
        %723 = vmatprep.subr.mxu0 0.0
        %724 = vmatpush1.xpose.msra.mxu0 0.0
        %725 = vmatprep.subr.mxu0 0.0
        %726 = vmatpush1.xpose.msra.mxu0 0.0
        %727 = vmatprep.subr.mxu0 0.0
        %728 = vmatpush1.xpose.msra.mxu0 0.0
        %729 = vmatprep.subr.mxu0 0.0
        %730 = vmatpush1.xpose.msra.mxu0 0.0
        %731 = vmatprep.subr.mxu0 0.0
        %732 = vmatpush1.xpose.msra.mxu0 0.0
        %733 = vmatprep.subr.mxu0 0.0
        %734 = vmatpush1.xpose.msra.mxu0 0.0
        %735 = vmatprep.mubr.f32.mxu0 0.0
        %736 = vmatmul.mubr.f32.gmra.mrb[0].mxu0 %v655
        %v737 = vpop.f32.mrb[0].mxu0
        %v738 = vadd.f32 0.0, %v737
        %v739 = vpop.f32.mrb[0].mxu0
        %740 = vmatprep.mubr.f32.mxu0 0.0
        %741 = vmatmul.mubr.f32.gmra.mrb[0].mxu0 %v657
        %v742 = vpop.f32.mrb[0].mxu0
        %v743 = vadd.f32 0.0, %v742
        %v744 = vpop.f32.mrb[0].mxu0
        %745 = vmatprep.mubr.f32.mxu0 0.0
        %746 = vmatmul.mubr.f32.gmra.mrb[0].mxu0 %v659
        %v747 = vpop.f32.mrb[0].mxu0
        %v748 = vadd.f32 0.0, %v747
        %v749 = vpop.f32.mrb[0].mxu0
        %750 = vmatprep.mubr.f32.mxu0 0.0
        %751 = vmatmul.mubr.f32.gmra.mrb[0].mxu0 %v661
        %v752 = vpop.f32.mrb[0].mxu0
        %v753 = vadd.f32 0.0, %v752
        %v754 = vpop.f32.mrb[0].mxu0
        %755 = vdwg.mxu0
        %v756 = vmul.f32 %v738, 0.35355338
        %v757 = vmul.f32 %v743, 0.35355338
        %v758 = vmul.f32 %v748, 0.35355338
        %v759 = vmul.f32 %v753, 0.35355338
        %vm760 = vcmask 261120
        %v761 = vsel %vm760, %v756, -inf
        %762 = vmax.xlane.f32.xlu0 %v761
        %v763 = vpop.xlane.xlu0 %762
        %v764 = vsel %vm760, %v757, -inf
        %765 = vmax.xlane.f32.xlu0 %v764
        %v766 = vpop.xlane.xlu0 %765
        %v767 = vsel %vm760, %v758, -inf
        %768 = vmax.xlane.f32.xlu0 %v767
        %v769 = vpop.xlane.xlu0 %768
        %v770 = vsel %vm760, %v759, -inf
        %771 = vmax.xlane.f32.xlu0 %v770
        %v772 = vpop.xlane.xlu0 %771
        %v773 = vsub.f32 %v756, %v763
        %v774 = vsub.f32 %v757, %v766
        %v775 = vsub.f32 %v758, %v769
        %v776 = vsub.f32 %v759, %v772
        %v777 = vmul.f32 %v773, 1.442695
        %v778 = vpow.pop %v777
        %v779 = vmul.f32 %v774, 1.442695
        %v780 = vpow.pop %v779
        %v781 = vmul.f32 %v775, 1.442695
        %v782 = vpow.pop %v781
        %v783 = vmul.f32 %v776, 1.442695
        %v784 = vpow.pop %v783
        %v785 = vsel %vm760, %v778, 0.0
        %786 = vadd.xlane.f32.xlu0 %v785
        %v787 = vpop.xlane.xlu0 %786
        %v788 = vsel %vm760, %v780, 0.0
        %789 = vadd.xlane.f32.xlu0 %v788
        %v790 = vpop.xlane.xlu0 %789
        %v791 = vsel %vm760, %v782, 0.0
        %792 = vadd.xlane.f32.xlu0 %v791
        %v793 = vpop.xlane.xlu0 %792
        %v794 = vsel %vm760, %v784, 0.0
        %795 = vadd.xlane.f32.xlu0 %v794
        %v796 = vpop.xlane.xlu0 %795
        %v797 = vrcp.pop %v787
        %v798 = vrcp.pop %v790
        %v799 = vrcp.pop %v793
        %v800 = vrcp.pop %v796
        %v801 = vmul.f32 %v778, %v797
        %v802 = vmul.f32 %v780, %v798
        %v803 = vmul.f32 %v782, %v799
        %v804 = vmul.f32 %v784, %v800
        %805 = vrot.lane.b32.xlu0 %v624, 96
        %v806 = vpop.permute.xlu0 %805
        %807 = vrot.lane.b32.xlu0 %v629, 96
        %v808 = vpop.permute.xlu0 %807
        %809 = vrot.lane.b32.xlu0 %v634, 96
        %v810 = vpop.permute.xlu0 %809
        %811 = vrot.lane.b32.xlu0 %v639, 96
        %v812 = vpop.permute.xlu0 %811
        %v818 = vsel %vm760, %v801, 0
        %v821 = vsel %vm760, %v802, 0
        %v824 = vsel %vm760, %v803, 0
        %v827 = vsel %vm760, %v804, 0
        %829 = vmatprep.subr.mxu0 0.0
        %830 = vmatpush1.msra.mxu0 %v806
        %831 = vmatprep.subr.mxu0 0.0
        %832 = vmatpush1.msra.mxu0 %v808
        %833 = vmatprep.subr.mxu0 0.0
        %834 = vmatpush1.msra.mxu0 %v810
        %835 = vmatprep.subr.mxu0 0.0
        %836 = vmatpush1.msra.mxu0 %v812
        %837 = vmatprep.subr.mxu0 0.0
        %838 = vmatpush1.msra.mxu0 0.0
        %839 = vmatprep.subr.mxu0 0.0
        %840 = vmatpush1.msra.mxu0 0.0
        %841 = vmatprep.subr.mxu0 0.0
        %842 = vmatpush1.msra.mxu0 0.0
        %843 = vmatprep.subr.mxu0 0.0
        %844 = vmatpush1.msra.mxu0 0.0
        %845 = vmatprep.subr.mxu0 0.0
        %846 = vmatpush1.msra.mxu0 0.0
        %847 = vmatprep.subr.mxu0 0.0
        %848 = vmatpush1.msra.mxu0 0.0
        %849 = vmatprep.subr.mxu0 0.0
        %850 = vmatpush1.msra.mxu0 0.0
        %851 = vmatprep.subr.mxu0 0.0
        %852 = vmatpush1.msra.mxu0 0.0
        %853 = vmatprep.subr.mxu0 0.0
        %854 = vmatpush1.msra.mxu0 0.0
        %855 = vmatprep.subr.mxu0 0.0
        %856 = vmatpush1.msra.mxu0 0.0
        %857 = vmatprep.subr.mxu0 0.0
        %858 = vmatpush1.msra.mxu0 0.0
        %859 = vmatprep.subr.mxu0 0.0
        %860 = vmatpush1.msra.mxu0 0.0
        %861 = vmatprep.subr.mxu0 0.0
        %862 = vmatpush1.msra.mxu0 0.0
        %863 = vmatprep.subr.mxu0 0.0
        %864 = vmatpush1.msra.mxu0 0.0
        %865 = vmatprep.subr.mxu0 0.0
        %866 = vmatpush1.msra.mxu0 0.0
        %867 = vmatprep.subr.mxu0 0.0
        %868 = vmatpush1.msra.mxu0 0.0
        %869 = vmatprep.subr.mxu0 0.0
        %870 = vmatpush1.msra.mxu0 0.0
        %871 = vmatprep.subr.mxu0 0.0
        %872 = vmatpush1.msra.mxu0 0.0
        %873 = vmatprep.subr.mxu0 0.0
        %874 = vmatpush1.msra.mxu0 0.0
        %875 = vmatprep.subr.mxu0 0.0
        %876 = vmatpush1.msra.mxu0 0.0
        %877 = vmatprep.subr.mxu0 0.0
        %878 = vmatpush1.msra.mxu0 0.0
        %879 = vmatprep.subr.mxu0 0.0
        %880 = vmatpush1.msra.mxu0 0.0
        %881 = vmatprep.subr.mxu0 0.0
        %882 = vmatpush1.msra.mxu0 0.0
        %883 = vmatprep.subr.mxu0 0.0
        %884 = vmatpush1.msra.mxu0 0.0
        %885 = vmatprep.subr.mxu0 0.0
        %886 = vmatpush1.msra.mxu0 0.0
        %887 = vmatprep.subr.mxu0 0.0
        %888 = vmatpush1.msra.mxu0 0.0
        %889 = vmatprep.subr.mxu0 0.0
        %890 = vmatpush1.msra.mxu0 0.0
        %891 = vmatprep.subr.mxu0 0.0
        %892 = vmatpush1.msra.mxu0 0.0
        %893 = vmatprep.mubr.f32.mxu0 0.0
        %894 = vmatmul.mubr.f32.gmra.mrb[0].mxu0 %v818
        %v895 = vpop.f32.mrb[0].mxu0
        %v896 = vadd.f32 0.0, %v895
        %v897 = vpop.f32.mrb[0].mxu0
        %898 = vmatprep.mubr.f32.mxu0 0.0
        %899 = vmatmul.mubr.f32.gmra.mrb[0].mxu0 %v821
        %v900 = vpop.f32.mrb[0].mxu0
        %v901 = vadd.f32 0.0, %v900
        %v902 = vpop.f32.mrb[0].mxu0
        %903 = vmatprep.mubr.f32.mxu0 0.0
        %904 = vmatmul.mubr.f32.gmra.mrb[0].mxu0 %v824
        %v905 = vpop.f32.mrb[0].mxu0
        %v906 = vadd.f32 0.0, %v905
        %v907 = vpop.f32.mrb[0].mxu0
        %908 = vmatprep.mubr.f32.mxu0 0.0
        %909 = vmatmul.mubr.f32.gmra.mrb[0].mxu0 %v827
        %v910 = vpop.f32.mrb[0].mxu0
        %v911 = vadd.f32 0.0, %v910
        %v912 = vpop.f32.mrb[0].mxu0
        %913 = vdwg.mxu0
        %914 = vrot.lane.b32.xlu0 %v624, 120
        %v915 = vpop.permute.xlu0 %914
        %916 = vrot.lane.b32.xlu0 %v629, 120
        %v917 = vpop.permute.xlu0 %916
        %918 = vrot.lane.b32.xlu0 %v634, 120
        %v919 = vpop.permute.xlu0 %918
        %920 = vrot.lane.b32.xlu0 %v639, 120
        %v921 = vpop.permute.xlu0 %920
        %922 = vrot.lane.b32.xlu0 %v624, 104
        %v923 = vpop.permute.xlu0 %922
        %924 = vrot.lane.b32.xlu0 %v629, 104
        %v925 = vpop.permute.xlu0 %924
        %926 = vrot.lane.b32.xlu0 %v634, 104
        %v927 = vpop.permute.xlu0 %926
        %928 = vrot.lane.b32.xlu0 %v639, 104
        %v929 = vpop.permute.xlu0 %928
        %v930 = vsel %vm654, %v915, 0
        %v932 = vsel %vm654, %v917, 0
        %v934 = vsel %vm654, %v919, 0
        %v936 = vsel %vm654, %v921, 0
        %v938 = vsel %vm654, %v923, 0
        %v940 = vsel %vm654, %v925, 0
        %v942 = vsel %vm654, %v927, 0
        %v944 = vsel %vm654, %v929, 0
        %946 = vmatprep.subr.mxu0 0.0
        %947 = vmatpush1.xpose.msra.mxu0 %v938
        %948 = vmatprep.subr.mxu0 0.0
        %949 = vmatpush1.xpose.msra.mxu0 %v940
        %950 = vmatprep.subr.mxu0 0.0
        %951 = vmatpush1.xpose.msra.mxu0 %v942
        %952 = vmatprep.subr.mxu0 0.0
        %953 = vmatpush1.xpose.msra.mxu0 %v944
        %954 = vmatprep.subr.mxu0 0.0
        %955 = vmatpush1.xpose.msra.mxu0 0.0
        %956 = vmatprep.subr.mxu0 0.0
        %957 = vmatpush1.xpose.msra.mxu0 0.0
        %958 = vmatprep.subr.mxu0 0.0
        %959 = vmatpush1.xpose.msra.mxu0 0.0
        %960 = vmatprep.subr.mxu0 0.0
        %961 = vmatpush1.xpose.msra.mxu0 0.0
        %962 = vmatprep.subr.mxu0 0.0
        %963 = vmatpush1.xpose.msra.mxu0 0.0
        %964 = vmatprep.subr.mxu0 0.0
        %965 = vmatpush1.xpose.msra.mxu0 0.0
        %966 = vmatprep.subr.mxu0 0.0
        %967 = vmatpush1.xpose.msra.mxu0 0.0
        %968 = vmatprep.subr.mxu0 0.0
        %969 = vmatpush1.xpose.msra.mxu0 0.0
        %970 = vmatprep.subr.mxu0 0.0
        %971 = vmatpush1.xpose.msra.mxu0 0.0
        %972 = vmatprep.subr.mxu0 0.0
        %973 = vmatpush1.xpose.msra.mxu0 0.0
        %974 = vmatprep.subr.mxu0 0.0
        %975 = vmatpush1.xpose.msra.mxu0 0.0
        %976 = vmatprep.subr.mxu0 0.0
        %977 = vmatpush1.xpose.msra.mxu0 0.0
        %978 = vmatprep.subr.mxu0 0.0
        %979 = vmatpush1.xpose.msra.mxu0 0.0
        %980 = vmatprep.subr.mxu0 0.0
        %981 = vmatpush1.xpose.msra.mxu0 0.0
        %982 = vmatprep.subr.mxu0 0.0
        %983 = vmatpush1.xpose.msra.mxu0 0.0
        %984 = vmatprep.subr.mxu0 0.0
        %985 = vmatpush1.xpose.msra.mxu0 0.0
        %986 = vmatprep.subr.mxu0 0.0
        %987 = vmatpush1.xpose.msra.mxu0 0.0
        %988 = vmatprep.subr.mxu0 0.0
        %989 = vmatpush1.xpose.msra.mxu0 0.0
        %990 = vmatprep.subr.mxu0 0.0
        %991 = vmatpush1.xpose.msra.mxu0 0.0
        %992 = vmatprep.subr.mxu0 0.0
        %993 = vmatpush1.xpose.msra.mxu0 0.0
        %994 = vmatprep.subr.mxu0 0.0
        %995 = vmatpush1.xpose.msra.mxu0 0.0
        %996 = vmatprep.subr.mxu0 0.0
        %997 = vmatpush1.xpose.msra.mxu0 0.0
        %998 = vmatprep.subr.mxu0 0.0
        %999 = vmatpush1.xpose.msra.mxu0 0.0
        %1000 = vmatprep.subr.mxu0 0.0
        %1001 = vmatpush1.xpose.msra.mxu0 0.0
        %1002 = vmatprep.subr.mxu0 0.0
        %1003 = vmatpush1.xpose.msra.mxu0 0.0
        %1004 = vmatprep.subr.mxu0 0.0
        %1005 = vmatpush1.xpose.msra.mxu0 0.0
        %1006 = vmatprep.subr.mxu0 0.0
        %1007 = vmatpush1.xpose.msra.mxu0 0.0
        %1008 = vmatprep.subr.mxu0 0.0
        %1009 = vmatpush1.xpose.msra.mxu0 0.0
        %1010 = vmatprep.mubr.f32.mxu0 0.0
        %1011 = vmatmul.mubr.f32.gmra.mrb[0].mxu0 %v930
        %v1012 = vpop.f32.mrb[0].mxu0
        %v1013 = vadd.f32 0.0, %v1012
        %v1014 = vpop.f32.mrb[0].mxu0
        %1015 = vmatprep.mubr.f32.mxu0 0.0
        %1016 = vmatmul.mubr.f32.gmra.mrb[0].mxu0 %v932
        %v1017 = vpop.f32.mrb[0].mxu0
        %v1018 = vadd.f32 0.0, %v1017
        %v1019 = vpop.f32.mrb[0].mxu0
        %1020 = vmatprep.mubr.f32.mxu0 0.0
        %1021 = vmatmul.mubr.f32.gmra.mrb[0].mxu0 %v934
        %v1022 = vpop.f32.mrb[0].mxu0
        %v1023 = vadd.f32 0.0, %v1022
        %v1024 = vpop.f32.mrb[0].mxu0
        %1025 = vmatprep.mubr.f32.mxu0 0.0
        %1026 = vmatmul.mubr.f32.gmra.mrb[0].mxu0 %v936
        %v1027 = vpop.f32.mrb[0].mxu0
        %v1028 = vadd.f32 0.0, %v1027
        %v1029 = vpop.f32.mrb[0].mxu0
        %1030 = vdwg.mxu0
        %v1031 = vmul.f32 %v1013, 0.35355338
        %v1032 = vmul.f32 %v1018, 0.35355338
        %v1033 = vmul.f32 %v1023, 0.35355338
        %v1034 = vmul.f32 %v1028, 0.35355338
        %v1035 = vsel %vm760, %v1031, -inf
        %1036 = vmax.xlane.f32.xlu0 %v1035
        %v1037 = vpop.xlane.xlu0 %1036
        %v1038 = vsel %vm760, %v1032, -inf
        %1039 = vmax.xlane.f32.xlu0 %v1038
        %v1040 = vpop.xlane.xlu0 %1039
        %v1041 = vsel %vm760, %v1033, -inf
        %1042 = vmax.xlane.f32.xlu0 %v1041
        %v1043 = vpop.xlane.xlu0 %1042
        %v1044 = vsel %vm760, %v1034, -inf
        %1045 = vmax.xlane.f32.xlu0 %v1044
        %v1046 = vpop.xlane.xlu0 %1045
        %v1047 = vsub.f32 %v1031, %v1037
        %v1048 = vsub.f32 %v1032, %v1040
        %v1049 = vsub.f32 %v1033, %v1043
        %v1050 = vsub.f32 %v1034, %v1046
        %v1051 = vmul.f32 %v1047, 1.442695
        %v1052 = vpow.pop %v1051
        %v1053 = vmul.f32 %v1048, 1.442695
        %v1054 = vpow.pop %v1053
        %v1055 = vmul.f32 %v1049, 1.442695
        %v1056 = vpow.pop %v1055
        %v1057 = vmul.f32 %v1050, 1.442695
        %v1058 = vpow.pop %v1057
        %v1059 = vsel %vm760, %v1052, 0.0
        %1060 = vadd.xlane.f32.xlu0 %v1059
        %v1061 = vpop.xlane.xlu0 %1060
        %v1062 = vsel %vm760, %v1054, 0.0
        %1063 = vadd.xlane.f32.xlu0 %v1062
        %v1064 = vpop.xlane.xlu0 %1063
        %v1065 = vsel %vm760, %v1056, 0.0
        %1066 = vadd.xlane.f32.xlu0 %v1065
        %v1067 = vpop.xlane.xlu0 %1066
        %v1068 = vsel %vm760, %v1058, 0.0
        %1069 = vadd.xlane.f32.xlu0 %v1068
        %v1070 = vpop.xlane.xlu0 %1069
        %v1071 = vrcp.pop %v1061
        %v1072 = vrcp.pop %v1064
        %v1073 = vrcp.pop %v1067
        %v1074 = vrcp.pop %v1070
        %v1075 = vmul.f32 %v1052, %v1071
        %v1076 = vmul.f32 %v1054, %v1072
        %v1077 = vmul.f32 %v1056, %v1073
        %v1078 = vmul.f32 %v1058, %v1074
        %1079 = vrot.lane.b32.xlu0 %v624, 88
        %v1080 = vpop.permute.xlu0 %1079
        %1081 = vrot.lane.b32.xlu0 %v629, 88
        %v1082 = vpop.permute.xlu0 %1081
        %1083 = vrot.lane.b32.xlu0 %v634, 88
        %v1084 = vpop.permute.xlu0 %1083
        %1085 = vrot.lane.b32.xlu0 %v639, 88
        %v1086 = vpop.permute.xlu0 %1085
        %v1092 = vsel %vm760, %v1075, 0
        %v1095 = vsel %vm760, %v1076, 0
        %v1098 = vsel %vm760, %v1077, 0
        %v1101 = vsel %vm760, %v1078, 0
        %1103 = vmatprep.subr.mxu0 0.0
        %1104 = vmatpush1.msra.mxu0 %v1080
        %1105 = vmatprep.subr.mxu0 0.0
        %1106 = vmatpush1.msra.mxu0 %v1082
        %1107 = vmatprep.subr.mxu0 0.0
        %1108 = vmatpush1.msra.mxu0 %v1084
        %1109 = vmatprep.subr.mxu0 0.0
        %1110 = vmatpush1.msra.mxu0 %v1086
        %1111 = vmatprep.subr.mxu0 0.0
        %1112 = vmatpush1.msra.mxu0 0.0
        %1113 = vmatprep.subr.mxu0 0.0
        %1114 = vmatpush1.msra.mxu0 0.0
        %1115 = vmatprep.subr.mxu0 0.0
        %1116 = vmatpush1.msra.mxu0 0.0
        %1117 = vmatprep.subr.mxu0 0.0
        %1118 = vmatpush1.msra.mxu0 0.0
        %1119 = vmatprep.subr.mxu0 0.0
        %1120 = vmatpush1.msra.mxu0 0.0
        %1121 = vmatprep.subr.mxu0 0.0
        %1122 = vmatpush1.msra.mxu0 0.0
        %1123 = vmatprep.subr.mxu0 0.0
        %1124 = vmatpush1.msra.mxu0 0.0
        %1125 = vmatprep.subr.mxu0 0.0
        %1126 = vmatpush1.msra.mxu0 0.0
        %1127 = vmatprep.subr.mxu0 0.0
        %1128 = vmatpush1.msra.mxu0 0.0
        %1129 = vmatprep.subr.mxu0 0.0
        %1130 = vmatpush1.msra.mxu0 0.0
        %1131 = vmatprep.subr.mxu0 0.0
        %1132 = vmatpush1.msra.mxu0 0.0
        %1133 = vmatprep.subr.mxu0 0.0
        %1134 = vmatpush1.msra.mxu0 0.0
        %1135 = vmatprep.subr.mxu0 0.0
        %1136 = vmatpush1.msra.mxu0 0.0
        %1137 = vmatprep.subr.mxu0 0.0
        %1138 = vmatpush1.msra.mxu0 0.0
        %1139 = vmatprep.subr.mxu0 0.0
        %1140 = vmatpush1.msra.mxu0 0.0
        %1141 = vmatprep.subr.mxu0 0.0
        %1142 = vmatpush1.msra.mxu0 0.0
        %1143 = vmatprep.subr.mxu0 0.0
        %1144 = vmatpush1.msra.mxu0 0.0
        %1145 = vmatprep.subr.mxu0 0.0
        %1146 = vmatpush1.msra.mxu0 0.0
        %1147 = vmatprep.subr.mxu0 0.0
        %1148 = vmatpush1.msra.mxu0 0.0
        %1149 = vmatprep.subr.mxu0 0.0
        %1150 = vmatpush1.msra.mxu0 0.0
        %1151 = vmatprep.subr.mxu0 0.0
        %1152 = vmatpush1.msra.mxu0 0.0
        %1153 = vmatprep.subr.mxu0 0.0
        %1154 = vmatpush1.msra.mxu0 0.0
        %1155 = vmatprep.subr.mxu0 0.0
        %1156 = vmatpush1.msra.mxu0 0.0
        %1157 = vmatprep.subr.mxu0 0.0
        %1158 = vmatpush1.msra.mxu0 0.0
        %1159 = vmatprep.subr.mxu0 0.0
        %1160 = vmatpush1.msra.mxu0 0.0
        %1161 = vmatprep.subr.mxu0 0.0
        %1162 = vmatpush1.msra.mxu0 0.0
        %1163 = vmatprep.subr.mxu0 0.0
        %1164 = vmatpush1.msra.mxu0 0.0
        %1165 = vmatprep.subr.mxu0 0.0
        %1166 = vmatpush1.msra.mxu0 0.0
        %1167 = vmatprep.mubr.f32.mxu0 0.0
        %1168 = vmatmul.mubr.f32.gmra.mrb[0].mxu0 %v1092
        %v1169 = vpop.f32.mrb[0].mxu0
        %v1170 = vadd.f32 0.0, %v1169
        %v1171 = vpop.f32.mrb[0].mxu0
        %1172 = vmatprep.mubr.f32.mxu0 0.0
        %1173 = vmatmul.mubr.f32.gmra.mrb[0].mxu0 %v1095
        %v1174 = vpop.f32.mrb[0].mxu0
        %v1175 = vadd.f32 0.0, %v1174
        %v1176 = vpop.f32.mrb[0].mxu0
        %1177 = vmatprep.mubr.f32.mxu0 0.0
        %1178 = vmatmul.mubr.f32.gmra.mrb[0].mxu0 %v1098
        %v1179 = vpop.f32.mrb[0].mxu0
        %v1180 = vadd.f32 0.0, %v1179
        %v1181 = vpop.f32.mrb[0].mxu0
        %1182 = vmatprep.mubr.f32.mxu0 0.0
        %1183 = vmatmul.mubr.f32.gmra.mrb[0].mxu0 %v1101
        %v1184 = vpop.f32.mrb[0].mxu0
        %v1185 = vadd.f32 0.0, %v1184
        %v1186 = vpop.f32.mrb[0].mxu0
        %1187 = vdwg.mxu0
        %1192 = vrot.lane.b32.xlu0 %v1170, 8
        %v1193 = vpop.permute.xlu0 %1192
        %1194 = vrot.lane.b32.xlu0 %v1175, 8
        %v1195 = vpop.permute.xlu0 %1194
        %1196 = vrot.lane.b32.xlu0 %v1180, 8
        %v1197 = vpop.permute.xlu0 %1196
        %1198 = vrot.lane.b32.xlu0 %v1185, 8
        %v1199 = vpop.permute.xlu0 %1198
        %v1204 = vsel %vm654, %v896, %v1193
        %v1205 = vsel %vm654, %v901, %v1195
        %v1206 = vsel %vm654, %v906, %v1197
        %v1207 = vsel %vm654, %v911, %v1199
        %v1209 = vlaneseq
        %v1210 = vshrl.u32 %v1209, 7
        %v1211 = vsub.s32 0, %v1210
        %v1212 = vrot.slane %v450, %v1211
        %v1215 = vsel %vm465, %v1204, 0
        %v1218 = vsel %vm465, %v1205, 0
        %v1221 = vsel %vm465, %v1206, 0
        %v1224 = vsel %vm465, %v1207, 0
        %1226 = vmatprep.subr.mxu0 0.0
        %1227 = vmatpush1.msra.mxu0 %v448
        %1228 = vmatprep.subr.mxu0 0.0
        %1229 = vmatpush1.msra.mxu0 %v449
        %1230 = vmatprep.subr.mxu0 0.0
        %1231 = vmatpush1.msra.mxu0 0.0
        %1232 = vmatprep.subr.mxu0 0.0
        %1233 = vmatpush1.msra.mxu0 0.0
        %1234 = vmatprep.subr.mxu0 0.0
        %1235 = vmatpush1.msra.mxu0 0.0
        %1236 = vmatprep.subr.mxu0 0.0
        %1237 = vmatpush1.msra.mxu0 0.0
        %1238 = vmatprep.subr.mxu0 0.0
        %1239 = vmatpush1.msra.mxu0 0.0
        %1240 = vmatprep.subr.mxu0 0.0
        %1241 = vmatpush1.msra.mxu0 0.0
        %1242 = vmatprep.subr.mxu0 0.0
        %1243 = vmatpush1.msra.mxu0 0.0
        %1244 = vmatprep.subr.mxu0 0.0
        %1245 = vmatpush1.msra.mxu0 0.0
        %1246 = vmatprep.subr.mxu0 0.0
        %1247 = vmatpush1.msra.mxu0 0.0
        %1248 = vmatprep.subr.mxu0 0.0
        %1249 = vmatpush1.msra.mxu0 0.0
        %1250 = vmatprep.subr.mxu0 0.0
        %1251 = vmatpush1.msra.mxu0 0.0
        %1252 = vmatprep.subr.mxu0 0.0
        %1253 = vmatpush1.msra.mxu0 0.0
        %1254 = vmatprep.subr.mxu0 0.0
        %1255 = vmatpush1.msra.mxu0 0.0
        %1256 = vmatprep.subr.mxu0 0.0
        %1257 = vmatpush1.msra.mxu0 0.0
        %1258 = vmatprep.subr.mxu0 0.0
        %1259 = vmatpush1.msra.mxu0 0.0
        %1260 = vmatprep.subr.mxu0 0.0
        %1261 = vmatpush1.msra.mxu0 0.0
        %1262 = vmatprep.subr.mxu0 0.0
        %1263 = vmatpush1.msra.mxu0 0.0
        %1264 = vmatprep.subr.mxu0 0.0
        %1265 = vmatpush1.msra.mxu0 0.0
        %1266 = vmatprep.subr.mxu0 0.0
        %1267 = vmatpush1.msra.mxu0 0.0
        %1268 = vmatprep.subr.mxu0 0.0
        %1269 = vmatpush1.msra.mxu0 0.0
        %1270 = vmatprep.subr.mxu0 0.0
        %1271 = vmatpush1.msra.mxu0 0.0
        %1272 = vmatprep.subr.mxu0 0.0
        %1273 = vmatpush1.msra.mxu0 0.0
        %1274 = vmatprep.subr.mxu0 0.0
        %1275 = vmatpush1.msra.mxu0 0.0
        %1276 = vmatprep.subr.mxu0 0.0
        %1277 = vmatpush1.msra.mxu0 0.0
        %1278 = vmatprep.subr.mxu0 0.0
        %1279 = vmatpush1.msra.mxu0 0.0
        %1280 = vmatprep.subr.mxu0 0.0
        %1281 = vmatpush1.msra.mxu0 0.0
        %1282 = vmatprep.subr.mxu0 0.0
        %1283 = vmatpush1.msra.mxu0 0.0
        %1284 = vmatprep.subr.mxu0 0.0
        %1285 = vmatpush1.msra.mxu0 0.0
        %1286 = vmatprep.subr.mxu0 0.0
        %1287 = vmatpush1.msra.mxu0 0.0
        %1288 = vmatprep.subr.mxu0 0.0
        %1289 = vmatpush1.msra.mxu0 0.0
        %1290 = vmatprep.mubr.f32.mxu0 0.0
        %1291 = vmatmul.mubr.f32.gmra.mrb[0].mxu0 %v1215
        %v1292 = vpop.f32.mrb[0].mxu0
        %v1293 = vadd.f32 %v1212, %v1292
        %v1294 = vpop.f32.mrb[0].mxu0
        %1295 = vmatprep.mubr.f32.mxu0 0.0
        %1296 = vmatmul.mubr.f32.gmra.mrb[0].mxu0 %v1218
        %v1297 = vpop.f32.mrb[0].mxu0
        %v1298 = vadd.f32 %v1212, %v1297
        %v1299 = vpop.f32.mrb[0].mxu0
        %1300 = vmatprep.mubr.f32.mxu0 0.0
        %1301 = vmatmul.mubr.f32.gmra.mrb[0].mxu0 %v1221
        %v1302 = vpop.f32.mrb[0].mxu0
        %v1303 = vadd.f32 %v1212, %v1302
        %v1304 = vpop.f32.mrb[0].mxu0
        %1305 = vmatprep.mubr.f32.mxu0 0.0
        %1306 = vmatmul.mubr.f32.gmra.mrb[0].mxu0 %v1224
        %v1307 = vpop.f32.mrb[0].mxu0
        %v1308 = vadd.f32 %v1212, %v1307
        %v1309 = vpop.f32.mrb[0].mxu0
        %1310 = vdwg.mxu0
        %v1311 = vadd.f32 %v439, %v1293
        %v1312 = vadd.f32 %v440, %v1298
        %v1313 = vadd.f32 %v441, %v1303
        %v1314 = vadd.f32 %v442, %v1308
        %v1315 = vsel %vm465, %v1311, 0.0
        %1316 = vadd.xlane.f32.xlu0 %v1315
        %v1317 = vpop.xlane.xlu0 %1316
        %v1318 = vsel %vm465, %v1312, 0.0
        %1319 = vadd.xlane.f32.xlu0 %v1318
        %v1320 = vpop.xlane.xlu0 %1319
        %v1321 = vsel %vm465, %v1313, 0.0
        %1322 = vadd.xlane.f32.xlu0 %v1321
        %v1323 = vpop.xlane.xlu0 %1322
        %v1324 = vsel %vm465, %v1314, 0.0
        %1325 = vadd.xlane.f32.xlu0 %v1324
        %v1326 = vpop.xlane.xlu0 %1325
        %v1327 = vmul.f32 %v1317, %v478
        %v1328 = vmul.f32 %v1320, %v478
        %v1329 = vmul.f32 %v1323, %v478
        %v1330 = vmul.f32 %v1326, %v478
        %v1331 = vsub.f32 %v1311, %v1327
        %v1332 = vsub.f32 %v1312, %v1328
        %v1333 = vsub.f32 %v1313, %v1329
        %v1334 = vsub.f32 %v1314, %v1330
        %v1335 = vmul.f32 %v1331, %v1331
        %v1336 = vmul.f32 %v1332, %v1332
        %v1337 = vmul.f32 %v1333, %v1333
        %v1338 = vmul.f32 %v1334, %v1334
        %v1339 = vsel %vm465, %v1335, 0.0
        %1340 = vadd.xlane.f32.xlu0 %v1339
        %v1341 = vpop.xlane.xlu0 %1340
        %v1342 = vsel %vm465, %v1336, 0.0
        %1343 = vadd.xlane.f32.xlu0 %v1342
        %v1344 = vpop.xlane.xlu0 %1343
        %v1345 = vsel %vm465, %v1337, 0.0
        %1346 = vadd.xlane.f32.xlu0 %v1345
        %v1347 = vpop.xlane.xlu0 %1346
        %v1348 = vsel %vm465, %v1338, 0.0
        %1349 = vadd.xlane.f32.xlu0 %v1348
        %v1350 = vpop.xlane.xlu0 %1349
        %v1351 = vmul.f32 %v1341, %v478
        %v1352 = vmul.f32 %v1344, %v478
        %v1353 = vmul.f32 %v1347, %v478
        %v1354 = vmul.f32 %v1350, %v478
        %v1355 = vadd.f32 %v1351, 1e-05
        %v1356 = vadd.f32 %v1352, 1e-05
        %v1357 = vadd.f32 %v1353, 1e-05
        %v1358 = vadd.f32 %v1354, 1e-05
        %v1359 = vrsqrt.pop %v1355
        %v1360 = vrsqrt.pop %v1356
        %v1361 = vrsqrt.pop %v1357
        %v1362 = vrsqrt.pop %v1358
        %v1363 = vmul.f32 %v1331, %v1359
        %v1364 = vmul.f32 %v1332, %v1360
        %v1365 = vmul.f32 %v1333, %v1361
        %v1366 = vmul.f32 %v1334, %v1362
        %v1368 = vlaneseq
        %v1369 = vshrl.u32 %v1368, 7
        %v1370 = vsub.s32 0, %v1369
        %v1371 = vrot.slane %v451, %v1370
        %v1373 = vmul.f32 %v1363, %v1371
        %v1374 = vmul.f32 %v1364, %v1371
        %v1375 = vmul.f32 %v1365, %v1371
        %v1376 = vmul.f32 %v1366, %v1371
        %v1378 = vlaneseq
        %v1379 = vshrl.u32 %v1378, 7
        %v1380 = vsub.s32 0, %v1379
        %v1381 = vrot.slane %v452, %v1380
        %v1383 = vadd.f32 %v1373, %v1381
        %v1384 = vadd.f32 %v1374, %v1381
        %v1385 = vadd.f32 %v1375, %v1381
        %v1386 = vadd.f32 %v1376, %v1381
        %v1388 = vlaneseq
        %v1389 = vshrl.u32 %v1388, 7
        %v1390 = vsub.s32 0, %v1389
        %v1391 = vrot.slane %v455, %v1390
        %v1394 = vsel %vm465, %v1383, 0
        %v1397 = vsel %vm465, %v1384, 0
        %v1400 = vsel %vm465, %v1385, 0
        %v1403 = vsel %vm465, %v1386, 0
        %1405 = vmatprep.subr.mxu0 0.0
        %1406 = vmatpush1.msra.mxu0 %v453
        %1407 = vmatprep.subr.mxu0 0.0
        %1408 = vmatpush1.msra.mxu0 %v454
        %1409 = vmatprep.subr.mxu0 0.0
        %1410 = vmatpush1.msra.mxu0 0.0
        %1411 = vmatprep.subr.mxu0 0.0
        %1412 = vmatpush1.msra.mxu0 0.0
        %1413 = vmatprep.subr.mxu0 0.0
        %1414 = vmatpush1.msra.mxu0 0.0
        %1415 = vmatprep.subr.mxu0 0.0
        %1416 = vmatpush1.msra.mxu0 0.0
        %1417 = vmatprep.subr.mxu0 0.0
        %1418 = vmatpush1.msra.mxu0 0.0
        %1419 = vmatprep.subr.mxu0 0.0
        %1420 = vmatpush1.msra.mxu0 0.0
        %1421 = vmatprep.subr.mxu0 0.0
        %1422 = vmatpush1.msra.mxu0 0.0
        %1423 = vmatprep.subr.mxu0 0.0
        %1424 = vmatpush1.msra.mxu0 0.0
        %1425 = vmatprep.subr.mxu0 0.0
        %1426 = vmatpush1.msra.mxu0 0.0
        %1427 = vmatprep.subr.mxu0 0.0
        %1428 = vmatpush1.msra.mxu0 0.0
        %1429 = vmatprep.subr.mxu0 0.0
        %1430 = vmatpush1.msra.mxu0 0.0
        %1431 = vmatprep.subr.mxu0 0.0
        %1432 = vmatpush1.msra.mxu0 0.0
        %1433 = vmatprep.subr.mxu0 0.0
        %1434 = vmatpush1.msra.mxu0 0.0
        %1435 = vmatprep.subr.mxu0 0.0
        %1436 = vmatpush1.msra.mxu0 0.0
        %1437 = vmatprep.subr.mxu0 0.0
        %1438 = vmatpush1.msra.mxu0 0.0
        %1439 = vmatprep.subr.mxu0 0.0
        %1440 = vmatpush1.msra.mxu0 0.0
        %1441 = vmatprep.subr.mxu0 0.0
        %1442 = vmatpush1.msra.mxu0 0.0
        %1443 = vmatprep.subr.mxu0 0.0
        %1444 = vmatpush1.msra.mxu0 0.0
        %1445 = vmatprep.subr.mxu0 0.0
        %1446 = vmatpush1.msra.mxu0 0.0
        %1447 = vmatprep.subr.mxu0 0.0
        %1448 = vmatpush1.msra.mxu0 0.0
        %1449 = vmatprep.subr.mxu0 0.0
        %1450 = vmatpush1.msra.mxu0 0.0
        %1451 = vmatprep.subr.mxu0 0.0
        %1452 = vmatpush1.msra.mxu0 0.0
        %1453 = vmatprep.subr.mxu0 0.0
        %1454 = vmatpush1.msra.mxu0 0.0
        %1455 = vmatprep.subr.mxu0 0.0
        %1456 = vmatpush1.msra.mxu0 0.0
        %1457 = vmatprep.subr.mxu0 0.0
        %1458 = vmatpush1.msra.mxu0 0.0
        %1459 = vmatprep.subr.mxu0 0.0
        %1460 = vmatpush1.msra.mxu0 0.0
        %1461 = vmatprep.subr.mxu0 0.0
        %1462 = vmatpush1.msra.mxu0 0.0
        %1463 = vmatprep.subr.mxu0 0.0
        %1464 = vmatpush1.msra.mxu0 0.0
        %1465 = vmatprep.subr.mxu0 0.0
        %1466 = vmatpush1.msra.mxu0 0.0
        %1467 = vmatprep.subr.mxu0 0.0
        %1468 = vmatpush1.msra.mxu0 0.0
        %1469 = vmatprep.mubr.f32.mxu0 0.0
        %1470 = vmatmul.mubr.f32.gmra.mrb[0].mxu0 %v1394
        %v1471 = vpop.f32.mrb[0].mxu0
        %v1472 = vadd.f32 %v1391, %v1471
        %v1473 = vpop.f32.mrb[0].mxu0
        %1474 = vmatprep.mubr.f32.mxu0 0.0
        %1475 = vmatmul.mubr.f32.gmra.mrb[0].mxu0 %v1397
        %v1476 = vpop.f32.mrb[0].mxu0
        %v1477 = vadd.f32 %v1391, %v1476
        %v1478 = vpop.f32.mrb[0].mxu0
        %1479 = vmatprep.mubr.f32.mxu0 0.0
        %1480 = vmatmul.mubr.f32.gmra.mrb[0].mxu0 %v1400
        %v1481 = vpop.f32.mrb[0].mxu0
        %v1482 = vadd.f32 %v1391, %v1481
        %v1483 = vpop.f32.mrb[0].mxu0
        %1484 = vmatprep.mubr.f32.mxu0 0.0
        %1485 = vmatmul.mubr.f32.gmra.mrb[0].mxu0 %v1403
        %v1486 = vpop.f32.mrb[0].mxu0
        %v1487 = vadd.f32 %v1391, %v1486
        %v1488 = vpop.f32.mrb[0].mxu0
        %1489 = vdwg.mxu0
        %v1490 = vmul.f32 %v1472, %v1472
        %v1491 = vmul.f32 %v1477, %v1477
        %v1492 = vmul.f32 %v1482, %v1482
        %v1493 = vmul.f32 %v1487, %v1487
        %v1494 = vmul.f32 %v1472, %v1490
        %v1495 = vmul.f32 %v1477, %v1491
        %v1496 = vmul.f32 %v1482, %v1492
        %v1497 = vmul.f32 %v1487, %v1493
        %v1498 = vmul.f32 %v1494, 0.044715
        %v1499 = vmul.f32 %v1495, 0.044715
        %v1500 = vmul.f32 %v1496, 0.044715
        %v1501 = vmul.f32 %v1497, 0.044715
        %v1502 = vadd.f32 %v1472, %v1498
        %v1503 = vadd.f32 %v1477, %v1499
        %v1504 = vadd.f32 %v1482, %v1500
        %v1505 = vadd.f32 %v1487, %v1501
        %v1506 = vmul.f32 %v1502, 0.7978846
        %v1507 = vmul.f32 %v1503, 0.7978846
        %v1508 = vmul.f32 %v1504, 0.7978846
        %v1509 = vmul.f32 %v1505, 0.7978846
        %v1510 = vtanh.pop %v1506
        %v1511 = vtanh.pop %v1507
        %v1512 = vtanh.pop %v1508
        %v1513 = vtanh.pop %v1509
        %v1514 = vadd.f32 %v1510, 1.0
        %v1515 = vadd.f32 %v1511, 1.0
        %v1516 = vadd.f32 %v1512, 1.0
        %v1517 = vadd.f32 %v1513, 1.0
        %v1518 = vmul.f32 %v1514, 0.5
        %v1519 = vmul.f32 %v1515, 0.5
        %v1520 = vmul.f32 %v1516, 0.5
        %v1521 = vmul.f32 %v1517, 0.5
        %v1522 = vmul.f32 %v1472, %v1518
        %v1523 = vmul.f32 %v1477, %v1519
        %v1524 = vmul.f32 %v1482, %v1520
        %v1525 = vmul.f32 %v1487, %v1521
        %v1527 = vlaneseq
        %v1528 = vshrl.u32 %v1527, 7
        %v1529 = vsub.s32 0, %v1528
        %v1530 = vrot.slane %v464, %v1529
        %vm1532 = vcmask 523264
        %v1534 = vsel %vm1532, %v1522, 0
        %v1537 = vsel %vm1532, %v1523, 0
        %v1540 = vsel %vm1532, %v1524, 0
        %v1543 = vsel %vm1532, %v1525, 0
        %1545 = vmatprep.subr.mxu0 0.0
        %1546 = vmatpush1.msra.mxu0 %v456
        %1547 = vmatprep.subr.mxu0 0.0
        %1548 = vmatpush1.msra.mxu0 %v457
        %1549 = vmatprep.subr.mxu0 0.0
        %1550 = vmatpush1.msra.mxu0 %v458
        %1551 = vmatprep.subr.mxu0 0.0
        %1552 = vmatpush1.msra.mxu0 %v459
        %1553 = vmatprep.subr.mxu0 0.0
        %1554 = vmatpush1.msra.mxu0 %v460
        %1555 = vmatprep.subr.mxu0 0.0
        %1556 = vmatpush1.msra.mxu0 %v461
        %1557 = vmatprep.subr.mxu0 0.0
        %1558 = vmatpush1.msra.mxu0 %v462
        %1559 = vmatprep.subr.mxu0 0.0
        %1560 = vmatpush1.msra.mxu0 %v463
        %1561 = vmatprep.subr.mxu0 0.0
        %1562 = vmatpush1.msra.mxu0 0.0
        %1563 = vmatprep.subr.mxu0 0.0
        %1564 = vmatpush1.msra.mxu0 0.0
        %1565 = vmatprep.subr.mxu0 0.0
        %1566 = vmatpush1.msra.mxu0 0.0
        %1567 = vmatprep.subr.mxu0 0.0
        %1568 = vmatpush1.msra.mxu0 0.0
        %1569 = vmatprep.subr.mxu0 0.0
        %1570 = vmatpush1.msra.mxu0 0.0
        %1571 = vmatprep.subr.mxu0 0.0
        %1572 = vmatpush1.msra.mxu0 0.0
        %1573 = vmatprep.subr.mxu0 0.0
        %1574 = vmatpush1.msra.mxu0 0.0
        %1575 = vmatprep.subr.mxu0 0.0
        %1576 = vmatpush1.msra.mxu0 0.0
        %1577 = vmatprep.subr.mxu0 0.0
        %1578 = vmatpush1.msra.mxu0 0.0
        %1579 = vmatprep.subr.mxu0 0.0
        %1580 = vmatpush1.msra.mxu0 0.0
        %1581 = vmatprep.subr.mxu0 0.0
        %1582 = vmatpush1.msra.mxu0 0.0
        %1583 = vmatprep.subr.mxu0 0.0
        %1584 = vmatpush1.msra.mxu0 0.0
        %1585 = vmatprep.subr.mxu0 0.0
        %1586 = vmatpush1.msra.mxu0 0.0
        %1587 = vmatprep.subr.mxu0 0.0
        %1588 = vmatpush1.msra.mxu0 0.0
        %1589 = vmatprep.subr.mxu0 0.0
        %1590 = vmatpush1.msra.mxu0 0.0
        %1591 = vmatprep.subr.mxu0 0.0
        %1592 = vmatpush1.msra.mxu0 0.0
        %1593 = vmatprep.subr.mxu0 0.0
        %1594 = vmatpush1.msra.mxu0 0.0
        %1595 = vmatprep.subr.mxu0 0.0
        %1596 = vmatpush1.msra.mxu0 0.0
        %1597 = vmatprep.subr.mxu0 0.0
        %1598 = vmatpush1.msra.mxu0 0.0
        %1599 = vmatprep.subr.mxu0 0.0
        %1600 = vmatpush1.msra.mxu0 0.0
        %1601 = vmatprep.subr.mxu0 0.0
        %1602 = vmatpush1.msra.mxu0 0.0
        %1603 = vmatprep.subr.mxu0 0.0
        %1604 = vmatpush1.msra.mxu0 0.0
        %1605 = vmatprep.subr.mxu0 0.0
        %1606 = vmatpush1.msra.mxu0 0.0
        %1607 = vmatprep.subr.mxu0 0.0
        %1608 = vmatpush1.msra.mxu0 0.0
        %1609 = vmatprep.mubr.f32.mxu0 0.0
        %1610 = vmatmul.mubr.f32.gmra.mrb[0].mxu0 %v1534
        %v1611 = vpop.f32.mrb[0].mxu0
        %v1612 = vadd.f32 %v1530, %v1611
        %v1613 = vpop.f32.mrb[0].mxu0
        %1614 = vmatprep.mubr.f32.mxu0 0.0
        %1615 = vmatmul.mubr.f32.gmra.mrb[0].mxu0 %v1537
        %v1616 = vpop.f32.mrb[0].mxu0
        %v1617 = vadd.f32 %v1530, %v1616
        %v1618 = vpop.f32.mrb[0].mxu0
        %1619 = vmatprep.mubr.f32.mxu0 0.0
        %1620 = vmatmul.mubr.f32.gmra.mrb[0].mxu0 %v1540
        %v1621 = vpop.f32.mrb[0].mxu0
        %v1622 = vadd.f32 %v1530, %v1621
        %v1623 = vpop.f32.mrb[0].mxu0
        %1624 = vmatprep.mubr.f32.mxu0 0.0
        %1625 = vmatmul.mubr.f32.gmra.mrb[0].mxu0 %v1543
        %v1626 = vpop.f32.mrb[0].mxu0
        %v1627 = vadd.f32 %v1530, %v1626
        %v1628 = vpop.f32.mrb[0].mxu0
        %1629 = vdwg.mxu0
        %v1630 = vadd.f32 %v1311, %v1612
        %v1631 = vadd.f32 %v1312, %v1617
        %v1632 = vadd.f32 %v1313, %v1622
        %v1633 = vadd.f32 %v1314, %v1627
        %1634 = vst.msk [vmem:[%s433] sm:$0xff] %vm465, %v1630
        %1635 = vst.msk [vmem:[%s433 + $0x8] sm:$0xff] %vm465, %v1631
        %1636 = vst.msk [vmem:[%s433 + $0x10] sm:$0xff] %vm465, %v1632
        %1637 = vst.msk [vmem:[%s433 + $0x18] sm:$0xff] %vm465, %v1633
        %s1638 = sand.u32 %s313, 1
        %s1639 = scalar_lea.sflag [#allocation3], %s1638
        %s1640 = sand.u32 %s313, 1
        %s1641 = smul.addr %s1640, 32
        %s1642 = scalar_lea.vmem [#allocation2], %s1641
        // Predicated region
        $region73: #{leap_encoder_forward.3} parent=71 // pred_check
          %p1643 = pneg %p323
        $region74: #{leap_encoder_forward.3} parent=71 // pred_check_branch
          %1645 = sbr.rel (%p1643) target = $region76
        $region75: #{leap_encoder_forward.3} parent=71 // pred_region
          %s1647 = ssub.s32 512, 512
          %1648 = vsyncadd %s1639, %s1647
          %s1649 = smul.addr %s27, 4
          %s1650 = smul.addr %s1649, 128
          %s1651 = scalar_lea.hbm %s13, %s1650
          %s1652 = sshll.u32 %s1642, 4
          %s1653 = int_to_ptr.vmem [resolvable:$true] %s1652
          %1658 = dma.vmem_to_hbm [thread:$0]  %s1653, 512, %s1651, %s1639, 128, 128, 8
        $region76: #{leap_encoder_forward.3} parent=71 // pred_fallthru
          _
      $region72: #{leap_encoder_forward.3} parent=5 // pred_fallthru
        _
      %p1659 = scmp.le.s32.totalorder 2, %s22
      // Predicated region
      $region77: #{leap_encoder_forward.3} parent=5 // pred_check
        %p1660 = pneg %p1659
      $region78: #{leap_encoder_forward.3} parent=5 // pred_check_branch
        %1662 = sbr.rel (%p1660) target = $region80
      $region79: #{leap_encoder_forward.3} parent=5 // pred_region
        %s1663 = ssub.s32 %s22, 2
        // Predicated region
        $region81: #{leap_encoder_forward.3} parent=79 // pred_check
          %p1664 = pneg %p329
        $region82: #{leap_encoder_forward.3} parent=79 // pred_check_branch
          %1666 = sbr.rel (%p1664) target = $region84
        $region83: #{leap_encoder_forward.3} parent=79 // pred_region
          %s1667 = sand.u32 %s314, 1
          %s1668 = scalar_lea.sflag [#allocation3], %s1667
          %s1669 = sand.u32 %s314, 1
          %s1670 = smul.addr %s1669, 32
          %s1671 = scalar_lea.vmem [#allocation2], %s1670
          %1672 = dma.done %s1668, 512
        $region84: #{leap_encoder_forward.3} parent=79 // pred_fallthru
          _
      $region80: #{leap_encoder_forward.3} parent=5 // pred_fallthru
        _
    $region6: #{leap_encoder_forward.3} parent=1 // loop_footer
      %s26 = sadd.s32 1, %s22
    $region7: #{leap_encoder_forward.3} parent=1 // loop_footer_branch
      %21 = sbr.rel target = $region3
    $region8: #{leap_encoder_forward.3} parent=1 // loop_exit
      _
    %1673 = vsyncpa [#allocation3], 1
    %s1674 = scalar_lea.sflag [#allocation3], 1
    %1675 = vsyncpa %s1674, 1

// kernel: leap_encoder_forward.2
$region0: #{leap_encoder_forward.2}
  #allocation0 [shape = 'u32[]', space=smem, size = 0x4, offset = 0x4, fixed_abs, tag = 'smem constant byte address 0x4 - core index']
  #allocation1 [shape = 'u32[144,128]{1,0:T(1,128)}', space=vmem, size = 0x12000, scoped, tag = 'internal scratch']
  %s0 = inlined_call_operand.vmem [shape: f32[4,16,48], index: 0, kind: input, shape index: {}]
  %s1 = inlined_call_operand.vmem [shape: f32[48,32], index: 1, kind: input, shape index: {}]
  %s2 = inlined_call_operand.vmem [shape: f32[1,32], index: 2, kind: input, shape index: {}]
  %s3 = inlined_call_operand.vmem [shape: f32[16,32], index: 3, kind: input, shape index: {}]
  %s4 = inlined_call_operand.vmem [shape: f32[1,32], index: 4, kind: input, shape index: {}]
  %s5 = inlined_call_operand.vmem [shape: f32[1,32], index: 5, kind: input, shape index: {}]
  %s6 = inlined_call_operand.vmem [shape: f32[32,96], index: 6, kind: input, shape index: {}]
  %s7 = inlined_call_operand.vmem [shape: f32[1,96], index: 7, kind: input, shape index: {}]
  %s8 = inlined_call_operand.vmem [shape: f32[32,32], index: 8, kind: input, shape index: {}]
  %s9 = inlined_call_operand.vmem [shape: f32[1,32], index: 9, kind: input, shape index: {}]
  %s10 = inlined_call_operand.vmem [shape: f32[1,32], index: 10, kind: input, shape index: {}]
  %s11 = inlined_call_operand.vmem [shape: f32[1,32], index: 11, kind: input, shape index: {}]
  %s12 = inlined_call_operand.vmem [shape: f32[32,128], index: 12, kind: input, shape index: {}]
  %s13 = inlined_call_operand.vmem [shape: f32[1,128], index: 13, kind: input, shape index: {}]
  %s14 = inlined_call_operand.vmem [shape: f32[128,32], index: 14, kind: input, shape index: {}]
  %s15 = inlined_call_operand.vmem [shape: f32[1,32], index: 15, kind: input, shape index: {}]
  %s16 = inlined_call_operand.vmem [shape: f32[32,16], index: 16, kind: input, shape index: {}]
  %s17 = inlined_call_operand.vmem [shape: f32[1,16], index: 17, kind: input, shape index: {}]
  %s18 = inlined_call_operand.vmem [shape: f32[4,16,16], index: 18, kind: output, shape index: {}]
  %s19 = sld [smem:[#allocation0]]
  $region105: #{leap_encoder_forward.2} parent=0
    _
  %s21 = ssub.s32 1, %s19
  %s22 = scalar_select 0, %s21, %s19
  loop: start=0, step=1, limit=6
  $region2: #{leap_encoder_forward.2} parent=0 // loop_pre_header
    _
  $region3: #{leap_encoder_forward.2} parent=0 // loop_header
    %s24 = sphi 0, %s28
    %p25 = scmp.ge.s32.totalorder %s24, 6
    %s34 = sphi 0, %s36
    %s37 = sphi 0, %s34
    %s38 = sphi 0, %s37
    %s54 = sphi 0, %s38
    %s58 = sphi 0, %s58
    %s60 = sphi 0, %s58
    %s61 = sphi 0, %s60
    %s75 = sphi 0, %s61
    %s79 = sphi 0, %s79
    %s81 = sphi 0, %s79
    %s82 = sphi 0, %s81
    %s96 = sphi 0, %s82
    %s100 = sphi 0, %s100
    %s102 = sphi 0, %s100
    %s103 = sphi 0, %s102
    %s117 = sphi 0, %s103
    %s121 = sphi 0, %s121
    %s123 = sphi 0, %s121
    %s124 = sphi 0, %s123
    %s138 = sphi 0, %s124
    %s142 = sphi 0, %s142
    %s144 = sphi 0, %s142
    %s145 = sphi 0, %s144
    %s159 = sphi 0, %s145
    %s163 = sphi 0, %s163
    %s165 = sphi 0, %s163
    %s166 = sphi 0, %s165
    %s180 = sphi 0, %s166
    %s184 = sphi 0, %s184
    %s186 = sphi 0, %s184
    %s187 = sphi 0, %s186
    %s201 = sphi 0, %s187
    %s205 = sphi 0, %s205
    %s207 = sphi 0, %s205
    %s208 = sphi 0, %s207
    %s222 = sphi 0, %s208
    %s226 = sphi 0, %s226
    %s228 = sphi 0, %s226
    %s229 = sphi 0, %s228
    %s243 = sphi 0, %s229
    %s247 = sphi 0, %s247
    %s249 = sphi 0, %s247
    %s250 = sphi 0, %s249
    %s264 = sphi 0, %s250
    %s268 = sphi 0, %s268
    %s270 = sphi 0, %s268
    %s271 = sphi 0, %s270
    %s285 = sphi 0, %s271
    %s289 = sphi 0, %s289
    %s291 = sphi 0, %s289
    %s292 = sphi 0, %s291
    %s306 = sphi 0, %s292
    %s310 = sphi 0, %s310
    %s312 = sphi 0, %s310
    %s313 = sphi 0, %s312
    %s327 = sphi 0, %s313
    %s331 = sphi 0, %s331
    %s333 = sphi 0, %s331
    %s334 = sphi 0, %s333
    %s348 = sphi 0, %s334
    %s352 = sphi 0, %s352
    %s354 = sphi 0, %s352
    %s355 = sphi 0, %s354
    %s369 = sphi 0, %s355
    %s373 = sphi 0, %s373
    %s375 = sphi 0, %s373
    %s376 = sphi 0, %s375
    %s390 = sphi 0, %s376
    %s394 = sphi 0, %s394
    %s396 = sphi 0, %s394
    %s397 = sphi 0, %s396
    %s411 = sphi 0, %s397
    %s417 = sphi 0, %s419
    %s420 = sphi 0, %s417
    %s421 = sphi 0, %s420
    %s437 = sphi 0, %s421
  $region4: #{leap_encoder_forward.2} parent=0 // loop_header_branch
    %27 = sbr.rel (%p25) target = $region8
  $region5: #{leap_encoder_forward.2} parent=0 // loop_body
    %s29 = ssub.s32 %s24, 1
    %s30 = ssub.s32 %s24, 2
    %s31 = sadd.s32 %s24, 1
    %s32 = ssub.s32 %s24, %s31
    %p33 = scmp.eq.s32.totalorder %s32, 0
    %s35 = sadd.s32 %s34, 1
    %s36 = scalar_select %p33, %s34, %s35
    %p39 = pneg %p33
    %p40 = scmp.eq.s32.totalorder %s24, 3
    %p41 = por %p39, %p40
    %p42 = scmp.ne.s32.totalorder %s34, %s37
    %p43 = scmp.eq.s32.totalorder %s24, 0
    %p44 = por %p42, %p43
    %p45 = scmp.ne.s32.totalorder %s34, %s37
    %p46 = scmp.eq.s32.totalorder %s29, 3
    %p47 = por %p45, %p46
    %p48 = scmp.ne.s32.totalorder %s37, %s38
    %p49 = scmp.eq.s32.totalorder %s29, 0
    %p50 = por %p48, %p49
    %p51 = scmp.ne.s32.totalorder %s37, %s38
    %p52 = scmp.eq.s32.totalorder %s30, 3
    %p53 = por %p51, %p52
    %p55 = scmp.ne.s32.totalorder %s38, %s54
    %p56 = scmp.eq.s32.totalorder %s30, 0
    %p57 = por %p55, %p56
    %s59 = sadd.s32 %s58, 1
    %p62 = scmp.eq.s32.totalorder %s24, 3
    %p63 = scmp.ne.s32.totalorder %s58, %s60
    %p64 = scmp.eq.s32.totalorder %s24, 0
    %p65 = por %p63, %p64
    %p66 = scmp.ne.s32.totalorder %s58, %s60
    %p67 = scmp.eq.s32.totalorder %s29, 3
    %p68 = por %p66, %p67
    %p69 = scmp.ne.s32.totalorder %s60, %s61
    %p70 = scmp.eq.s32.totalorder %s29, 0
    %p71 = por %p69, %p70
    %p72 = scmp.ne.s32.totalorder %s60, %s61
    %p73 = scmp.eq.s32.totalorder %s30, 3
    %p74 = por %p72, %p73
    %p76 = scmp.ne.s32.totalorder %s61, %s75
    %p77 = scmp.eq.s32.totalorder %s30, 0
    %p78 = por %p76, %p77
    %s80 = sadd.s32 %s79, 1
    %p83 = scmp.eq.s32.totalorder %s24, 3
    %p84 = scmp.ne.s32.totalorder %s79, %s81
    %p85 = scmp.eq.s32.totalorder %s24, 0
    %p86 = por %p84, %p85
    %p87 = scmp.ne.s32.totalorder %s79, %s81
    %p88 = scmp.eq.s32.totalorder %s29, 3
    %p89 = por %p87, %p88
    %p90 = scmp.ne.s32.totalorder %s81, %s82
    %p91 = scmp.eq.s32.totalorder %s29, 0
    %p92 = por %p90, %p91
    %p93 = scmp.ne.s32.totalorder %s81, %s82
    %p94 = scmp.eq.s32.totalorder %s30, 3
    %p95 = por %p93, %p94
    %p97 = scmp.ne.s32.totalorder %s82, %s96
    %p98 = scmp.eq.s32.totalorder %s30, 0
    %p99 = por %p97, %p98
    %s101 = sadd.s32 %s100, 1
    %p104 = scmp.eq.s32.totalorder %s24, 3
    %p105 = scmp.ne.s32.totalorder %s100, %s102
    %p106 = scmp.eq.s32.totalorder %s24, 0
    %p107 = por %p105, %p106
    %p108 = scmp.ne.s32.totalorder %s100, %s102
    %p109 = scmp.eq.s32.totalorder %s29, 3
    %p110 = por %p108, %p109
    %p111 = scmp.ne.s32.totalorder %s102, %s103
    %p112 = scmp.eq.s32.totalorder %s29, 0
    %p113 = por %p111, %p112
    %p114 = scmp.ne.s32.totalorder %s102, %s103
    %p115 = scmp.eq.s32.totalorder %s30, 3
    %p116 = por %p114, %p115
    %p118 = scmp.ne.s32.totalorder %s103, %s117
    %p119 = scmp.eq.s32.totalorder %s30, 0
    %p120 = por %p118, %p119
    %s122 = sadd.s32 %s121, 1
    %p125 = scmp.eq.s32.totalorder %s24, 3
    %p126 = scmp.ne.s32.totalorder %s121, %s123
    %p127 = scmp.eq.s32.totalorder %s24, 0
    %p128 = por %p126, %p127
    %p129 = scmp.ne.s32.totalorder %s121, %s123
    %p130 = scmp.eq.s32.totalorder %s29, 3
    %p131 = por %p129, %p130
    %p132 = scmp.ne.s32.totalorder %s123, %s124
    %p133 = scmp.eq.s32.totalorder %s29, 0
    %p134 = por %p132, %p133
    %p135 = scmp.ne.s32.totalorder %s123, %s124
    %p136 = scmp.eq.s32.totalorder %s30, 3
    %p137 = por %p135, %p136
    %p139 = scmp.ne.s32.totalorder %s124, %s138
    %p140 = scmp.eq.s32.totalorder %s30, 0
    %p141 = por %p139, %p140
    %s143 = sadd.s32 %s142, 1
    %p146 = scmp.eq.s32.totalorder %s24, 3
    %p147 = scmp.ne.s32.totalorder %s142, %s144
    %p148 = scmp.eq.s32.totalorder %s24, 0
    %p149 = por %p147, %p148
    %p150 = scmp.ne.s32.totalorder %s142, %s144
    %p151 = scmp.eq.s32.totalorder %s29, 3
    %p152 = por %p150, %p151
    %p153 = scmp.ne.s32.totalorder %s144, %s145
    %p154 = scmp.eq.s32.totalorder %s29, 0
    %p155 = por %p153, %p154
    %p156 = scmp.ne.s32.totalorder %s144, %s145
    %p157 = scmp.eq.s32.totalorder %s30, 3
    %p158 = por %p156, %p157
    %p160 = scmp.ne.s32.totalorder %s145, %s159
    %p161 = scmp.eq.s32.totalorder %s30, 0
    %p162 = por %p160, %p161
    %s164 = sadd.s32 %s163, 1
    %p167 = scmp.eq.s32.totalorder %s24, 3
    %p168 = scmp.ne.s32.totalorder %s163, %s165
    %p169 = scmp.eq.s32.totalorder %s24, 0
    %p170 = por %p168, %p169
    %p171 = scmp.ne.s32.totalorder %s163, %s165
    %p172 = scmp.eq.s32.totalorder %s29, 3
    %p173 = por %p171, %p172
    %p174 = scmp.ne.s32.totalorder %s165, %s166
    %p175 = scmp.eq.s32.totalorder %s29, 0
    %p176 = por %p174, %p175
    %p177 = scmp.ne.s32.totalorder %s165, %s166
    %p178 = scmp.eq.s32.totalorder %s30, 3
    %p179 = por %p177, %p178
    %p181 = scmp.ne.s32.totalorder %s166, %s180
    %p182 = scmp.eq.s32.totalorder %s30, 0
    %p183 = por %p181, %p182
    %s185 = sadd.s32 %s184, 1
    %p188 = scmp.eq.s32.totalorder %s24, 3
    %p189 = scmp.ne.s32.totalorder %s184, %s186
    %p190 = scmp.eq.s32.totalorder %s24, 0
    %p191 = por %p189, %p190
    %p192 = scmp.ne.s32.totalorder %s184, %s186
    %p193 = scmp.eq.s32.totalorder %s29, 3
    %p194 = por %p192, %p193
    %p195 = scmp.ne.s32.totalorder %s186, %s187
    %p196 = scmp.eq.s32.totalorder %s29, 0
    %p197 = por %p195, %p196
    %p198 = scmp.ne.s32.totalorder %s186, %s187
    %p199 = scmp.eq.s32.totalorder %s30, 3
    %p200 = por %p198, %p199
    %p202 = scmp.ne.s32.totalorder %s187, %s201
    %p203 = scmp.eq.s32.totalorder %s30, 0
    %p204 = por %p202, %p203
    %s206 = sadd.s32 %s205, 1
    %p209 = scmp.eq.s32.totalorder %s24, 3
    %p210 = scmp.ne.s32.totalorder %s205, %s207
    %p211 = scmp.eq.s32.totalorder %s24, 0
    %p212 = por %p210, %p211
    %p213 = scmp.ne.s32.totalorder %s205, %s207
    %p214 = scmp.eq.s32.totalorder %s29, 3
    %p215 = por %p213, %p214
    %p216 = scmp.ne.s32.totalorder %s207, %s208
    %p217 = scmp.eq.s32.totalorder %s29, 0
    %p218 = por %p216, %p217
    %p219 = scmp.ne.s32.totalorder %s207, %s208
    %p220 = scmp.eq.s32.totalorder %s30, 3
    %p221 = por %p219, %p220
    %p223 = scmp.ne.s32.totalorder %s208, %s222
    %p224 = scmp.eq.s32.totalorder %s30, 0
    %p225 = por %p223, %p224
    %s227 = sadd.s32 %s226, 1
    %p230 = scmp.eq.s32.totalorder %s24, 3
    %p231 = scmp.ne.s32.totalorder %s226, %s228
    %p232 = scmp.eq.s32.totalorder %s24, 0
    %p233 = por %p231, %p232
    %p234 = scmp.ne.s32.totalorder %s226, %s228
    %p235 = scmp.eq.s32.totalorder %s29, 3
    %p236 = por %p234, %p235
    %p237 = scmp.ne.s32.totalorder %s228, %s229
    %p238 = scmp.eq.s32.totalorder %s29, 0
    %p239 = por %p237, %p238
    %p240 = scmp.ne.s32.totalorder %s228, %s229
    %p241 = scmp.eq.s32.totalorder %s30, 3
    %p242 = por %p240, %p241
    %p244 = scmp.ne.s32.totalorder %s229, %s243
    %p245 = scmp.eq.s32.totalorder %s30, 0
    %p246 = por %p244, %p245
    %s248 = sadd.s32 %s247, 1
    %p251 = scmp.eq.s32.totalorder %s24, 3
    %p252 = scmp.ne.s32.totalorder %s247, %s249
    %p253 = scmp.eq.s32.totalorder %s24, 0
    %p254 = por %p252, %p253
    %p255 = scmp.ne.s32.totalorder %s247, %s249
    %p256 = scmp.eq.s32.totalorder %s29, 3
    %p257 = por %p255, %p256
    %p258 = scmp.ne.s32.totalorder %s249, %s250
    %p259 = scmp.eq.s32.totalorder %s29, 0
    %p260 = por %p258, %p259
    %p261 = scmp.ne.s32.totalorder %s249, %s250
    %p262 = scmp.eq.s32.totalorder %s30, 3
    %p263 = por %p261, %p262
    %p265 = scmp.ne.s32.totalorder %s250, %s264
    %p266 = scmp.eq.s32.totalorder %s30, 0
    %p267 = por %p265, %p266
    %s269 = sadd.s32 %s268, 1
    %p272 = scmp.eq.s32.totalorder %s24, 3
    %p273 = scmp.ne.s32.totalorder %s268, %s270
    %p274 = scmp.eq.s32.totalorder %s24, 0
    %p275 = por %p273, %p274
    %p276 = scmp.ne.s32.totalorder %s268, %s270
    %p277 = scmp.eq.s32.totalorder %s29, 3
    %p278 = por %p276, %p277
    %p279 = scmp.ne.s32.totalorder %s270, %s271
    %p280 = scmp.eq.s32.totalorder %s29, 0
    %p281 = por %p279, %p280
    %p282 = scmp.ne.s32.totalorder %s270, %s271
    %p283 = scmp.eq.s32.totalorder %s30, 3
    %p284 = por %p282, %p283
    %p286 = scmp.ne.s32.totalorder %s271, %s285
    %p287 = scmp.eq.s32.totalorder %s30, 0
    %p288 = por %p286, %p287
    %s290 = sadd.s32 %s289, 1
    %p293 = scmp.eq.s32.totalorder %s24, 3
    %p294 = scmp.ne.s32.totalorder %s289, %s291
    %p295 = scmp.eq.s32.totalorder %s24, 0
    %p296 = por %p294, %p295
    %p297 = scmp.ne.s32.totalorder %s289, %s291
    %p298 = scmp.eq.s32.totalorder %s29, 3
    %p299 = por %p297, %p298
    %p300 = scmp.ne.s32.totalorder %s291, %s292
    %p301 = scmp.eq.s32.totalorder %s29, 0
    %p302 = por %p300, %p301
    %p303 = scmp.ne.s32.totalorder %s291, %s292
    %p304 = scmp.eq.s32.totalorder %s30, 3
    %p305 = por %p303, %p304
    %p307 = scmp.ne.s32.totalorder %s292, %s306
    %p308 = scmp.eq.s32.totalorder %s30, 0
    %p309 = por %p307, %p308
    %s311 = sadd.s32 %s310, 1
    %p314 = scmp.eq.s32.totalorder %s24, 3
    %p315 = scmp.ne.s32.totalorder %s310, %s312
    %p316 = scmp.eq.s32.totalorder %s24, 0
    %p317 = por %p315, %p316
    %p318 = scmp.ne.s32.totalorder %s310, %s312
    %p319 = scmp.eq.s32.totalorder %s29, 3
    %p320 = por %p318, %p319
    %p321 = scmp.ne.s32.totalorder %s312, %s313
    %p322 = scmp.eq.s32.totalorder %s29, 0
    %p323 = por %p321, %p322
    %p324 = scmp.ne.s32.totalorder %s312, %s313
    %p325 = scmp.eq.s32.totalorder %s30, 3
    %p326 = por %p324, %p325
    %p328 = scmp.ne.s32.totalorder %s313, %s327
    %p329 = scmp.eq.s32.totalorder %s30, 0
    %p330 = por %p328, %p329
    %s332 = sadd.s32 %s331, 1
    %p335 = scmp.eq.s32.totalorder %s24, 3
    %p336 = scmp.ne.s32.totalorder %s331, %s333
    %p337 = scmp.eq.s32.totalorder %s24, 0
    %p338 = por %p336, %p337
    %p339 = scmp.ne.s32.totalorder %s331, %s333
    %p340 = scmp.eq.s32.totalorder %s29, 3
    %p341 = por %p339, %p340
    %p342 = scmp.ne.s32.totalorder %s333, %s334
    %p343 = scmp.eq.s32.totalorder %s29, 0
    %p344 = por %p342, %p343
    %p345 = scmp.ne.s32.totalorder %s333, %s334
    %p346 = scmp.eq.s32.totalorder %s30, 3
    %p347 = por %p345, %p346
    %p349 = scmp.ne.s32.totalorder %s334, %s348
    %p350 = scmp.eq.s32.totalorder %s30, 0
    %p351 = por %p349, %p350
    %s353 = sadd.s32 %s352, 1
    %p356 = scmp.eq.s32.totalorder %s24, 3
    %p357 = scmp.ne.s32.totalorder %s352, %s354
    %p358 = scmp.eq.s32.totalorder %s24, 0
    %p359 = por %p357, %p358
    %p360 = scmp.ne.s32.totalorder %s352, %s354
    %p361 = scmp.eq.s32.totalorder %s29, 3
    %p362 = por %p360, %p361
    %p363 = scmp.ne.s32.totalorder %s354, %s355
    %p364 = scmp.eq.s32.totalorder %s29, 0
    %p365 = por %p363, %p364
    %p366 = scmp.ne.s32.totalorder %s354, %s355
    %p367 = scmp.eq.s32.totalorder %s30, 3
    %p368 = por %p366, %p367
    %p370 = scmp.ne.s32.totalorder %s355, %s369
    %p371 = scmp.eq.s32.totalorder %s30, 0
    %p372 = por %p370, %p371
    %s374 = sadd.s32 %s373, 1
    %p377 = scmp.eq.s32.totalorder %s24, 3
    %p378 = scmp.ne.s32.totalorder %s373, %s375
    %p379 = scmp.eq.s32.totalorder %s24, 0
    %p380 = por %p378, %p379
    %p381 = scmp.ne.s32.totalorder %s373, %s375
    %p382 = scmp.eq.s32.totalorder %s29, 3
    %p383 = por %p381, %p382
    %p384 = scmp.ne.s32.totalorder %s375, %s376
    %p385 = scmp.eq.s32.totalorder %s29, 0
    %p386 = por %p384, %p385
    %p387 = scmp.ne.s32.totalorder %s375, %s376
    %p388 = scmp.eq.s32.totalorder %s30, 3
    %p389 = por %p387, %p388
    %p391 = scmp.ne.s32.totalorder %s376, %s390
    %p392 = scmp.eq.s32.totalorder %s30, 0
    %p393 = por %p391, %p392
    %s395 = sadd.s32 %s394, 1
    %p398 = scmp.eq.s32.totalorder %s24, 3
    %p399 = scmp.ne.s32.totalorder %s394, %s396
    %p400 = scmp.eq.s32.totalorder %s24, 0
    %p401 = por %p399, %p400
    %p402 = scmp.ne.s32.totalorder %s394, %s396
    %p403 = scmp.eq.s32.totalorder %s29, 3
    %p404 = por %p402, %p403
    %p405 = scmp.ne.s32.totalorder %s396, %s397
    %p406 = scmp.eq.s32.totalorder %s29, 0
    %p407 = por %p405, %p406
    %p408 = scmp.ne.s32.totalorder %s396, %s397
    %p409 = scmp.eq.s32.totalorder %s30, 3
    %p410 = por %p408, %p409
    %p412 = scmp.ne.s32.totalorder %s397, %s411
    %p413 = scmp.eq.s32.totalorder %s30, 0
    %p414 = por %p412, %p413
    %s415 = ssub.s32 %s24, %s31
    %p416 = scmp.eq.s32.totalorder %s415, 0
    %s418 = sadd.s32 %s417, 1
    %s419 = scalar_select %p416, %s417, %s418
    %p422 = pneg %p416
    %p423 = scmp.eq.s32.totalorder %s24, 3
    %p424 = por %p422, %p423
    %p425 = scmp.ne.s32.totalorder %s417, %s420
    %p426 = scmp.eq.s32.totalorder %s24, 0
    %p427 = por %p425, %p426
    %p428 = scmp.ne.s32.totalorder %s417, %s420
    %p429 = scmp.eq.s32.totalorder %s29, 3
    %p430 = por %p428, %p429
    %p431 = scmp.ne.s32.totalorder %s420, %s421
    %p432 = scmp.eq.s32.totalorder %s29, 0
    %p433 = por %p431, %p432
    %p434 = scmp.ne.s32.totalorder %s420, %s421
    %p435 = scmp.eq.s32.totalorder %s30, 3
    %p436 = por %p434, %p435
    %p438 = scmp.ne.s32.totalorder %s421, %s437
    %p439 = scmp.eq.s32.totalorder %s30, 0
    %p440 = por %p438, %p439
    %p441 = scmp.le.s32.totalorder 1, %s24
    %p442 = scmp.lt.s32.totalorder %s24, 5
    %p443 = pnand %p441, %p442
    %p444 = pneg %p443
    // Predicated region
    $region9: #{leap_encoder_forward.2} parent=5 // pred_check
      _
    $region10: #{leap_encoder_forward.2} parent=5 // pred_check_branch
      %446 = sbr.rel (%p443) target = $region12
    $region11: #{leap_encoder_forward.2} parent=5 // pred_region
      %s447 = ssub.s32 %s24, 1
      // Predicated region
      $region13: #{leap_encoder_forward.2} parent=11 // pred_check
        %p448 = pneg %p71
      $region14: #{leap_encoder_forward.2} parent=11 // pred_check_branch
        %450 = sbr.rel (%p448) target = $region16
      $region15: #{leap_encoder_forward.2} parent=11 // pred_region
        _
      $region16: #{leap_encoder_forward.2} parent=11 // pred_fallthru
        _
      // Predicated region
      $region17: #{leap_encoder_forward.2} parent=11 // pred_check
        %p451 = pneg %p92
      $region18: #{leap_encoder_forward.2} parent=11 // pred_check_branch
        %453 = sbr.rel (%p451) target = $region20
      $region19: #{leap_encoder_forward.2} parent=11 // pred_region
        _
      $region20: #{leap_encoder_forward.2} parent=11 // pred_fallthru
        _
      // Predicated region
      $region21: #{leap_encoder_forward.2} parent=11 // pred_check
        %p454 = pneg %p113
      $region22: #{leap_encoder_forward.2} parent=11 // pred_check_branch
        %456 = sbr.rel (%p454) target = $region24
      $region23: #{leap_encoder_forward.2} parent=11 // pred_region
        _
      $region24: #{leap_encoder_forward.2} parent=11 // pred_fallthru
        _
      // Predicated region
      $region25: #{leap_encoder_forward.2} parent=11 // pred_check
        %p457 = pneg %p134
      $region26: #{leap_encoder_forward.2} parent=11 // pred_check_branch
        %459 = sbr.rel (%p457) target = $region28
      $region27: #{leap_encoder_forward.2} parent=11 // pred_region
        _
      $region28: #{leap_encoder_forward.2} parent=11 // pred_fallthru
        _
      // Predicated region
      $region29: #{leap_encoder_forward.2} parent=11 // pred_check
        %p460 = pneg %p155
      $region30: #{leap_encoder_forward.2} parent=11 // pred_check_branch
        %462 = sbr.rel (%p460) target = $region32
      $region31: #{leap_encoder_forward.2} parent=11 // pred_region
        _
      $region32: #{leap_encoder_forward.2} parent=11 // pred_fallthru
        _
      // Predicated region
      $region33: #{leap_encoder_forward.2} parent=11 // pred_check
        %p463 = pneg %p176
      $region34: #{leap_encoder_forward.2} parent=11 // pred_check_branch
        %465 = sbr.rel (%p463) target = $region36
      $region35: #{leap_encoder_forward.2} parent=11 // pred_region
        _
      $region36: #{leap_encoder_forward.2} parent=11 // pred_fallthru
        _
      // Predicated region
      $region37: #{leap_encoder_forward.2} parent=11 // pred_check
        %p466 = pneg %p197
      $region38: #{leap_encoder_forward.2} parent=11 // pred_check_branch
        %468 = sbr.rel (%p466) target = $region40
      $region39: #{leap_encoder_forward.2} parent=11 // pred_region
        _
      $region40: #{leap_encoder_forward.2} parent=11 // pred_fallthru
        _
      // Predicated region
      $region41: #{leap_encoder_forward.2} parent=11 // pred_check
        %p469 = pneg %p218
      $region42: #{leap_encoder_forward.2} parent=11 // pred_check_branch
        %471 = sbr.rel (%p469) target = $region44
      $region43: #{leap_encoder_forward.2} parent=11 // pred_region
        _
      $region44: #{leap_encoder_forward.2} parent=11 // pred_fallthru
        _
      // Predicated region
      $region45: #{leap_encoder_forward.2} parent=11 // pred_check
        %p472 = pneg %p239
      $region46: #{leap_encoder_forward.2} parent=11 // pred_check_branch
        %474 = sbr.rel (%p472) target = $region48
      $region47: #{leap_encoder_forward.2} parent=11 // pred_region
        _
      $region48: #{leap_encoder_forward.2} parent=11 // pred_fallthru
        _
      // Predicated region
      $region49: #{leap_encoder_forward.2} parent=11 // pred_check
        %p475 = pneg %p260
      $region50: #{leap_encoder_forward.2} parent=11 // pred_check_branch
        %477 = sbr.rel (%p475) target = $region52
      $region51: #{leap_encoder_forward.2} parent=11 // pred_region
        _
      $region52: #{leap_encoder_forward.2} parent=11 // pred_fallthru
        _
      // Predicated region
      $region53: #{leap_encoder_forward.2} parent=11 // pred_check
        %p478 = pneg %p281
      $region54: #{leap_encoder_forward.2} parent=11 // pred_check_branch
        %480 = sbr.rel (%p478) target = $region56
      $region55: #{leap_encoder_forward.2} parent=11 // pred_region
        _
      $region56: #{leap_encoder_forward.2} parent=11 // pred_fallthru
        _
      // Predicated region
      $region57: #{leap_encoder_forward.2} parent=11 // pred_check
        %p481 = pneg %p302
      $region58: #{leap_encoder_forward.2} parent=11 // pred_check_branch
        %483 = sbr.rel (%p481) target = $region60
      $region59: #{leap_encoder_forward.2} parent=11 // pred_region
        _
      $region60: #{leap_encoder_forward.2} parent=11 // pred_fallthru
        _
      // Predicated region
      $region61: #{leap_encoder_forward.2} parent=11 // pred_check
        %p484 = pneg %p323
      $region62: #{leap_encoder_forward.2} parent=11 // pred_check_branch
        %486 = sbr.rel (%p484) target = $region64
      $region63: #{leap_encoder_forward.2} parent=11 // pred_region
        _
      $region64: #{leap_encoder_forward.2} parent=11 // pred_fallthru
        _
      // Predicated region
      $region65: #{leap_encoder_forward.2} parent=11 // pred_check
        %p487 = pneg %p344
      $region66: #{leap_encoder_forward.2} parent=11 // pred_check_branch
        %489 = sbr.rel (%p487) target = $region68
      $region67: #{leap_encoder_forward.2} parent=11 // pred_region
        _
      $region68: #{leap_encoder_forward.2} parent=11 // pred_fallthru
        _
      // Predicated region
      $region69: #{leap_encoder_forward.2} parent=11 // pred_check
        %p490 = pneg %p365
      $region70: #{leap_encoder_forward.2} parent=11 // pred_check_branch
        %492 = sbr.rel (%p490) target = $region72
      $region71: #{leap_encoder_forward.2} parent=11 // pred_region
        _
      $region72: #{leap_encoder_forward.2} parent=11 // pred_fallthru
        _
      // Predicated region
      $region73: #{leap_encoder_forward.2} parent=11 // pred_check
        %p493 = pneg %p386
      $region74: #{leap_encoder_forward.2} parent=11 // pred_check_branch
        %495 = sbr.rel (%p493) target = $region76
      $region75: #{leap_encoder_forward.2} parent=11 // pred_region
        _
      $region76: #{leap_encoder_forward.2} parent=11 // pred_fallthru
        _
      // Predicated region
      $region77: #{leap_encoder_forward.2} parent=11 // pred_check
        %p496 = pneg %p407
      $region78: #{leap_encoder_forward.2} parent=11 // pred_check_branch
        %498 = sbr.rel (%p496) target = $region80
      $region79: #{leap_encoder_forward.2} parent=11 // pred_region
        _
      $region80: #{leap_encoder_forward.2} parent=11 // pred_fallthru
        _
    $region12: #{leap_encoder_forward.2} parent=5 // pred_fallthru
      _
    %p499 = scmp.lt.s32.totalorder %s24, 4
    // Predicated region
    $region81: #{leap_encoder_forward.2} parent=5 // pred_check
      %p500 = pneg %p499
    $region82: #{leap_encoder_forward.2} parent=5 // pred_check_branch
      %502 = sbr.rel (%p500) target = $region84
    $region83: #{leap_encoder_forward.2} parent=5 // pred_region
      // Predicated region
      $region85: #{leap_encoder_forward.2} parent=83 // pred_check
        %p503 = pneg %p44
      $region86: #{leap_encoder_forward.2} parent=83 // pred_check_branch
        %505 = sbr.rel (%p503) target = $region88
      $region87: #{leap_encoder_forward.2} parent=83 // pred_region
        %p506 = scmp.lt.s32.totalorder %s24, 3
        %s507 = scalar_select %p506, %s24, 3
        %s508 = smul.addr %s507, 2
        %s509 = smul.addr %s508, 8
        %s510 = scalar_lea.vmem %s0, %s509
      $region88: #{leap_encoder_forward.2} parent=83 // pred_fallthru
        _
    $region84: #{leap_encoder_forward.2} parent=5 // pred_fallthru
      _
    %p511 = scmp.le.s32.totalorder 1, %s24
    %p512 = scmp.lt.s32.totalorder %s24, 5
    %p513 = pnand %p511, %p512
    %p514 = pneg %p513
    // Predicated region
    $region89: #{leap_encoder_forward.2} parent=5 // pred_check
      _
    $region90: #{leap_encoder_forward.2} parent=5 // pred_check_branch
      %516 = sbr.rel (%p513) target = $region92
    $region91: #{leap_encoder_forward.2} parent=5 // pred_region
      %s517 = ssub.s32 %s24, 1
      %p518 = scmp.lt.s32.totalorder %s29, 3
      %s519 = scalar_select %p518, %s29, 3
      %s520 = smul.addr %s519, 2
      %s521 = smul.addr %s520, 8
      %s522 = scalar_lea.vmem %s0, %s521
      %p523 = pneg %p50
      %p524 = pneg %p47
      %p525 = pneg %p71
      %p526 = pneg %p68
      %p527 = pneg %p92
      %p528 = pneg %p89
      %p529 = pneg %p113
      %p530 = pneg %p110
      %p531 = pneg %p134
      %p532 = pneg %p131
      %p533 = pneg %p155
      %p534 = pneg %p152
      %p535 = pneg %p176
      %p536 = pneg %p173
      %p537 = pneg %p197
      %p538 = pneg %p194
      %p539 = pneg %p218
      %p540 = pneg %p215
      %p541 = pneg %p239
      %p542 = pneg %p236
      %p543 = pneg %p260
      %p544 = pneg %p257
      %p545 = pneg %p281
      %p546 = pneg %p278
      %p547 = pneg %p302
      %p548 = pneg %p299
      %p549 = pneg %p323
      %p550 = pneg %p320
      %p551 = pneg %p344
      %p552 = pneg %p341
      %p553 = pneg %p365
      %p554 = pneg %p362
      %p555 = pneg %p386
      %p556 = pneg %p383
      %p557 = pneg %p407
      %p558 = pneg %p404
      %p559 = pneg %p433
      %p560 = pneg %p430
      %p561 = scmp.lt.s32.totalorder %s29, 3
      %s562 = scalar_select %p561, %s29, 3
      %s563 = smul.addr %s562, 2
      %s564 = smul.addr %s563, 8
      %s565 = scalar_lea.vmem %s18, %s564
      %p566 = scmp.lt.s32.totalorder %s29, 3
      %s567 = scalar_select %p566, %s29, 3
      %s568 = smul.addr %s567, 2
      %s569 = smul.addr %s568, 8
      %s570 = scalar_lea.vmem %s0, %s569
      %p571 = scmp.lt.s32.totalorder %s29, 3
      %s572 = scalar_select %p571, %s29, 3
      %s573 = smul.addr %s572, 2
      %s574 = smul.addr %s573, 8
      %s575 = scalar_lea.vmem %s18, %s574
      %v576 = vld [vmem:[%s570] sm:$0xff]
      %v577 = vld [vmem:[%s570 + $0x8] sm:$0xff]
      %v578 = vld [vmem:[%s1] sm:$0xff]
      %v579 = vld [vmem:[%s1 + $0x8] sm:$0xff]
      %v580 = vld [vmem:[%s1 + $0x10] sm:$0xff]
      %v581 = vld [vmem:[%s1 + $0x18] sm:$0xff]
      %v582 = vld [vmem:[%s1 + $0x20] sm:$0xff]
      %v583 = vld [vmem:[%s1 + $0x28] sm:$0xff]
      %v584 = vld [vmem:[%s2] sm:$0x1]
      %v586 = vlaneseq
      %v587 = vshrl.u32 %v586, 7
      %v588 = vsub.s32 0, %v587
      %v589 = vrot.slane %v584, %v588
      %vm591 = vcmask 392192
      %v593 = vsel %vm591, %v576, 0
      %v596 = vsel %vm591, %v577, 0
      %598 = vmatprep.subr.mxu0 0.0
      %599 = vmatpush1.msra.mxu0 %v578
      %600 = vmatprep.subr.mxu0 0.0
      %601 = vmatpush1.msra.mxu0 %v579
      %602 = vmatprep.subr.mxu0 0.0
      %603 = vmatpush1.msra.mxu0 %v580
      %604 = vmatprep.subr.mxu0 0.0
      %605 = vmatpush1.msra.mxu0 %v581
      %606 = vmatprep.subr.mxu0 0.0
      %607 = vmatpush1.msra.mxu0 %v582
      %608 = vmatprep.subr.mxu0 0.0
      %609 = vmatpush1.msra.mxu0 %v583
      %610 = vmatprep.subr.mxu0 0.0
      %611 = vmatpush1.msra.mxu0 0.0
      %612 = vmatprep.subr.mxu0 0.0
      %613 = vmatpush1.msra.mxu0 0.0
      %614 = vmatprep.subr.mxu0 0.0
      %615 = vmatpush1.msra.mxu0 0.0
      %616 = vmatprep.subr.mxu0 0.0
      %617 = vmatpush1.msra.mxu0 0.0
      %618 = vmatprep.subr.mxu0 0.0
      %619 = vmatpush1.msra.mxu0 0.0
      %620 = vmatprep.subr.mxu0 0.0
      %621 = vmatpush1.msra.mxu0 0.0
      %622 = vmatprep.subr.mxu0 0.0
      %623 = vmatpush1.msra.mxu0 0.0
      %624 = vmatprep.subr.mxu0 0.0
      %625 = vmatpush1.msra.mxu0 0.0
      %626 = vmatprep.subr.mxu0 0.0
      %627 = vmatpush1.msra.mxu0 0.0
      %628 = vmatprep.subr.mxu0 0.0
      %629 = vmatpush1.msra.mxu0 0.0
      %630 = vmatprep.subr.mxu0 0.0
      %631 = vmatpush1.msra.mxu0 0.0
      %632 = vmatprep.subr.mxu0 0.0
      %633 = vmatpush1.msra.mxu0 0.0
      %634 = vmatprep.subr.mxu0 0.0
      %635 = vmatpush1.msra.mxu0 0.0
      %636 = vmatprep.subr.mxu0 0.0
      %637 = vmatpush1.msra.mxu0 0.0
      %638 = vmatprep.subr.mxu0 0.0
      %639 = vmatpush1.msra.mxu0 0.0
      %640 = vmatprep.subr.mxu0 0.0
      %641 = vmatpush1.msra.mxu0 0.0
      %642 = vmatprep.subr.mxu0 0.0
      %643 = vmatpush1.msra.mxu0 0.0
      %644 = vmatprep.subr.mxu0 0.0
      %645 = vmatpush1.msra.mxu0 0.0
      %646 = vmatprep.subr.mxu0 0.0
      %647 = vmatpush1.msra.mxu0 0.0
      %648 = vmatprep.subr.mxu0 0.0
      %649 = vmatpush1.msra.mxu0 0.0
      %650 = vmatprep.subr.mxu0 0.0
      %651 = vmatpush1.msra.mxu0 0.0
      %652 = vmatprep.subr.mxu0 0.0
      %653 = vmatpush1.msra.mxu0 0.0
      %654 = vmatprep.subr.mxu0 0.0
      %655 = vmatpush1.msra.mxu0 0.0
      %656 = vmatprep.subr.mxu0 0.0
      %657 = vmatpush1.msra.mxu0 0.0
      %658 = vmatprep.subr.mxu0 0.0
      %659 = vmatpush1.msra.mxu0 0.0
      %660 = vmatprep.subr.mxu0 0.0
      %661 = vmatpush1.msra.mxu0 0.0
      %662 = vmatprep.mubr.f32.mxu0 0.0
      %663 = vmatmul.mubr.f32.gmra.mrb[0].mxu0 %v593
      %v664 = vpop.f32.mrb[0].mxu0
      %v665 = vadd.f32 %v589, %v664
      %v666 = vpop.f32.mrb[0].mxu0
      %667 = vmatprep.mubr.f32.mxu0 0.0
      %668 = vmatmul.mubr.f32.gmra.mrb[0].mxu0 %v596
      %v669 = vpop.f32.mrb[0].mxu0
      %v670 = vadd.f32 %v589, %v669
      %v671 = vpop.f32.mrb[0].mxu0
      %672 = vdwg.mxu0
      %v673 = vld [vmem:[%s3] sm:$0xff]
      %v674 = vld [vmem:[%s3 + $0x8] sm:$0xff]
      %v675 = vadd.f32 %v665, %v673
      %v676 = vadd.f32 %v670, %v674
      %v677 = vld [vmem:[%s4] sm:$0x1]
      %v678 = vld [vmem:[%s5] sm:$0x1]
      %v679 = vld [vmem:[%s6] sm:$0xff]
      %v680 = vld [vmem:[%s6 + $0x8] sm:$0xff]
      %v681 = vld [vmem:[%s6 + $0x10] sm:$0xff]
      %v682 = vld [vmem:[%s6 + $0x18] sm:$0xff]
      %v683 = vld [vmem:[%s7] sm:$0x1]
      %v684 = vld [vmem:[%s8] sm:$0xff]
      %v685 = vld [vmem:[%s8 + $0x8] sm:$0xff]
      %v686 = vld [vmem:[%s8 + $0x10] sm:$0xff]
      %v687 = vld [vmem:[%s8 + $0x18] sm:$0xff]
      %v688 = vld [vmem:[%s9] sm:$0x1]
      %v689 = vld [vmem:[%s10] sm:$0x1]
      %v690 = vld [vmem:[%s11] sm:$0x1]
      %v691 = vld [vmem:[%s12] sm:$0xff]
      %v692 = vld [vmem:[%s12 + $0x8] sm:$0xff]
      %v693 = vld [vmem:[%s12 + $0x10] sm:$0xff]
      %v694 = vld [vmem:[%s12 + $0x18] sm:$0xff]
      %v695 = vld [vmem:[%s13] sm:$0x1]
      %v696 = vld [vmem:[%s14] sm:$0xff]
      %v697 = vld [vmem:[%s14 + $0x8] sm:$0xff]
      %v698 = vld [vmem:[%s14 + $0x10] sm:$0xff]
      %v699 = vld [vmem:[%s14 + $0x18] sm:$0xff]
      %v700 = vld [vmem:[%s14 + $0x20] sm:$0xff]
      %v701 = vld [vmem:[%s14 + $0x28] sm:$0xff]
      %v702 = vld [vmem:[%s14 + $0x30] sm:$0xff]
      %v703 = vld [vmem:[%s14 + $0x38] sm:$0xff]
      %v704 = vld [vmem:[%s14 + $0x40] sm:$0xff]
      %v705 = vld [vmem:[%s14 + $0x48] sm:$0xff]
      %v706 = vld [vmem:[%s14 + $0x50] sm:$0xff]
      %v707 = vld [vmem:[%s14 + $0x58] sm:$0xff]
      %v708 = vld [vmem:[%s14 + $0x60] sm:$0xff]
      %v709 = vld [vmem:[%s14 + $0x68] sm:$0xff]
      %v710 = vld [vmem:[%s14 + $0x70] sm:$0xff]
      %v711 = vld [vmem:[%s14 + $0x78] sm:$0xff]
      %v712 = vld [vmem:[%s15] sm:$0x1]
      %vm713 = vcmask 261120
      %v714 = vsel %vm713, %v675, 0.0
      %715 = vadd.xlane.f32.xlu0 %v714
      %v716 = vpop.xlane.xlu0 %715
      %v717 = vsel %vm713, %v676, 0.0
      %718 = vadd.xlane.f32.xlu0 %v717
      %v719 = vpop.xlane.xlu0 %718
      %v720 = vrcp.pop 32.0
      %v721 = vmul.f32 %v716, %v720
      %v722 = vmul.f32 %v719, %v720
      %v723 = vsub.f32 %v675, %v721
      %v724 = vsub.f32 %v676, %v722
      %v725 = vmul.f32 %v723, %v723
      %v726 = vmul.f32 %v724, %v724
      %v727 = vsel %vm713, %v725, 0.0
      %728 = vadd.xlane.f32.xlu0 %v727
      %v729 = vpop.xlane.xlu0 %728
      %v730 = vsel %vm713, %v726, 0.0
      %731 = vadd.xlane.f32.xlu0 %v730
      %v732 = vpop.xlane.xlu0 %731
      %v733 = vmul.f32 %v729, %v720
      %v734 = vmul.f32 %v732, %v720
      %v735 = vadd.f32 %v733, 1e-05
      %v736 = vadd.f32 %v734, 1e-05
      %v737 = vrsqrt.pop %v735
      %v738 = vrsqrt.pop %v736
      %v739 = vmul.f32 %v723, %v737
      %v740 = vmul.f32 %v724, %v738
      %v742 = vlaneseq
      %v743 = vshrl.u32 %v742, 7
      %v744 = vsub.s32 0, %v743
      %v745 = vrot.slane %v677, %v744
      %v747 = vmul.f32 %v739, %v745
      %v748 = vmul.f32 %v740, %v745
      %v750 = vlaneseq
      %v751 = vshrl.u32 %v750, 7
      %v752 = vsub.s32 0, %v751
      %v753 = vrot.slane %v678, %v752
      %v755 = vadd.f32 %v747, %v753
      %v756 = vadd.f32 %v748, %v753
      %v758 = vlaneseq
      %v759 = vshrl.u32 %v758, 7
      %v760 = vsub.s32 0, %v759
      %v761 = vrot.slane %v683, %v760
      %v764 = vsel %vm713, %v755, 0
      %v767 = vsel %vm713, %v756, 0
      %769 = vmatprep.subr.mxu0 0.0
      %770 = vmatpush1.msra.mxu0 %v679
      %771 = vmatprep.subr.mxu0 0.0
      %772 = vmatpush1.msra.mxu0 %v680
      %773 = vmatprep.subr.mxu0 0.0
      %774 = vmatpush1.msra.mxu0 %v681
      %775 = vmatprep.subr.mxu0 0.0
      %776 = vmatpush1.msra.mxu0 %v682
      %777 = vmatprep.subr.mxu0 0.0
      %778 = vmatpush1.msra.mxu0 0.0
      %779 = vmatprep.subr.mxu0 0.0
      %780 = vmatpush1.msra.mxu0 0.0
      %781 = vmatprep.subr.mxu0 0.0
      %782 = vmatpush1.msra.mxu0 0.0
      %783 = vmatprep.subr.mxu0 0.0
      %784 = vmatpush1.msra.mxu0 0.0
      %785 = vmatprep.subr.mxu0 0.0
      %786 = vmatpush1.msra.mxu0 0.0
      %787 = vmatprep.subr.mxu0 0.0
      %788 = vmatpush1.msra.mxu0 0.0
      %789 = vmatprep.subr.mxu0 0.0
      %790 = vmatpush1.msra.mxu0 0.0
      %791 = vmatprep.subr.mxu0 0.0
      %792 = vmatpush1.msra.mxu0 0.0
      %793 = vmatprep.subr.mxu0 0.0
      %794 = vmatpush1.msra.mxu0 0.0
      %795 = vmatprep.subr.mxu0 0.0
      %796 = vmatpush1.msra.mxu0 0.0
      %797 = vmatprep.subr.mxu0 0.0
      %798 = vmatpush1.msra.mxu0 0.0
      %799 = vmatprep.subr.mxu0 0.0
      %800 = vmatpush1.msra.mxu0 0.0
      %801 = vmatprep.subr.mxu0 0.0
      %802 = vmatpush1.msra.mxu0 0.0
      %803 = vmatprep.subr.mxu0 0.0
      %804 = vmatpush1.msra.mxu0 0.0
      %805 = vmatprep.subr.mxu0 0.0
      %806 = vmatpush1.msra.mxu0 0.0
      %807 = vmatprep.subr.mxu0 0.0
      %808 = vmatpush1.msra.mxu0 0.0
      %809 = vmatprep.subr.mxu0 0.0
      %810 = vmatpush1.msra.mxu0 0.0
      %811 = vmatprep.subr.mxu0 0.0
      %812 = vmatpush1.msra.mxu0 0.0
      %813 = vmatprep.subr.mxu0 0.0
      %814 = vmatpush1.msra.mxu0 0.0
      %815 = vmatprep.subr.mxu0 0.0
      %816 = vmatpush1.msra.mxu0 0.0
      %817 = vmatprep.subr.mxu0 0.0
      %818 = vmatpush1.msra.mxu0 0.0
      %819 = vmatprep.subr.mxu0 0.0
      %820 = vmatpush1.msra.mxu0 0.0
      %821 = vmatprep.subr.mxu0 0.0
      %822 = vmatpush1.msra.mxu0 0.0
      %823 = vmatprep.subr.mxu0 0.0
      %824 = vmatpush1.msra.mxu0 0.0
      %825 = vmatprep.subr.mxu0 0.0
      %826 = vmatpush1.msra.mxu0 0.0
      %827 = vmatprep.subr.mxu0 0.0
      %828 = vmatpush1.msra.mxu0 0.0
      %829 = vmatprep.subr.mxu0 0.0
      %830 = vmatpush1.msra.mxu0 0.0
      %831 = vmatprep.subr.mxu0 0.0
      %832 = vmatpush1.msra.mxu0 0.0
      %833 = vmatprep.mubr.f32.mxu0 0.0
      %834 = vmatmul.mubr.f32.gmra.mrb[0].mxu0 %v764
      %v835 = vpop.f32.mrb[0].mxu0
      %v836 = vadd.f32 %v761, %v835
      %v837 = vpop.f32.mrb[0].mxu0
      %838 = vmatprep.mubr.f32.mxu0 0.0
      %839 = vmatmul.mubr.f32.gmra.mrb[0].mxu0 %v767
      %v840 = vpop.f32.mrb[0].mxu0
      %v841 = vadd.f32 %v761, %v840
      %v842 = vpop.f32.mrb[0].mxu0
      %843 = vdwg.mxu0
      %846 = vrot.lane.b32.xlu0 %v836, 96
      %v847 = vpop.permute.xlu0 %846
      %848 = vrot.lane.b32.xlu0 %v841, 96
      %v849 = vpop.permute.xlu0 %848
      %vm850 = vcmask 130048
      %v851 = vsel %vm850, %v836, 0
      %v853 = vsel %vm850, %v841, 0
      %v855 = vsel %vm850, %v847, 0
      %v857 = vsel %vm850, %v849, 0
      %859 = vmatprep.subr.mxu0 0.0
      %860 = vmatpush1.xpose.msra.mxu0 %v855
      %861 = vmatprep.subr.mxu0 0.0
      %862 = vmatpush1.xpose.msra.mxu0 %v857
      %863 = vmatprep.subr.mxu0 0.0
      %864 = vmatpush1.xpose.msra.mxu0 0.0
      %865 = vmatprep.subr.mxu0 0.0
      %866 = vmatpush1.xpose.msra.mxu0 0.0
      %867 = vmatprep.subr.mxu0 0.0
      %868 = vmatpush1.xpose.msra.mxu0 0.0
      %869 = vmatprep.subr.mxu0 0.0
      %870 = vmatpush1.xpose.msra.mxu0 0.0
      %871 = vmatprep.subr.mxu0 0.0
      %872 = vmatpush1.xpose.msra.mxu0 0.0
      %873 = vmatprep.subr.mxu0 0.0
      %874 = vmatpush1.xpose.msra.mxu0 0.0
      %875 = vmatprep.subr.mxu0 0.0
      %876 = vmatpush1.xpose.msra.mxu0 0.0
      %877 = vmatprep.subr.mxu0 0.0
      %878 = vmatpush1.xpose.msra.mxu0 0.0
      %879 = vmatprep.subr.mxu0 0.0
      %880 = vmatpush1.xpose.msra.mxu0 0.0
      %881 = vmatprep.subr.mxu0 0.0
      %882 = vmatpush1.xpose.msra.mxu0 0.0
      %883 = vmatprep.subr.mxu0 0.0
      %884 = vmatpush1.xpose.msra.mxu0 0.0
      %885 = vmatprep.subr.mxu0 0.0
      %886 = vmatpush1.xpose.msra.mxu0 0.0
      %887 = vmatprep.subr.mxu0 0.0
      %888 = vmatpush1.xpose.msra.mxu0 0.0
      %889 = vmatprep.subr.mxu0 0.0
      %890 = vmatpush1.xpose.msra.mxu0 0.0
      %891 = vmatprep.subr.mxu0 0.0
      %892 = vmatpush1.xpose.msra.mxu0 0.0
      %893 = vmatprep.subr.mxu0 0.0
      %894 = vmatpush1.xpose.msra.mxu0 0.0
      %895 = vmatprep.subr.mxu0 0.0
      %896 = vmatpush1.xpose.msra.mxu0 0.0
      %897 = vmatprep.subr.mxu0 0.0
      %898 = vmatpush1.xpose.msra.mxu0 0.0
      %899 = vmatprep.subr.mxu0 0.0
      %900 = vmatpush1.xpose.msra.mxu0 0.0
      %901 = vmatprep.subr.mxu0 0.0
      %902 = vmatpush1.xpose.msra.mxu0 0.0
      %903 = vmatprep.subr.mxu0 0.0
      %904 = vmatpush1.xpose.msra.mxu0 0.0
      %905 = vmatprep.subr.mxu0 0.0
      %906 = vmatpush1.xpose.msra.mxu0 0.0
      %907 = vmatprep.subr.mxu0 0.0
      %908 = vmatpush1.xpose.msra.mxu0 0.0
      %909 = vmatprep.subr.mxu0 0.0
      %910 = vmatpush1.xpose.msra.mxu0 0.0
      %911 = vmatprep.subr.mxu0 0.0
      %912 = vmatpush1.xpose.msra.mxu0 0.0
      %913 = vmatprep.subr.mxu0 0.0
      %914 = vmatpush1.xpose.msra.mxu0 0.0
      %915 = vmatprep.subr.mxu0 0.0
      %916 = vmatpush1.xpose.msra.mxu0 0.0
      %917 = vmatprep.subr.mxu0 0.0
      %918 = vmatpush1.xpose.msra.mxu0 0.0
      %919 = vmatprep.subr.mxu0 0.0
      %920 = vmatpush1.xpose.msra.mxu0 0.0
      %921 = vmatprep.subr.mxu0 0.0
      %922 = vmatpush1.xpose.msra.mxu0 0.0
      %923 = vmatprep.mubr.f32.mxu0 0.0
      %924 = vmatmul.mubr.f32.gmra.mrb[0].mxu0 %v851
      %v925 = vpop.f32.mrb[0].mxu0
      %v926 = vadd.f32 0.0, %v925
      %v927 = vpop.f32.mrb[0].mxu0
      %928 = vmatprep.mubr.f32.mxu0 0.0
      %929 = vmatmul.mubr.f32.gmra.mrb[0].mxu0 %v853
      %v930 = vpop.f32.mrb[0].mxu0
      %v931 = vadd.f32 0.0, %v930
      %v932 = vpop.f32.mrb[0].mxu0
      %933 = vdwg.mxu0
      %v934 = vmul.f32 %v926, 0.25
      %v935 = vmul.f32 %v931, 0.25
      %v936 = vsel %vm850, %v934, -inf
      %937 = vmax.xlane.f32.xlu0 %v936
      %v938 = vpop.xlane.xlu0 %937
      %v939 = vsel %vm850, %v935, -inf
      %940 = vmax.xlane.f32.xlu0 %v939
      %v941 = vpop.xlane.xlu0 %940
      %v942 = vsub.f32 %v934, %v938
      %v943 = vsub.f32 %v935, %v941
      %v944 = vmul.f32 %v942, 1.442695
      %v945 = vpow.pop %v944
      %v946 = vmul.f32 %v943, 1.442695
      %v947 = vpow.pop %v946
      %v948 = vsel %vm850, %v945, 0.0
      %949 = vadd.xlane.f32.xlu0 %v948
      %v950 = vpop.xlane.xlu0 %949
      %v951 = vsel %vm850, %v947, 0.0
      %952 = vadd.xlane.f32.xlu0 %v951
      %v953 = vpop.xlane.xlu0 %952
      %v954 = vrcp.pop %v950
      %v955 = vrcp.pop %v953
      %v956 = vmul.f32 %v945, %v954
      %v957 = vmul.f32 %v947, %v955
      %958 = vrot.lane.b32.xlu0 %v836, 64
      %v959 = vpop.permute.xlu0 %958
      %960 = vrot.lane.b32.xlu0 %v841, 64
      %v961 = vpop.permute.xlu0 %960
      %v965 = vsel %vm850, %v956, 0
      %v968 = vsel %vm850, %v957, 0
      %970 = vmatprep.subr.mxu0 0.0
      %971 = vmatpush1.msra.mxu0 %v959
      %972 = vmatprep.subr.mxu0 0.0
      %973 = vmatpush1.msra.mxu0 %v961
      %974 = vmatprep.subr.mxu0 0.0
      %975 = vmatpush1.msra.mxu0 0.0
      %976 = vmatprep.subr.mxu0 0.0
      %977 = vmatpush1.msra.mxu0 0.0
      %978 = vmatprep.subr.mxu0 0.0
      %979 = vmatpush1.msra.mxu0 0.0
      %980 = vmatprep.subr.mxu0 0.0
      %981 = vmatpush1.msra.mxu0 0.0
      %982 = vmatprep.subr.mxu0 0.0
      %983 = vmatpush1.msra.mxu0 0.0
      %984 = vmatprep.subr.mxu0 0.0
      %985 = vmatpush1.msra.mxu0 0.0
      %986 = vmatprep.subr.mxu0 0.0
      %987 = vmatpush1.msra.mxu0 0.0
      %988 = vmatprep.subr.mxu0 0.0
      %989 = vmatpush1.msra.mxu0 0.0
      %990 = vmatprep.subr.mxu0 0.0
      %991 = vmatpush1.msra.mxu0 0.0
      %992 = vmatprep.subr.mxu0 0.0
      %993 = vmatpush1.msra.mxu0 0.0
      %994 = vmatprep.subr.mxu0 0.0
      %995 = vmatpush1.msra.mxu0 0.0
      %996 = vmatprep.subr.mxu0 0.0
      %997 = vmatpush1.msra.mxu0 0.0
      %998 = vmatprep.subr.mxu0 0.0
      %999 = vmatpush1.msra.mxu0 0.0
      %1000 = vmatprep.subr.mxu0 0.0
      %1001 = vmatpush1.msra.mxu0 0.0
      %1002 = vmatprep.subr.mxu0 0.0
      %1003 = vmatpush1.msra.mxu0 0.0
      %1004 = vmatprep.subr.mxu0 0.0
      %1005 = vmatpush1.msra.mxu0 0.0
      %1006 = vmatprep.subr.mxu0 0.0
      %1007 = vmatpush1.msra.mxu0 0.0
      %1008 = vmatprep.subr.mxu0 0.0
      %1009 = vmatpush1.msra.mxu0 0.0
      %1010 = vmatprep.subr.mxu0 0.0
      %1011 = vmatpush1.msra.mxu0 0.0
      %1012 = vmatprep.subr.mxu0 0.0
      %1013 = vmatpush1.msra.mxu0 0.0
      %1014 = vmatprep.subr.mxu0 0.0
      %1015 = vmatpush1.msra.mxu0 0.0
      %1016 = vmatprep.subr.mxu0 0.0
      %1017 = vmatpush1.msra.mxu0 0.0
      %1018 = vmatprep.subr.mxu0 0.0
      %1019 = vmatpush1.msra.mxu0 0.0
      %1020 = vmatprep.subr.mxu0 0.0
      %1021 = vmatpush1.msra.mxu0 0.0
      %1022 = vmatprep.subr.mxu0 0.0
      %1023 = vmatpush1.msra.mxu0 0.0
      %1024 = vmatprep.subr.mxu0 0.0
      %1025 = vmatpush1.msra.mxu0 0.0
      %1026 = vmatprep.subr.mxu0 0.0
      %1027 = vmatpush1.msra.mxu0 0.0
      %1028 = vmatprep.subr.mxu0 0.0
      %1029 = vmatpush1.msra.mxu0 0.0
      %1030 = vmatprep.subr.mxu0 0.0
      %1031 = vmatpush1.msra.mxu0 0.0
      %1032 = vmatprep.subr.mxu0 0.0
      %1033 = vmatpush1.msra.mxu0 0.0
      %1034 = vmatprep.mubr.f32.mxu0 0.0
      %1035 = vmatmul.mubr.f32.gmra.mrb[0].mxu0 %v965
      %v1036 = vpop.f32.mrb[0].mxu0
      %v1037 = vadd.f32 0.0, %v1036
      %v1038 = vpop.f32.mrb[0].mxu0
      %1039 = vmatprep.mubr.f32.mxu0 0.0
      %1040 = vmatmul.mubr.f32.gmra.mrb[0].mxu0 %v968
      %v1041 = vpop.f32.mrb[0].mxu0
      %v1042 = vadd.f32 0.0, %v1041
      %v1043 = vpop.f32.mrb[0].mxu0
      %1044 = vdwg.mxu0
      %1045 = vrot.lane.b32.xlu0 %v836, 112
      %v1046 = vpop.permute.xlu0 %1045
      %1047 = vrot.lane.b32.xlu0 %v841, 112
      %v1048 = vpop.permute.xlu0 %1047
      %1049 = vrot.lane.b32.xlu0 %v836, 80
      %v1050 = vpop.permute.xlu0 %1049
      %1051 = vrot.lane.b32.xlu0 %v841, 80
      %v1052 = vpop.permute.xlu0 %1051
      %v1053 = vsel %vm850, %v1046, 0
      %v1055 = vsel %vm850, %v1048, 0
      %v1057 = vsel %vm850, %v1050, 0
      %v1059 = vsel %vm850, %v1052, 0
      %1061 = vmatprep.subr.mxu0 0.0
      %1062 = vmatpush1.xpose.msra.mxu0 %v1057
      %1063 = vmatprep.subr.mxu0 0.0
      %1064 = vmatpush1.xpose.msra.mxu0 %v1059
      %1065 = vmatprep.subr.mxu0 0.0
      %1066 = vmatpush1.xpose.msra.mxu0 0.0
      %1067 = vmatprep.subr.mxu0 0.0
      %1068 = vmatpush1.xpose.msra.mxu0 0.0
      %1069 = vmatprep.subr.mxu0 0.0
      %1070 = vmatpush1.xpose.msra.mxu0 0.0
      %1071 = vmatprep.subr.mxu0 0.0
      %1072 = vmatpush1.xpose.msra.mxu0 0.0
      %1073 = vmatprep.subr.mxu0 0.0
      %1074 = vmatpush1.xpose.msra.mxu0 0.0
      %1075 = vmatprep.subr.mxu0 0.0
      %1076 = vmatpush1.xpose.msra.mxu0 0.0
      %1077 = vmatprep.subr.mxu0 0.0
      %1078 = vmatpush1.xpose.msra.mxu0 0.0
      %1079 = vmatprep.subr.mxu0 0.0
      %1080 = vmatpush1.xpose.msra.mxu0 0.0
      %1081 = vmatprep.subr.mxu0 0.0
      %1082 = vmatpush1.xpose.msra.mxu0 0.0
      %1083 = vmatprep.subr.mxu0 0.0
      %1084 = vmatpush1.xpose.msra.mxu0 0.0
      %1085 = vmatprep.subr.mxu0 0.0
      %1086 = vmatpush1.xpose.msra.mxu0 0.0
      %1087 = vmatprep.subr.mxu0 0.0
      %1088 = vmatpush1.xpose.msra.mxu0 0.0
      %1089 = vmatprep.subr.mxu0 0.0
      %1090 = vmatpush1.xpose.msra.mxu0 0.0
      %1091 = vmatprep.subr.mxu0 0.0
      %1092 = vmatpush1.xpose.msra.mxu0 0.0
      %1093 = vmatprep.subr.mxu0 0.0
      %1094 = vmatpush1.xpose.msra.mxu0 0.0
      %1095 = vmatprep.subr.mxu0 0.0
      %1096 = vmatpush1.xpose.msra.mxu0 0.0
      %1097 = vmatprep.subr.mxu0 0.0
      %1098 = vmatpush1.xpose.msra.mxu0 0.0
      %1099 = vmatprep.subr.mxu0 0.0
      %1100 = vmatpush1.xpose.msra.mxu0 0.0
      %1101 = vmatprep.subr.mxu0 0.0
      %1102 = vmatpush1.xpose.msra.mxu0 0.0
      %1103 = vmatprep.subr.mxu0 0.0
      %1104 = vmatpush1.xpose.msra.mxu0 0.0
      %1105 = vmatprep.subr.mxu0 0.0
      %1106 = vmatpush1.xpose.msra.mxu0 0.0
      %1107 = vmatprep.subr.mxu0 0.0
      %1108 = vmatpush1.xpose.msra.mxu0 0.0
      %1109 = vmatprep.subr.mxu0 0.0
      %1110 = vmatpush1.xpose.msra.mxu0 0.0
      %1111 = vmatprep.subr.mxu0 0.0
      %1112 = vmatpush1.xpose.msra.mxu0 0.0
      %1113 = vmatprep.subr.mxu0 0.0
      %1114 = vmatpush1.xpose.msra.mxu0 0.0
      %1115 = vmatprep.subr.mxu0 0.0
      %1116 = vmatpush1.xpose.msra.mxu0 0.0
      %1117 = vmatprep.subr.mxu0 0.0
      %1118 = vmatpush1.xpose.msra.mxu0 0.0
      %1119 = vmatprep.subr.mxu0 0.0
      %1120 = vmatpush1.xpose.msra.mxu0 0.0
      %1121 = vmatprep.subr.mxu0 0.0
      %1122 = vmatpush1.xpose.msra.mxu0 0.0
      %1123 = vmatprep.subr.mxu0 0.0
      %1124 = vmatpush1.xpose.msra.mxu0 0.0
      %1125 = vmatprep.mubr.f32.mxu0 0.0
      %1126 = vmatmul.mubr.f32.gmra.mrb[0].mxu0 %v1053
      %v1127 = vpop.f32.mrb[0].mxu0
      %v1128 = vadd.f32 0.0, %v1127
      %v1129 = vpop.f32.mrb[0].mxu0
      %1130 = vmatprep.mubr.f32.mxu0 0.0
      %1131 = vmatmul.mubr.f32.gmra.mrb[0].mxu0 %v1055
      %v1132 = vpop.f32.mrb[0].mxu0
      %v1133 = vadd.f32 0.0, %v1132
      %v1134 = vpop.f32.mrb[0].mxu0
      %1135 = vdwg.mxu0
      %v1136 = vmul.f32 %v1128, 0.25
      %v1137 = vmul.f32 %v1133, 0.25
      %v1138 = vsel %vm850, %v1136, -inf
      %1139 = vmax.xlane.f32.xlu0 %v1138
      %v1140 = vpop.xlane.xlu0 %1139
      %v1141 = vsel %vm850, %v1137, -inf
      %1142 = vmax.xlane.f32.xlu0 %v1141
      %v1143 = vpop.xlane.xlu0 %1142
      %v1144 = vsub.f32 %v1136, %v1140
      %v1145 = vsub.f32 %v1137, %v1143
      %v1146 = vmul.f32 %v1144, 1.442695
      %v1147 = vpow.pop %v1146
      %v1148 = vmul.f32 %v1145, 1.442695
      %v1149 = vpow.pop %v1148
      %v1150 = vsel %vm850, %v1147, 0.0
      %1151 = vadd.xlane.f32.xlu0 %v1150
      %v1152 = vpop.xlane.xlu0 %1151
      %v1153 = vsel %vm850, %v1149, 0.0
      %1154 = vadd.xlane.f32.xlu0 %v1153
      %v1155 = vpop.xlane.xlu0 %1154
      %v1156 = vrcp.pop %v1152
      %v1157 = vrcp.pop %v1155
      %v1158 = vmul.f32 %v1147, %v1156
      %v1159 = vmul.f32 %v1149, %v1157
      %1160 = vrot.lane.b32.xlu0 %v836, 48
      %v1161 = vpop.permute.xlu0 %1160
      %1162 = vrot.lane.b32.xlu0 %v841, 48
      %v1163 = vpop.permute.xlu0 %1162
      %v1167 = vsel %vm850, %v1158, 0
      %v1170 = vsel %vm850, %v1159, 0
      %1172 = vmatprep.subr.mxu0 0.0
      %1173 = vmatpush1.msra.mxu0 %v1161
      %1174 = vmatprep.subr.mxu0 0.0
      %1175 = vmatpush1.msra.mxu0 %v1163
      %1176 = vmatprep.subr.mxu0 0.0
      %1177 = vmatpush1.msra.mxu0 0.0
      %1178 = vmatprep.subr.mxu0 0.0
      %1179 = vmatpush1.msra.mxu0 0.0
      %1180 = vmatprep.subr.mxu0 0.0
      %1181 = vmatpush1.msra.mxu0 0.0
      %1182 = vmatprep.subr.mxu0 0.0
      %1183 = vmatpush1.msra.mxu0 0.0
      %1184 = vmatprep.subr.mxu0 0.0
      %1185 = vmatpush1.msra.mxu0 0.0
      %1186 = vmatprep.subr.mxu0 0.0
      %1187 = vmatpush1.msra.mxu0 0.0
      %1188 = vmatprep.subr.mxu0 0.0
      %1189 = vmatpush1.msra.mxu0 0.0
      %1190 = vmatprep.subr.mxu0 0.0
      %1191 = vmatpush1.msra.mxu0 0.0
      %1192 = vmatprep.subr.mxu0 0.0
      %1193 = vmatpush1.msra.mxu0 0.0
      %1194 = vmatprep.subr.mxu0 0.0
      %1195 = vmatpush1.msra.mxu0 0.0
      %1196 = vmatprep.subr.mxu0 0.0
      %1197 = vmatpush1.msra.mxu0 0.0
      %1198 = vmatprep.subr.mxu0 0.0
      %1199 = vmatpush1.msra.mxu0 0.0
      %1200 = vmatprep.subr.mxu0 0.0
      %1201 = vmatpush1.msra.mxu0 0.0
      %1202 = vmatprep.subr.mxu0 0.0
      %1203 = vmatpush1.msra.mxu0 0.0
      %1204 = vmatprep.subr.mxu0 0.0
      %1205 = vmatpush1.msra.mxu0 0.0
      %1206 = vmatprep.subr.mxu0 0.0
      %1207 = vmatpush1.msra.mxu0 0.0
      %1208 = vmatprep.subr.mxu0 0.0
      %1209 = vmatpush1.msra.mxu0 0.0
      %1210 = vmatprep.subr.mxu0 0.0
      %1211 = vmatpush1.msra.mxu0 0.0
      %1212 = vmatprep.subr.mxu0 0.0
      %1213 = vmatpush1.msra.mxu0 0.0
      %1214 = vmatprep.subr.mxu0 0.0
      %1215 = vmatpush1.msra.mxu0 0.0
      %1216 = vmatprep.subr.mxu0 0.0
      %1217 = vmatpush1.msra.mxu0 0.0
      %1218 = vmatprep.subr.mxu0 0.0
      %1219 = vmatpush1.msra.mxu0 0.0
      %1220 = vmatprep.subr.mxu0 0.0
      %1221 = vmatpush1.msra.mxu0 0.0
      %1222 = vmatprep.subr.mxu0 0.0
      %1223 = vmatpush1.msra.mxu0 0.0
      %1224 = vmatprep.subr.mxu0 0.0
      %1225 = vmatpush1.msra.mxu0 0.0
      %1226 = vmatprep.subr.mxu0 0.0
      %1227 = vmatpush1.msra.mxu0 0.0
      %1228 = vmatprep.subr.mxu0 0.0
      %1229 = vmatpush1.msra.mxu0 0.0
      %1230 = vmatprep.subr.mxu0 0.0
      %1231 = vmatpush1.msra.mxu0 0.0
      %1232 = vmatprep.subr.mxu0 0.0
      %1233 = vmatpush1.msra.mxu0 0.0
      %1234 = vmatprep.subr.mxu0 0.0
      %1235 = vmatpush1.msra.mxu0 0.0
      %1236 = vmatprep.mubr.f32.mxu0 0.0
      %1237 = vmatmul.mubr.f32.gmra.mrb[0].mxu0 %v1167
      %v1238 = vpop.f32.mrb[0].mxu0
      %v1239 = vadd.f32 0.0, %v1238
      %v1240 = vpop.f32.mrb[0].mxu0
      %1241 = vmatprep.mubr.f32.mxu0 0.0
      %1242 = vmatmul.mubr.f32.gmra.mrb[0].mxu0 %v1170
      %v1243 = vpop.f32.mrb[0].mxu0
      %v1244 = vadd.f32 0.0, %v1243
      %v1245 = vpop.f32.mrb[0].mxu0
      %1246 = vdwg.mxu0
      %1249 = vrot.lane.b32.xlu0 %v1239, 16
      %v1250 = vpop.permute.xlu0 %1249
      %1251 = vrot.lane.b32.xlu0 %v1244, 16
      %v1252 = vpop.permute.xlu0 %1251
      %v1255 = vsel %vm850, %v1037, %v1250
      %v1256 = vsel %vm850, %v1042, %v1252
      %v1258 = vlaneseq
      %v1259 = vshrl.u32 %v1258, 7
      %v1260 = vsub.s32 0, %v1259
      %v1261 = vrot.slane %v688, %v1260
      %v1264 = vsel %vm713, %v1255, 0
      %v1267 = vsel %vm713, %v1256, 0
      %1269 = vmatprep.subr.mxu0 0.0
      %1270 = vmatpush1.msra.mxu0 %v684
      %1271 = vmatprep.subr.mxu0 0.0
      %1272 = vmatpush1.msra.mxu0 %v685
      %1273 = vmatprep.subr.mxu0 0.0
      %1274 = vmatpush1.msra.mxu0 %v686
      %1275 = vmatprep.subr.mxu0 0.0
      %1276 = vmatpush1.msra.mxu0 %v687
      %1277 = vmatprep.subr.mxu0 0.0
      %1278 = vmatpush1.msra.mxu0 0.0
      %1279 = vmatprep.subr.mxu0 0.0
      %1280 = vmatpush1.msra.mxu0 0.0
      %1281 = vmatprep.subr.mxu0 0.0
      %1282 = vmatpush1.msra.mxu0 0.0
      %1283 = vmatprep.subr.mxu0 0.0
      %1284 = vmatpush1.msra.mxu0 0.0
      %1285 = vmatprep.subr.mxu0 0.0
      %1286 = vmatpush1.msra.mxu0 0.0
      %1287 = vmatprep.subr.mxu0 0.0
      %1288 = vmatpush1.msra.mxu0 0.0
      %1289 = vmatprep.subr.mxu0 0.0
      %1290 = vmatpush1.msra.mxu0 0.0
      %1291 = vmatprep.subr.mxu0 0.0
      %1292 = vmatpush1.msra.mxu0 0.0
      %1293 = vmatprep.subr.mxu0 0.0
      %1294 = vmatpush1.msra.mxu0 0.0
      %1295 = vmatprep.subr.mxu0 0.0
      %1296 = vmatpush1.msra.mxu0 0.0
      %1297 = vmatprep.subr.mxu0 0.0
      %1298 = vmatpush1.msra.mxu0 0.0
      %1299 = vmatprep.subr.mxu0 0.0
      %1300 = vmatpush1.msra.mxu0 0.0
      %1301 = vmatprep.subr.mxu0 0.0
      %1302 = vmatpush1.msra.mxu0 0.0
      %1303 = vmatprep.subr.mxu0 0.0
      %1304 = vmatpush1.msra.mxu0 0.0
      %1305 = vmatprep.subr.mxu0 0.0
      %1306 = vmatpush1.msra.mxu0 0.0
      %1307 = vmatprep.subr.mxu0 0.0
      %1308 = vmatpush1.msra.mxu0 0.0
      %1309 = vmatprep.subr.mxu0 0.0
      %1310 = vmatpush1.msra.mxu0 0.0
      %1311 = vmatprep.subr.mxu0 0.0
      %1312 = vmatpush1.msra.mxu0 0.0
      %1313 = vmatprep.subr.mxu0 0.0
      %1314 = vmatpush1.msra.mxu0 0.0
      %1315 = vmatprep.subr.mxu0 0.0
      %1316 = vmatpush1.msra.mxu0 0.0
      %1317 = vmatprep.subr.mxu0 0.0
      %1318 = vmatpush1.msra.mxu0 0.0
      %1319 = vmatprep.subr.mxu0 0.0
      %1320 = vmatpush1.msra.mxu0 0.0
      %1321 = vmatprep.subr.mxu0 0.0
      %1322 = vmatpush1.msra.mxu0 0.0
      %1323 = vmatprep.subr.mxu0 0.0
      %1324 = vmatpush1.msra.mxu0 0.0
      %1325 = vmatprep.subr.mxu0 0.0
      %1326 = vmatpush1.msra.mxu0 0.0
      %1327 = vmatprep.subr.mxu0 0.0
      %1328 = vmatpush1.msra.mxu0 0.0
      %1329 = vmatprep.subr.mxu0 0.0
      %1330 = vmatpush1.msra.mxu0 0.0
      %1331 = vmatprep.subr.mxu0 0.0
      %1332 = vmatpush1.msra.mxu0 0.0
      %1333 = vmatprep.mubr.f32.mxu0 0.0
      %1334 = vmatmul.mubr.f32.gmra.mrb[0].mxu0 %v1264
      %v1335 = vpop.f32.mrb[0].mxu0
      %v1336 = vadd.f32 %v1261, %v1335
      %v1337 = vpop.f32.mrb[0].mxu0
      %1338 = vmatprep.mubr.f32.mxu0 0.0
      %1339 = vmatmul.mubr.f32.gmra.mrb[0].mxu0 %v1267
      %v1340 = vpop.f32.mrb[0].mxu0
      %v1341 = vadd.f32 %v1261, %v1340
      %v1342 = vpop.f32.mrb[0].mxu0
      %1343 = vdwg.mxu0
      %v1344 = vadd.f32 %v675, %v1336
      %v1345 = vadd.f32 %v676, %v1341
      %v1346 = vsel %vm713, %v1344, 0.0
      %1347 = vadd.xlane.f32.xlu0 %v1346
      %v1348 = vpop.xlane.xlu0 %1347
      %v1349 = vsel %vm713, %v1345, 0.0
      %1350 = vadd.xlane.f32.xlu0 %v1349
      %v1351 = vpop.xlane.xlu0 %1350
      %v1352 = vmul.f32 %v1348, %v720
      %v1353 = vmul.f32 %v1351, %v720
      %v1354 = vsub.f32 %v1344, %v1352
      %v1355 = vsub.f32 %v1345, %v1353
      %v1356 = vmul.f32 %v1354, %v1354
      %v1357 = vmul.f32 %v1355, %v1355
      %v1358 = vsel %vm713, %v1356, 0.0
      %1359 = vadd.xlane.f32.xlu0 %v1358
      %v1360 = vpop.xlane.xlu0 %1359
      %v1361 = vsel %vm713, %v1357, 0.0
      %1362 = vadd.xlane.f32.xlu0 %v1361
      %v1363 = vpop.xlane.xlu0 %1362
      %v1364 = vmul.f32 %v1360, %v720
      %v1365 = vmul.f32 %v1363, %v720
      %v1366 = vadd.f32 %v1364, 1e-05
      %v1367 = vadd.f32 %v1365, 1e-05
      %v1368 = vrsqrt.pop %v1366
      %v1369 = vrsqrt.pop %v1367
      %v1370 = vmul.f32 %v1354, %v1368
      %v1371 = vmul.f32 %v1355, %v1369
      %v1373 = vlaneseq
      %v1374 = vshrl.u32 %v1373, 7
      %v1375 = vsub.s32 0, %v1374
      %v1376 = vrot.slane %v689, %v1375
      %v1378 = vmul.f32 %v1370, %v1376
      %v1379 = vmul.f32 %v1371, %v1376
      %v1381 = vlaneseq
      %v1382 = vshrl.u32 %v1381, 7
      %v1383 = vsub.s32 0, %v1382
      %v1384 = vrot.slane %v690, %v1383
      %v1386 = vadd.f32 %v1378, %v1384
      %v1387 = vadd.f32 %v1379, %v1384
      %v1389 = vlaneseq
      %v1390 = vshrl.u32 %v1389, 7
      %v1391 = vsub.s32 0, %v1390
      %v1392 = vrot.slane %v695, %v1391
      %v1395 = vsel %vm713, %v1386, 0
      %v1398 = vsel %vm713, %v1387, 0
      %1400 = vmatprep.subr.mxu0 0.0
      %1401 = vmatpush1.msra.mxu0 %v691
      %1402 = vmatprep.subr.mxu0 0.0
      %1403 = vmatpush1.msra.mxu0 %v692
      %1404 = vmatprep.subr.mxu0 0.0
      %1405 = vmatpush1.msra.mxu0 %v693
      %1406 = vmatprep.subr.mxu0 0.0
      %1407 = vmatpush1.msra.mxu0 %v694
      %1408 = vmatprep.subr.mxu0 0.0
      %1409 = vmatpush1.msra.mxu0 0.0
      %1410 = vmatprep.subr.mxu0 0.0
      %1411 = vmatpush1.msra.mxu0 0.0
      %1412 = vmatprep.subr.mxu0 0.0
      %1413 = vmatpush1.msra.mxu0 0.0
      %1414 = vmatprep.subr.mxu0 0.0
      %1415 = vmatpush1.msra.mxu0 0.0
      %1416 = vmatprep.subr.mxu0 0.0
      %1417 = vmatpush1.msra.mxu0 0.0
      %1418 = vmatprep.subr.mxu0 0.0
      %1419 = vmatpush1.msra.mxu0 0.0
      %1420 = vmatprep.subr.mxu0 0.0
      %1421 = vmatpush1.msra.mxu0 0.0
      %1422 = vmatprep.subr.mxu0 0.0
      %1423 = vmatpush1.msra.mxu0 0.0
      %1424 = vmatprep.subr.mxu0 0.0
      %1425 = vmatpush1.msra.mxu0 0.0
      %1426 = vmatprep.subr.mxu0 0.0
      %1427 = vmatpush1.msra.mxu0 0.0
      %1428 = vmatprep.subr.mxu0 0.0
      %1429 = vmatpush1.msra.mxu0 0.0
      %1430 = vmatprep.subr.mxu0 0.0
      %1431 = vmatpush1.msra.mxu0 0.0
      %1432 = vmatprep.subr.mxu0 0.0
      %1433 = vmatpush1.msra.mxu0 0.0
      %1434 = vmatprep.subr.mxu0 0.0
      %1435 = vmatpush1.msra.mxu0 0.0
      %1436 = vmatprep.subr.mxu0 0.0
      %1437 = vmatpush1.msra.mxu0 0.0
      %1438 = vmatprep.subr.mxu0 0.0
      %1439 = vmatpush1.msra.mxu0 0.0
      %1440 = vmatprep.subr.mxu0 0.0
      %1441 = vmatpush1.msra.mxu0 0.0
      %1442 = vmatprep.subr.mxu0 0.0
      %1443 = vmatpush1.msra.mxu0 0.0
      %1444 = vmatprep.subr.mxu0 0.0
      %1445 = vmatpush1.msra.mxu0 0.0
      %1446 = vmatprep.subr.mxu0 0.0
      %1447 = vmatpush1.msra.mxu0 0.0
      %1448 = vmatprep.subr.mxu0 0.0
      %1449 = vmatpush1.msra.mxu0 0.0
      %1450 = vmatprep.subr.mxu0 0.0
      %1451 = vmatpush1.msra.mxu0 0.0
      %1452 = vmatprep.subr.mxu0 0.0
      %1453 = vmatpush1.msra.mxu0 0.0
      %1454 = vmatprep.subr.mxu0 0.0
      %1455 = vmatpush1.msra.mxu0 0.0
      %1456 = vmatprep.subr.mxu0 0.0
      %1457 = vmatpush1.msra.mxu0 0.0
      %1458 = vmatprep.subr.mxu0 0.0
      %1459 = vmatpush1.msra.mxu0 0.0
      %1460 = vmatprep.subr.mxu0 0.0
      %1461 = vmatpush1.msra.mxu0 0.0
      %1462 = vmatprep.subr.mxu0 0.0
      %1463 = vmatpush1.msra.mxu0 0.0
      %1464 = vmatprep.mubr.f32.mxu0 0.0
      %1465 = vmatmul.mubr.f32.gmra.mrb[0].mxu0 %v1395
      %v1466 = vpop.f32.mrb[0].mxu0
      %v1467 = vadd.f32 %v1392, %v1466
      %v1468 = vpop.f32.mrb[0].mxu0
      %1469 = vmatprep.mubr.f32.mxu0 0.0
      %1470 = vmatmul.mubr.f32.gmra.mrb[0].mxu0 %v1398
      %v1471 = vpop.f32.mrb[0].mxu0
      %v1472 = vadd.f32 %v1392, %v1471
      %v1473 = vpop.f32.mrb[0].mxu0
      %1474 = vdwg.mxu0
      %v1475 = vmul.f32 %v1467, %v1467
      %v1476 = vmul.f32 %v1472, %v1472
      %v1477 = vmul.f32 %v1467, %v1475
      %v1478 = vmul.f32 %v1472, %v1476
      %v1479 = vmul.f32 %v1477, 0.044715
      %v1480 = vmul.f32 %v1478, 0.044715
      %v1481 = vadd.f32 %v1467, %v1479
      %v1482 = vadd.f32 %v1472, %v1480
      %v1483 = vmul.f32 %v1481, 0.7978846
      %v1484 = vmul.f32 %v1482, 0.7978846
      %v1485 = vtanh.pop %v1483
      %v1486 = vtanh.pop %v1484
      %v1487 = vadd.f32 %v1485, 1.0
      %v1488 = vadd.f32 %v1486, 1.0
      %v1489 = vmul.f32 %v1487, 0.5
      %v1490 = vmul.f32 %v1488, 0.5
      %v1491 = vmul.f32 %v1467, %v1489
      %v1492 = vmul.f32 %v1472, %v1490
      %v1494 = vlaneseq
      %v1495 = vshrl.u32 %v1494, 7
      %v1496 = vsub.s32 0, %v1495
      %v1497 = vrot.slane %v712, %v1496
      %1499 = vmatprep.subr.mxu0 0.0
      %1500 = vmatpush1.msra.mxu0 %v696
      %1501 = vmatprep.subr.mxu0 0.0
      %1502 = vmatpush1.msra.mxu0 %v697
      %1503 = vmatprep.subr.mxu0 0.0
      %1504 = vmatpush1.msra.mxu0 %v698
      %1505 = vmatprep.subr.mxu0 0.0
      %1506 = vmatpush1.msra.mxu0 %v699
      %1507 = vmatprep.subr.mxu0 0.0
      %1508 = vmatpush1.msra.mxu0 %v700
      %1509 = vmatprep.subr.mxu0 0.0
      %1510 = vmatpush1.msra.mxu0 %v701
      %1511 = vmatprep.subr.mxu0 0.0
      %1512 = vmatpush1.msra.mxu0 %v702
      %1513 = vmatprep.subr.mxu0 0.0
      %1514 = vmatpush1.msra.mxu0 %v703
      %1515 = vmatprep.subr.mxu0 0.0
      %1516 = vmatpush1.msra.mxu0 %v704
      %1517 = vmatprep.subr.mxu0 0.0
      %1518 = vmatpush1.msra.mxu0 %v705
      %1519 = vmatprep.subr.mxu0 0.0
      %1520 = vmatpush1.msra.mxu0 %v706
      %1521 = vmatprep.subr.mxu0 0.0
      %1522 = vmatpush1.msra.mxu0 %v707
      %1523 = vmatprep.subr.mxu0 0.0
      %1524 = vmatpush1.msra.mxu0 %v708
      %1525 = vmatprep.subr.mxu0 0.0
      %1526 = vmatpush1.msra.mxu0 %v709
      %1527 = vmatprep.subr.mxu0 0.0
      %1528 = vmatpush1.msra.mxu0 %v710
      %1529 = vmatprep.subr.mxu0 0.0
      %1530 = vmatpush1.msra.mxu0 %v711
      %1531 = vmatprep.subr.mxu0 0.0
      %1532 = vmatpush1.msra.mxu0 0.0
      %1533 = vmatprep.subr.mxu0 0.0
      %1534 = vmatpush1.msra.mxu0 0.0
      %1535 = vmatprep.subr.mxu0 0.0
      %1536 = vmatpush1.msra.mxu0 0.0
      %1537 = vmatprep.subr.mxu0 0.0
      %1538 = vmatpush1.msra.mxu0 0.0
      %1539 = vmatprep.subr.mxu0 0.0
      %1540 = vmatpush1.msra.mxu0 0.0
      %1541 = vmatprep.subr.mxu0 0.0
      %1542 = vmatpush1.msra.mxu0 0.0
      %1543 = vmatprep.subr.mxu0 0.0
      %1544 = vmatpush1.msra.mxu0 0.0
      %1545 = vmatprep.subr.mxu0 0.0
      %1546 = vmatpush1.msra.mxu0 0.0
      %1547 = vmatprep.subr.mxu0 0.0
      %1548 = vmatpush1.msra.mxu0 0.0
      %1549 = vmatprep.subr.mxu0 0.0
      %1550 = vmatpush1.msra.mxu0 0.0
      %1551 = vmatprep.subr.mxu0 0.0
      %1552 = vmatpush1.msra.mxu0 0.0
      %1553 = vmatprep.subr.mxu0 0.0
      %1554 = vmatpush1.msra.mxu0 0.0
      %1555 = vmatprep.subr.mxu0 0.0
      %1556 = vmatpush1.msra.mxu0 0.0
      %1557 = vmatprep.subr.mxu0 0.0
      %1558 = vmatpush1.msra.mxu0 0.0
      %1559 = vmatprep.subr.mxu0 0.0
      %1560 = vmatpush1.msra.mxu0 0.0
      %1561 = vmatprep.subr.mxu0 0.0
      %1562 = vmatpush1.msra.mxu0 0.0
      %1563 = vmatprep.mubr.f32.mxu0 0.0
      %1564 = vmatmul.mubr.f32.gmra.mrb[0].mxu0 %v1491
      %v1565 = vpop.f32.mrb[0].mxu0
      %v1566 = vadd.f32 %v1497, %v1565
      %v1567 = vpop.f32.mrb[0].mxu0
      %1568 = vmatprep.mubr.f32.mxu0 0.0
      %1569 = vmatmul.mubr.f32.gmra.mrb[0].mxu0 %v1492
      %v1570 = vpop.f32.mrb[0].mxu0
      %v1571 = vadd.f32 %v1497, %v1570
      %v1572 = vpop.f32.mrb[0].mxu0
      %1573 = vdwg.mxu0
      %v1574 = vadd.f32 %v1344, %v1566
      %v1575 = vadd.f32 %v1345, %v1571
      %v1576 = vld [vmem:[%s16] sm:$0xff]
      %v1577 = vld [vmem:[%s16 + $0x8] sm:$0xff]
      %v1578 = vld [vmem:[%s16 + $0x10] sm:$0xff]
      %v1579 = vld [vmem:[%s16 + $0x18] sm:$0xff]
      %v1580 = vld [vmem:[%s17] sm:$0x1]
      %v1582 = vlaneseq
      %v1583 = vshrl.u32 %v1582, 7
      %v1584 = vsub.s32 0, %v1583
      %v1585 = vrot.slane %v1580, %v1584
      %v1588 = vsel %vm713, %v1574, 0
      %v1591 = vsel %vm713, %v1575, 0
      %1593 = vmatprep.subr.mxu0 0.0
      %1594 = vmatpush1.msra.mxu0 %v1576
      %1595 = vmatprep.subr.mxu0 0.0
      %1596 = vmatpush1.msra.mxu0 %v1577
      %1597 = vmatprep.subr.mxu0 0.0
      %1598 = vmatpush1.msra.mxu0 %v1578
      %1599 = vmatprep.subr.mxu0 0.0
      %1600 = vmatpush1.msra.mxu0 %v1579
      %1601 = vmatprep.subr.mxu0 0.0
      %1602 = vmatpush1.msra.mxu0 0.0
      %1603 = vmatprep.subr.mxu0 0.0
      %1604 = vmatpush1.msra.mxu0 0.0
      %1605 = vmatprep.subr.mxu0 0.0
      %1606 = vmatpush1.msra.mxu0 0.0
      %1607 = vmatprep.subr.mxu0 0.0
      %1608 = vmatpush1.msra.mxu0 0.0
      %1609 = vmatprep.subr.mxu0 0.0
      %1610 = vmatpush1.msra.mxu0 0.0
      %1611 = vmatprep.subr.mxu0 0.0
      %1612 = vmatpush1.msra.mxu0 0.0
      %1613 = vmatprep.subr.mxu0 0.0
      %1614 = vmatpush1.msra.mxu0 0.0
      %1615 = vmatprep.subr.mxu0 0.0
      %1616 = vmatpush1.msra.mxu0 0.0
      %1617 = vmatprep.subr.mxu0 0.0
      %1618 = vmatpush1.msra.mxu0 0.0
      %1619 = vmatprep.subr.mxu0 0.0
      %1620 = vmatpush1.msra.mxu0 0.0
      %1621 = vmatprep.subr.mxu0 0.0
      %1622 = vmatpush1.msra.mxu0 0.0
      %1623 = vmatprep.subr.mxu0 0.0
      %1624 = vmatpush1.msra.mxu0 0.0
      %1625 = vmatprep.subr.mxu0 0.0
      %1626 = vmatpush1.msra.mxu0 0.0
      %1627 = vmatprep.subr.mxu0 0.0
      %1628 = vmatpush1.msra.mxu0 0.0
      %1629 = vmatprep.subr.mxu0 0.0
      %1630 = vmatpush1.msra.mxu0 0.0
      %1631 = vmatprep.subr.mxu0 0.0
      %1632 = vmatpush1.msra.mxu0 0.0
      %1633 = vmatprep.subr.mxu0 0.0
      %1634 = vmatpush1.msra.mxu0 0.0
      %1635 = vmatprep.subr.mxu0 0.0
      %1636 = vmatpush1.msra.mxu0 0.0
      %1637 = vmatprep.subr.mxu0 0.0
      %1638 = vmatpush1.msra.mxu0 0.0
      %1639 = vmatprep.subr.mxu0 0.0
      %1640 = vmatpush1.msra.mxu0 0.0
      %1641 = vmatprep.subr.mxu0 0.0
      %1642 = vmatpush1.msra.mxu0 0.0
      %1643 = vmatprep.subr.mxu0 0.0
      %1644 = vmatpush1.msra.mxu0 0.0
      %1645 = vmatprep.subr.mxu0 0.0
      %1646 = vmatpush1.msra.mxu0 0.0
      %1647 = vmatprep.subr.mxu0 0.0
      %1648 = vmatpush1.msra.mxu0 0.0
      %1649 = vmatprep.subr.mxu0 0.0
      %1650 = vmatpush1.msra.mxu0 0.0
      %1651 = vmatprep.subr.mxu0 0.0
      %1652 = vmatpush1.msra.mxu0 0.0
      %1653 = vmatprep.subr.mxu0 0.0
      %1654 = vmatpush1.msra.mxu0 0.0
      %1655 = vmatprep.subr.mxu0 0.0
      %1656 = vmatpush1.msra.mxu0 0.0
      %1657 = vmatprep.mubr.f32.mxu0 0.0
      %1658 = vmatmul.mubr.f32.gmra.mrb[0].mxu0 %v1588
      %v1659 = vpop.f32.mrb[0].mxu0
      %v1660 = vadd.f32 %v1585, %v1659
      %v1661 = vpop.f32.mrb[0].mxu0
      %1662 = vmatprep.mubr.f32.mxu0 0.0
      %1663 = vmatmul.mubr.f32.gmra.mrb[0].mxu0 %v1591
      %v1664 = vpop.f32.mrb[0].mxu0
      %v1665 = vadd.f32 %v1585, %v1664
      %v1666 = vpop.f32.mrb[0].mxu0
      %1667 = vdwg.mxu0
      %1668 = vst.msk [vmem:[%s575] sm:$0xff] %vm850, %v1660
      %1669 = vst.msk [vmem:[%s575 + $0x8] sm:$0xff] %vm850, %v1665
      %p1670 = scmp.lt.s32.totalorder %s29, 3
      %s1671 = scalar_select %p1670, %s29, 3
      %s1672 = smul.addr %s1671, 2
      %s1673 = smul.addr %s1672, 8
      %s1674 = scalar_lea.vmem %s18, %s1673
      // Predicated region
      $region93: #{leap_encoder_forward.2} parent=91 // pred_check
        %p1675 = pneg %p430
      $region94: #{leap_encoder_forward.2} parent=91 // pred_check_branch
        %1677 = sbr.rel (%p1675) target = $region96
      $region95: #{leap_encoder_forward.2} parent=91 // pred_region
        _
      $region96: #{leap_encoder_forward.2} parent=91 // pred_fallthru
        _
    $region92: #{leap_encoder_forward.2} parent=5 // pred_fallthru
      _
    %p1678 = scmp.le.s32.totalorder 2, %s24
    // Predicated region
    $region97: #{leap_encoder_forward.2} parent=5 // pred_check
      %p1679 = pneg %p1678
    $region98: #{leap_encoder_forward.2} parent=5 // pred_check_branch
      %1681 = sbr.rel (%p1679) target = $region100
    $region99: #{leap_encoder_forward.2} parent=5 // pred_region
      %s1682 = ssub.s32 %s24, 2
      // Predicated region
      $region101: #{leap_encoder_forward.2} parent=99 // pred_check
        %p1683 = pneg %p436
      $region102: #{leap_encoder_forward.2} parent=99 // pred_check_branch
        %1685 = sbr.rel (%p1683) target = $region104
      $region103: #{leap_encoder_forward.2} parent=99 // pred_region
        %p1686 = scmp.lt.s32.totalorder %s30, 3
        %s1687 = scalar_select %p1686, %s30, 3
        %s1688 = smul.addr %s1687, 2
        %s1689 = smul.addr %s1688, 8
        %s1690 = scalar_lea.vmem %s18, %s1689
      $region104: #{leap_encoder_forward.2} parent=99 // pred_fallthru
        _
    $region100: #{leap_encoder_forward.2} parent=5 // pred_fallthru
      _
  $region6: #{leap_encoder_forward.2} parent=0 // loop_footer
    %s28 = sadd.s32 1, %s24
  $region7: #{leap_encoder_forward.2} parent=0 // loop_footer_branch
    %23 = sbr.rel target = $region3
  $region8: #{leap_encoder_forward.2} parent=0 // loop_exit
    _

</llo_original>
